<compile_context>
chip_gen: v7x
topology: tpu7x:2x2x1
jax: 0.10.0
libtpu: 0.0.40
codegen_flags: <defaults>
</compile_context>

<pallas_src>
import functools
import math

import jax
import jax.numpy as jnp
from jax.experimental import pallas as pl
from jax.experimental.pallas import tpu as pltpu


def _encoder_kernel(x_hbm, w_ref, b_ref, g_ref, beta_ref, o_ref,
                    in_buf, dma_sem, *,
                    n_layers, K, pad, L, tile_l, halo, eps):
    """Fused encoder for one (batch, L-tile) grid point.

    x_hbm    : (B, L + 2*halo, C)   zero-padded input, left in HBM (pl.ANY)
    w_ref    : (n_layers, K*C, C)   im2col conv weights (VMEM resident)
    b_ref    : (n_layers, C)        conv bias        (f32)
    g_ref    : (n_layers, C)        LayerNorm gamma  (f32)
    beta_ref : (n_layers, C)        LayerNorm beta   (f32)
    o_ref    : (1, tile_l, C)       output tile
    in_buf   : (tile_l + 2*halo, C) VMEM activation buffer (with halo)
    dma_sem  : (1,) DMA semaphore
    """
    tile_w = tile_l + 2 * halo

    b = pl.program_id(0)
    j = pl.program_id(1)

    # Element offset of this tile's halo window in the padded sequence axis.
    start = j * tile_l
    if tile_l % 8 == 0:
        start = pl.multiple_of(start, 8)

    cp = pltpu.make_async_copy(
        x_hbm.at[b, pl.ds(start, tile_w), :], in_buf, dma_sem.at[0])
    cp.start()
    cp.wait()

    # Global (un-padded) sequence position of buffer row 0 for this tile.
    base = j * tile_l - halo

    for l in range(n_layers):               # static unroll, n_layers is small
        off_in = l * pad                    # first valid input row in buffer
        off_out = (l + 1) * pad             # first output row in buffer
        w_in = tile_w - 2 * off_in          # valid input width
        w_out = w_in - (K - 1)              # output width

        # --- Conv1d as one im2col matmul (contraction dim = K*C) ---
        slab = jnp.concatenate(
            [in_buf[off_in + t: off_in + t + w_out, :] for t in range(K)],
            axis=-1)                                             # (w_out, K*C)
        acc = jnp.dot(slab, w_ref[l],
                      preferred_element_type=jnp.float32)        # (w_out, C)
        acc = acc + b_ref[l:l + 1, :].astype(jnp.float32)

        # --- ReLU + residual (residual comes from the in-VMEM buffer) ---
        acc = jnp.maximum(acc, 0.0)
        res = in_buf[off_out: off_out + w_out, :].astype(jnp.float32)
        y = res + acc

        # --- LayerNorm over channels (unbiased=False), f32 stats, rsqrt ---
        mean = jnp.mean(y, axis=-1, keepdims=True)
        diff = y - mean
        var = jnp.mean(diff * diff, axis=-1, keepdims=True)
        out = diff * jax.lax.rsqrt(var + eps)
        out = (g_ref[l:l + 1, :].astype(jnp.float32) * out
               + beta_ref[l:l + 1, :].astype(jnp.float32))

        if l + 1 < n_layers:
            # Re-zero rows outside [0, L) so the next conv sees true zero
            # padding (only matters for the first / last sequence tiles).
            pos = (base + off_out
                   + jax.lax.broadcasted_iota(jnp.int32, (w_out, 1), 0))
            out = jnp.where((pos >= 0) & (pos < L), out, 0.0)
            in_buf[off_out: off_out + w_out, :] = out.astype(in_buf.dtype)
        else:
            # Final layer: output width == tile_l, all positions in range.
            o_ref[...] = out[None, :, :].astype(o_ref.dtype)


def _pick_tile_l(L, max_tile=512):
    """Largest multiple of 8 that divides L (capped), else the full L."""
    if L <= max_tile:
        return L
    t = (max_tile // 8) * 8
    while t >= 8:
        if L % t == 0:
            return t
        t -= 8
    return L


def encoder_pallas(x, params, *, padding, eps=1e-12, tile_l=None):
    """Run the fused encoder stack on x of shape (B, L, C)."""
    B, L, C = x.shape
    n_layers = len(params)
    K = params[0]["w_im2col"].shape[0] // C
    assert 2 * padding == K - 1, "residual requires 'same' conv (odd K)"
    halo = n_layers * padding

    if tile_l is None:
        tile_l = _pick_tile_l(L)
    assert L % tile_l == 0 and (tile_l % 8 == 0 or tile_l == L), \
        "tile_l must divide L and be 8-aligned (or equal L)"
    tile_w = tile_l + 2 * halo
    num_tiles = L // tile_l

    dtype = x.dtype
    # One pad for the whole stack; per-layer zero padding is reproduced
    # in-kernel by masking the halo rows between layers.
    x_pad = jnp.pad(x, ((0, 0), (halo, halo), (0, 0)))

    w = jnp.stack([p["w_im2col"] for p in params]).astype(dtype)       # (n,K*C,C)
    bias = jnp.stack([p["bias"] for p in params]).astype(jnp.float32)  # (n,C)
    gamma = jnp.stack([p["gamma"] for p in params]).astype(jnp.float32)
    beta = jnp.stack([p["beta"] for p in params]).astype(jnp.float32)

    kernel = functools.partial(
        _encoder_kernel, n_layers=n_layers, K=K, pad=padding, L=L,
        tile_l=tile_l, halo=halo, eps=eps)

    # Live VMEM here is tiny (weights + one halo buffer + double-buffered
    # output tile); 32 MiB fits every generation incl. v7x's 64 MiB physical.
    vmem_limit = 32 * 1024 * 1024

    return pl.pallas_call(
        kernel,
        out_shape=jax.ShapeDtypeStruct((B, L, C), dtype),
        grid_spec=pltpu.PrefetchScalarGridSpec(
            num_scalar_prefetch=0,
            grid=(B, num_tiles),
            in_specs=[
                pl.BlockSpec(memory_space=pl.ANY),                   # padded x (HBM)
                pl.BlockSpec((n_layers, K * C, C), lambda b, j: (0, 0, 0)),
                pl.BlockSpec((n_layers, C), lambda b, j: (0, 0)),
                pl.BlockSpec((n_layers, C), lambda b, j: (0, 0)),
                pl.BlockSpec((n_layers, C), lambda b, j: (0, 0)),
            ],
            out_specs=pl.BlockSpec((1, tile_l, C), lambda b, j: (b, j, 0)),
            scratch_shapes=[
                pltpu.VMEM((tile_w, C), dtype),
                pltpu.SemaphoreType.DMA((1,)),
            ]),
        compiler_params=pltpu.CompilerParams(
            dimension_semantics=("parallel", "parallel"),
            vmem_limit_bytes=vmem_limit),
    )(x_pad, w, bias, gamma, beta)


def make_encoder_params(key, channels, kernel_size, n_layers):
    """Deterministic parameter init mirroring nn.Conv1d / LayerNorm shapes."""
    params = []
    bound = 1.0 / math.sqrt(channels * kernel_size)
    for _ in range(n_layers):
        key, kw, kb = jax.random.split(key, 3)
        # PyTorch Conv1d weight layout: (C_out, C_in, K)
        w = jax.random.uniform(kw, (channels, channels, kernel_size),
                               jnp.float32, -bound, bound)
        b = jax.random.uniform(kb, (channels,), jnp.float32, -bound, bound)
        # im2col layout: row index = t * C_in + c_in -> shape (K*C_in, C_out)
        w_im2col = jnp.transpose(w, (2, 1, 0)).reshape(
            kernel_size * channels, channels)
        gamma = jnp.ones((channels,), jnp.float32)
        beta = jnp.zeros((channels,), jnp.float32)
        params.append(dict(w_torch=w, w_im2col=w_im2col, bias=b,
                           gamma=gamma, beta=beta))
    return params


def encoder_reference(x, params, *, padding, eps=1e-12):
    """Pure-JAX reference (lax conv) mirroring the PyTorch module."""
    for p in params:
        xt = jnp.transpose(x, (0, 2, 1))  # (B, C, L) = NCW
        y = jax.lax.conv_general_dilated(
            xt, p["w_torch"], window_strides=(1,),
            padding=[(padding, padding)],
            dimension_numbers=("NCH", "OIH", "NCH"))
        y = y + p["bias"][None, :, None]
        y = jnp.transpose(y, (0, 2, 1))   # back to (B, L, C)
        y = jnp.maximum(y, 0.0)
        z = x + y
        mean = jnp.mean(z, axis=-1, keepdims=True)
        var = jnp.mean((z - mean) ** 2, axis=-1, keepdims=True)
        x = p["gamma"] * (z - mean) / jnp.sqrt(var + eps) + p["beta"]
    return x


if __name__ == "__main__":
    # C = 128 -> lane-dense stores / usable MXU contraction (K*C = 384).
    B, L, C = 2, 256, 128
    kernel_size, padding, n_layers = 3, 1, 3
    tile_l = 128                      # grid = (B, L // tile_l) = (2, 2)

    key = jax.random.PRNGKey(0)
    key, kx = jax.random.split(key)
    x = jax.random.normal(kx, (B, L, C), jnp.float32)
    params = make_encoder_params(key, C, kernel_size, n_layers)

    # f32 path: tight check against the pure-JAX reference.
    out = encoder_pallas(x, params, padding=padding, tile_l=tile_l)
    out = jax.block_until_ready(out)
    ref = encoder_reference(x, params, padding=padding)
    assert out.shape == (B, L, C)
    err = float(jnp.max(jnp.abs(out - ref)))
    assert err < 1e-4, f"f32 mismatch vs reference: {err}"

    # bf16 activation/weight path (v6e/v7x MXU); LayerNorm stats remain f32.
    out_bf16 = encoder_pallas(x.astype(jnp.bfloat16), params,
                              padding=padding, tile_l=tile_l)
    out_bf16 = jax.block_until_ready(out_bf16)
    assert out_bf16.shape == (B, L, C)
    assert bool(jnp.all(jnp.isfinite(out_bf16.astype(jnp.float32))))

    print("KERNEL_OK")
</pallas_src>

<mosaic_0001>
module attributes {stable_mosaic.version = 11 : i64} {
  func.func @_encoder_kernel(%arg0: i32, %arg1: i32, %arg2: memref<2x262x128xf32, #tpu.memory_space<any>>, %arg3: memref<3x384x128xf32, #tpu.memory_space<vmem>>, %arg4: memref<3x128xf32, #tpu.memory_space<vmem>>, %arg5: memref<3x128xf32, #tpu.memory_space<vmem>>, %arg6: memref<3x128xf32, #tpu.memory_space<vmem>>, %arg7: memref<1x128x128xf32, #tpu.memory_space<vmem>>, %arg8: memref<134x128xf32, #tpu.memory_space<vmem>>, %arg9: memref<1x!tpu.dma_semaphore, #tpu.memory_space<semaphore_mem>>) attributes {dimension_semantics = [#tpu.dimension_semantics<parallel>, #tpu.dimension_semantics<parallel>], iteration_bounds = array<i64: 2, 2>, scalar_prefetch = 0 : i64, scratch_operands = 2 : i64, tpu.core_type = #tpu.core_type<tc>, window_params = [{}, {pipeline_mode = #tpu.pipeline_mode<synchronous>, transform_indices = @transform_1, window_bounds = array<i64: 3, 384, 128>}, {pipeline_mode = #tpu.pipeline_mode<synchronous>, transform_indices = @transform_2, window_bounds = array<i64: 3, 128>}, {pipeline_mode = #tpu.pipeline_mode<synchronous>, transform_indices = @transform_3, window_bounds = array<i64: 3, 128>}, {pipeline_mode = #tpu.pipeline_mode<synchronous>, transform_indices = @transform_4, window_bounds = array<i64: 3, 128>}, {transform_indices = @transform_5, window_bounds = array<i64: 1, 128, 128>}]} {
    %c128_i32 = arith.constant 128 : i32
    %0 = arith.muli %arg1, %c128_i32 : i32
    %1 = tpu.assume_multiple %0, 8 : i32
    %c0_i32 = arith.constant 0 : i32
    %c0_i32_0 = arith.constant 0 : i32
    %2 = tpu.memref_slice %arg2[%arg0, %1, %c0_i32_0] : memref<2x262x128xf32, #tpu.memory_space<any>> -> memref<1x134x128xf32, #tpu.memory_space<any>>
    %3 = tpu.memref_squeeze %2 : memref<1x134x128xf32, #tpu.memory_space<any>> -> memref<134x128xf32, #tpu.memory_space<any>>
    %4 = tpu.memref_slice %arg9[%c0_i32] : memref<1x!tpu.dma_semaphore, #tpu.memory_space<semaphore_mem>> -> memref<1x!tpu.dma_semaphore, #tpu.memory_space<semaphore_mem>>
    %5 = tpu.memref_squeeze %4 : memref<1x!tpu.dma_semaphore, #tpu.memory_space<semaphore_mem>> -> memref<!tpu.dma_semaphore, #tpu.memory_space<semaphore_mem>>
    tpu.enqueue_dma source(%3 : memref<134x128xf32, #tpu.memory_space<any>>) target(%arg8 : memref<134x128xf32, #tpu.memory_space<vmem>>) target_semaphore(%5 : memref<!tpu.dma_semaphore, #tpu.memory_space<semaphore_mem>>)
    %c0_i32_1 = arith.constant 0 : i32
    %c0_i32_2 = arith.constant 0 : i32
    %6 = tpu.memref_slice %arg2[%arg0, %1, %c0_i32_2] : memref<2x262x128xf32, #tpu.memory_space<any>> -> memref<1x134x128xf32, #tpu.memory_space<any>>
    %7 = tpu.memref_squeeze %6 : memref<1x134x128xf32, #tpu.memory_space<any>> -> memref<134x128xf32, #tpu.memory_space<any>>
    %8 = tpu.memref_slice %arg9[%c0_i32_1] : memref<1x!tpu.dma_semaphore, #tpu.memory_space<semaphore_mem>> -> memref<1x!tpu.dma_semaphore, #tpu.memory_space<semaphore_mem>>
    %9 = tpu.memref_squeeze %8 : memref<1x!tpu.dma_semaphore, #tpu.memory_space<semaphore_mem>> -> memref<!tpu.dma_semaphore, #tpu.memory_space<semaphore_mem>>
    tpu.wait_dma2 semaphore(%9 : memref<!tpu.dma_semaphore, #tpu.memory_space<semaphore_mem>>) src(%7 : memref<134x128xf32, #tpu.memory_space<any>>) dst(%arg8 : memref<134x128xf32, #tpu.memory_space<vmem>>)
    %c128_i32_3 = arith.constant 128 : i32
    %10 = arith.muli %arg1, %c128_i32_3 : i32
    %c3_i32 = arith.constant 3 : i32
    %11 = arith.subi %10, %c3_i32 : i32
    %c0 = arith.constant 0 : index
    %c0_4 = arith.constant 0 : index
    %12 = vector.load %arg8[%c0, %c0_4] : memref<134x128xf32, #tpu.memory_space<vmem>>, vector<132x128xf32>
    %c1 = arith.constant 1 : index
    %c0_5 = arith.constant 0 : index
    %13 = vector.load %arg8[%c1, %c0_5] : memref<134x128xf32, #tpu.memory_space<vmem>>, vector<132x128xf32>
    %c2 = arith.constant 2 : index
    %c0_6 = arith.constant 0 : index
    %14 = vector.load %arg8[%c2, %c0_6] : memref<134x128xf32, #tpu.memory_space<vmem>>, vector<132x128xf32>
    %15 = tpu.concatenate %12, %13, %14 in 1 : vector<132x128xf32>, vector<132x128xf32>, vector<132x128xf32> -> vector<132x384xf32>
    %c0_7 = arith.constant 0 : index
    %c0_8 = arith.constant 0 : index
    %c0_9 = arith.constant 0 : index
    %16 = vector.load %arg3[%c0_7, %c0_8, %c0_9] : memref<3x384x128xf32, #tpu.memory_space<vmem>>, vector<1x384x128xf32>
    %17 = vector.shape_cast %16 : vector<1x384x128xf32> to vector<384x128xf32>
    %cst = arith.constant dense<0.000000e+00> : vector<132x128xf32>
    %18 = tpu.matmul %15, %17, %cst {dimension_numbers = #tpu.dot_dimension_numbers<[1], [0], [0], [1], [0, 0, 1, 1], [], []>} : vector<132x384xf32>, vector<384x128xf32>, vector<132x128xf32> -> vector<132x128xf32>
    %c0_10 = arith.constant 0 : index
    %c0_11 = arith.constant 0 : index
    %19 = vector.load %arg4[%c0_10, %c0_11] : memref<3x128xf32, #tpu.memory_space<vmem>>, vector<1x128xf32>
    %20 = vector.broadcast %19 : vector<1x128xf32> to vector<132x128xf32>
    %21 = arith.addf %18, %20 : vector<132x128xf32>
    %cst_12 = arith.constant 0.000000e+00 : f32
    %22 = vector.broadcast %cst_12 : f32 to vector<132x128xf32>
    %23 = arith.maximumf %21, %22 : vector<132x128xf32>
    %c1_13 = arith.constant 1 : index
    %c0_14 = arith.constant 0 : index
    %24 = vector.load %arg8[%c1_13, %c0_14] : memref<134x128xf32, #tpu.memory_space<vmem>>, vector<132x128xf32>
    %25 = arith.addf %24, %23 : vector<132x128xf32>
    %cst_15 = arith.constant dense<0.000000e+00> : vector<132xf32>
    %26 = vector.multi_reduction <add>, %25, %cst_15 [1] : vector<132x128xf32> to vector<132xf32>
    %27 = vector.shape_cast %26 : vector<132xf32> to vector<132x1xf32>
    %cst_16 = arith.constant 1.280000e+02 : f32
    %28 = vector.broadcast %cst_16 : f32 to vector<132x1xf32>
    %29 = arith.divf %27, %28 : vector<132x1xf32>
    %30 = vector.broadcast %29 : vector<132x1xf32> to vector<132x128xf32>
    %31 = arith.subf %25, %30 : vector<132x128xf32>
    %32 = arith.mulf %31, %31 : vector<132x128xf32>
    %cst_17 = arith.constant dense<0.000000e+00> : vector<132xf32>
    %33 = vector.multi_reduction <add>, %32, %cst_17 [1] : vector<132x128xf32> to vector<132xf32>
    %34 = vector.shape_cast %33 : vector<132xf32> to vector<132x1xf32>
    %cst_18 = arith.constant 1.280000e+02 : f32
    %35 = vector.broadcast %cst_18 : f32 to vector<132x1xf32>
    %36 = arith.divf %34, %35 : vector<132x1xf32>
    %cst_19 = arith.constant 9.99999996E-13 : f32
    %37 = vector.broadcast %cst_19 : f32 to vector<132x1xf32>
    %38 = arith.addf %36, %37 : vector<132x1xf32>
    %39 = math.rsqrt %38 : vector<132x1xf32>
    %40 = vector.broadcast %39 : vector<132x1xf32> to vector<132x128xf32>
    %41 = arith.mulf %31, %40 : vector<132x128xf32>
    %c0_20 = arith.constant 0 : index
    %c0_21 = arith.constant 0 : index
    %42 = vector.load %arg5[%c0_20, %c0_21] : memref<3x128xf32, #tpu.memory_space<vmem>>, vector<1x128xf32>
    %43 = vector.broadcast %42 : vector<1x128xf32> to vector<132x128xf32>
    %44 = arith.mulf %43, %41 : vector<132x128xf32>
    %c0_22 = arith.constant 0 : index
    %c0_23 = arith.constant 0 : index
    %45 = vector.load %arg6[%c0_22, %c0_23] : memref<3x128xf32, #tpu.memory_space<vmem>>, vector<1x128xf32>
    %46 = vector.broadcast %45 : vector<1x128xf32> to vector<132x128xf32>
    %47 = arith.addf %44, %46 : vector<132x128xf32>
    %c1_i32 = arith.constant 1 : i32
    %48 = arith.addi %11, %c1_i32 : i32
    %49 = tpu.iota {dimensions = array<i32: 0>} : vector<132x1xi32>
    %50 = vector.broadcast %48 : i32 to vector<132x1xi32>
    %51 = arith.addi %50, %49 : vector<132x1xi32>
    %c0_i32_24 = arith.constant 0 : i32
    %52 = vector.broadcast %c0_i32_24 : i32 to vector<132x1xi32>
    %53 = arith.cmpi sge, %51, %52 : vector<132x1xi32>
    %c256_i32 = arith.constant 256 : i32
    %54 = vector.broadcast %c256_i32 : i32 to vector<132x1xi32>
    %55 = arith.cmpi slt, %51, %54 : vector<132x1xi32>
    %56 = arith.andi %53, %55 : vector<132x1xi1>
    %cst_25 = arith.constant 0.000000e+00 : f32
    %57 = vector.shape_cast %56 : vector<132x1xi1> to vector<132x1xi1>
    %58 = vector.broadcast %57 : vector<132x1xi1> to vector<132x128xi1>
    %59 = vector.broadcast %cst_25 : f32 to vector<132x128xf32>
    %60 = arith.select %58, %47, %59 : vector<132x128xi1>, vector<132x128xf32>
    %c1_26 = arith.constant 1 : index
    %c0_27 = arith.constant 0 : index
    %61 = vector.load %arg8[%c1_26, %c0_27] : memref<134x128xf32, #tpu.memory_space<vmem>>, vector<132x128xf32>
    tpu.vector_store %arg8[%c1_26, %c0_27], %60 {strides = array<i32>} : memref<134x128xf32, #tpu.memory_space<vmem>>, vector<132x128xf32>,
    %c1_28 = arith.constant 1 : index
    %c0_29 = arith.constant 0 : index
    %62 = vector.load %arg8[%c1_28, %c0_29] : memref<134x128xf32, #tpu.memory_space<vmem>>, vector<130x128xf32>
    %c2_30 = arith.constant 2 : index
    %c0_31 = arith.constant 0 : index
    %63 = vector.load %arg8[%c2_30, %c0_31] : memref<134x128xf32, #tpu.memory_space<vmem>>, vector<130x128xf32>
    %c3 = arith.constant 3 : index
    %c0_32 = arith.constant 0 : index
    %64 = vector.load %arg8[%c3, %c0_32] : memref<134x128xf32, #tpu.memory_space<vmem>>, vector<130x128xf32>
    %65 = tpu.concatenate %62, %63, %64 in 1 : vector<130x128xf32>, vector<130x128xf32>, vector<130x128xf32> -> vector<130x384xf32>
    %c1_33 = arith.constant 1 : index
    %c0_34 = arith.constant 0 : index
    %c0_35 = arith.constant 0 : index
    %66 = vector.load %arg3[%c1_33, %c0_34, %c0_35] : memref<3x384x128xf32, #tpu.memory_space<vmem>>, vector<1x384x128xf32>
    %67 = vector.shape_cast %66 : vector<1x384x128xf32> to vector<384x128xf32>
    %cst_36 = arith.constant dense<0.000000e+00> : vector<130x128xf32>
    %68 = tpu.matmul %65, %67, %cst_36 {dimension_numbers = #tpu.dot_dimension_numbers<[1], [0], [0], [1], [0, 0, 1, 1], [], []>} : vector<130x384xf32>, vector<384x128xf32>, vector<130x128xf32> -> vector<130x128xf32>
    %c1_37 = arith.constant 1 : index
    %c0_38 = arith.constant 0 : index
    %69 = vector.load %arg4[%c1_37, %c0_38] : memref<3x128xf32, #tpu.memory_space<vmem>>, vector<1x128xf32>
    %70 = vector.broadcast %69 : vector<1x128xf32> to vector<130x128xf32>
    %71 = arith.addf %68, %70 : vector<130x128xf32>
    %cst_39 = arith.constant 0.000000e+00 : f32
    %72 = vector.broadcast %cst_39 : f32 to vector<130x128xf32>
    %73 = arith.maximumf %71, %72 : vector<130x128xf32>
    %c2_40 = arith.constant 2 : index
    %c0_41 = arith.constant 0 : index
    %74 = vector.load %arg8[%c2_40, %c0_41] : memref<134x128xf32, #tpu.memory_space<vmem>>, vector<130x128xf32>
    %75 = arith.addf %74, %73 : vector<130x128xf32>
    %cst_42 = arith.constant dense<0.000000e+00> : vector<130xf32>
    %76 = vector.multi_reduction <add>, %75, %cst_42 [1] : vector<130x128xf32> to vector<130xf32>
    %77 = vector.shape_cast %76 : vector<130xf32> to vector<130x1xf32>
    %cst_43 = arith.constant 1.280000e+02 : f32
    %78 = vector.broadcast %cst_43 : f32 to vector<130x1xf32>
    %79 = arith.divf %77, %78 : vector<130x1xf32>
    %80 = vector.broadcast %79 : vector<130x1xf32> to vector<130x128xf32>
    %81 = arith.subf %75, %80 : vector<130x128xf32>
    %82 = arith.mulf %81, %81 : vector<130x128xf32>
    %cst_44 = arith.constant dense<0.000000e+00> : vector<130xf32>
    %83 = vector.multi_reduction <add>, %82, %cst_44 [1] : vector<130x128xf32> to vector<130xf32>
    %84 = vector.shape_cast %83 : vector<130xf32> to vector<130x1xf32>
    %cst_45 = arith.constant 1.280000e+02 : f32
    %85 = vector.broadcast %cst_45 : f32 to vector<130x1xf32>
    %86 = arith.divf %84, %85 : vector<130x1xf32>
    %cst_46 = arith.constant 9.99999996E-13 : f32
    %87 = vector.broadcast %cst_46 : f32 to vector<130x1xf32>
    %88 = arith.addf %86, %87 : vector<130x1xf32>
    %89 = math.rsqrt %88 : vector<130x1xf32>
    %90 = vector.broadcast %89 : vector<130x1xf32> to vector<130x128xf32>
    %91 = arith.mulf %81, %90 : vector<130x128xf32>
    %c1_47 = arith.constant 1 : index
    %c0_48 = arith.constant 0 : index
    %92 = vector.load %arg5[%c1_47, %c0_48] : memref<3x128xf32, #tpu.memory_space<vmem>>, vector<1x128xf32>
    %93 = vector.broadcast %92 : vector<1x128xf32> to vector<130x128xf32>
    %94 = arith.mulf %93, %91 : vector<130x128xf32>
    %c1_49 = arith.constant 1 : index
    %c0_50 = arith.constant 0 : index
    %95 = vector.load %arg6[%c1_49, %c0_50] : memref<3x128xf32, #tpu.memory_space<vmem>>, vector<1x128xf32>
    %96 = vector.broadcast %95 : vector<1x128xf32> to vector<130x128xf32>
    %97 = arith.addf %94, %96 : vector<130x128xf32>
    %c2_i32 = arith.constant 2 : i32
    %98 = arith.addi %11, %c2_i32 : i32
    %99 = tpu.iota {dimensions = array<i32: 0>} : vector<130x1xi32>
    %100 = vector.broadcast %98 : i32 to vector<130x1xi32>
    %101 = arith.addi %100, %99 : vector<130x1xi32>
    %c0_i32_51 = arith.constant 0 : i32
    %102 = vector.broadcast %c0_i32_51 : i32 to vector<130x1xi32>
    %103 = arith.cmpi sge, %101, %102 : vector<130x1xi32>
    %c256_i32_52 = arith.constant 256 : i32
    %104 = vector.broadcast %c256_i32_52 : i32 to vector<130x1xi32>
    %105 = arith.cmpi slt, %101, %104 : vector<130x1xi32>
    %106 = arith.andi %103, %105 : vector<130x1xi1>
    %cst_53 = arith.constant 0.000000e+00 : f32
    %107 = vector.shape_cast %106 : vector<130x1xi1> to vector<130x1xi1>
    %108 = vector.broadcast %107 : vector<130x1xi1> to vector<130x128xi1>
    %109 = vector.broadcast %cst_53 : f32 to vector<130x128xf32>
    %110 = arith.select %108, %97, %109 : vector<130x128xi1>, vector<130x128xf32>
    %c2_54 = arith.constant 2 : index
    %c0_55 = arith.constant 0 : index
    %111 = vector.load %arg8[%c2_54, %c0_55] : memref<134x128xf32, #tpu.memory_space<vmem>>, vector<130x128xf32>
    tpu.vector_store %arg8[%c2_54, %c0_55], %110 {strides = array<i32>} : memref<134x128xf32, #tpu.memory_space<vmem>>, vector<130x128xf32>,
    %c2_56 = arith.constant 2 : index
    %c0_57 = arith.constant 0 : index
    %112 = vector.load %arg8[%c2_56, %c0_57] : memref<134x128xf32, #tpu.memory_space<vmem>>, vector<128x128xf32>
    %c3_58 = arith.constant 3 : index
    %c0_59 = arith.constant 0 : index
    %113 = vector.load %arg8[%c3_58, %c0_59] : memref<134x128xf32, #tpu.memory_space<vmem>>, vector<128x128xf32>
    %c4 = arith.constant 4 : index
    %c0_60 = arith.constant 0 : index
    %114 = vector.load %arg8[%c4, %c0_60] : memref<134x128xf32, #tpu.memory_space<vmem>>, vector<128x128xf32>
    %115 = tpu.concatenate %112, %113, %114 in 1 : vector<128x128xf32>, vector<128x128xf32>, vector<128x128xf32> -> vector<128x384xf32>
    %c2_61 = arith.constant 2 : index
    %c0_62 = arith.constant 0 : index
    %c0_63 = arith.constant 0 : index
    %116 = vector.load %arg3[%c2_61, %c0_62, %c0_63] : memref<3x384x128xf32, #tpu.memory_space<vmem>>, vector<1x384x128xf32>
    %117 = vector.shape_cast %116 : vector<1x384x128xf32> to vector<384x128xf32>
    %cst_64 = arith.constant dense<0.000000e+00> : vector<128x128xf32>
    %118 = tpu.matmul %115, %117, %cst_64 {dimension_numbers = #tpu.dot_dimension_numbers<[1], [0], [0], [1], [0, 0, 1, 1], [], []>} : vector<128x384xf32>, vector<384x128xf32>, vector<128x128xf32> -> vector<128x128xf32>
    %c2_65 = arith.constant 2 : index
    %c0_66 = arith.constant 0 : index
    %119 = vector.load %arg4[%c2_65, %c0_66] : memref<3x128xf32, #tpu.memory_space<vmem>>, vector<1x128xf32>
    %120 = vector.broadcast %119 : vector<1x128xf32> to vector<128x128xf32>
    %121 = arith.addf %118, %120 : vector<128x128xf32>
    %cst_67 = arith.constant 0.000000e+00 : f32
    %122 = vector.broadcast %cst_67 : f32 to vector<128x128xf32>
    %123 = arith.maximumf %121, %122 : vector<128x128xf32>
    %c3_68 = arith.constant 3 : index
    %c0_69 = arith.constant 0 : index
    %124 = vector.load %arg8[%c3_68, %c0_69] : memref<134x128xf32, #tpu.memory_space<vmem>>, vector<128x128xf32>
    %125 = arith.addf %124, %123 : vector<128x128xf32>
    %cst_70 = arith.constant dense<0.000000e+00> : vector<128xf32>
    %126 = vector.multi_reduction <add>, %125, %cst_70 [1] : vector<128x128xf32> to vector<128xf32>
    %127 = vector.shape_cast %126 : vector<128xf32> to vector<128x1xf32>
    %cst_71 = arith.constant 1.280000e+02 : f32
    %128 = vector.broadcast %cst_71 : f32 to vector<128x1xf32>
    %129 = arith.divf %127, %128 : vector<128x1xf32>
    %130 = vector.broadcast %129 : vector<128x1xf32> to vector<128x128xf32>
    %131 = arith.subf %125, %130 : vector<128x128xf32>
    %132 = arith.mulf %131, %131 : vector<128x128xf32>
    %cst_72 = arith.constant dense<0.000000e+00> : vector<128xf32>
    %133 = vector.multi_reduction <add>, %132, %cst_72 [1] : vector<128x128xf32> to vector<128xf32>
    %134 = vector.shape_cast %133 : vector<128xf32> to vector<128x1xf32>
    %cst_73 = arith.constant 1.280000e+02 : f32
    %135 = vector.broadcast %cst_73 : f32 to vector<128x1xf32>
    %136 = arith.divf %134, %135 : vector<128x1xf32>
    %cst_74 = arith.constant 9.99999996E-13 : f32
    %137 = vector.broadcast %cst_74 : f32 to vector<128x1xf32>
    %138 = arith.addf %136, %137 : vector<128x1xf32>
    %139 = math.rsqrt %138 : vector<128x1xf32>
    %140 = vector.broadcast %139 : vector<128x1xf32> to vector<128x128xf32>
    %141 = arith.mulf %131, %140 : vector<128x128xf32>
    %c2_75 = arith.constant 2 : index
    %c0_76 = arith.constant 0 : index
    %142 = vector.load %arg5[%c2_75, %c0_76] : memref<3x128xf32, #tpu.memory_space<vmem>>, vector<1x128xf32>
    %143 = vector.broadcast %142 : vector<1x128xf32> to vector<128x128xf32>
    %144 = arith.mulf %143, %141 : vector<128x128xf32>
    %c2_77 = arith.constant 2 : index
    %c0_78 = arith.constant 0 : index
    %145 = vector.load %arg6[%c2_77, %c0_78] : memref<3x128xf32, #tpu.memory_space<vmem>>, vector<1x128xf32>
    %146 = vector.broadcast %145 : vector<1x128xf32> to vector<128x128xf32>
    %147 = arith.addf %144, %146 : vector<128x128xf32>
    %148 = vector.shape_cast %147 : vector<128x128xf32> to vector<1x128x128xf32>
    %c0_79 = arith.constant 0 : index
    %c0_80 = arith.constant 0 : index
    %c0_81 = arith.constant 0 : index
    %149 = vector.load %arg7[%c0_79, %c0_80, %c0_81] : memref<1x128x128xf32, #tpu.memory_space<vmem>>, vector<1x128x128xf32>
    tpu.vector_store %arg7[%c0_79, %c0_80, %c0_81], %148 {strides = array<i32>} : memref<1x128x128xf32, #tpu.memory_space<vmem>>, vector<1x128x128xf32>,
    return
  }
  func.func @transform_1(%arg0: i32, %arg1: i32) -> (i32, i32, i32) {
    %c0_i32 = arith.constant 0 : i32
    %c0_i32_0 = arith.constant 0 : i32
    %c0_i32_1 = arith.constant 0 : i32
    %c0_i32_2 = arith.constant 0 : i32
    return %c0_i32, %c0_i32_0, %c0_i32_1 : i32, i32, i32
  }
  func.func @transform_2(%arg0: i32, %arg1: i32) -> (i32, i32) {
    %c0_i32 = arith.constant 0 : i32
    %c0_i32_0 = arith.constant 0 : i32
    %c0_i32_1 = arith.constant 0 : i32
    return %c0_i32, %c0_i32_0 : i32, i32
  }
  func.func @transform_3(%arg0: i32, %arg1: i32) -> (i32, i32) {
    %c0_i32 = arith.constant 0 : i32
    %c0_i32_0 = arith.constant 0 : i32
    %c0_i32_1 = arith.constant 0 : i32
    return %c0_i32, %c0_i32_0 : i32, i32
  }
  func.func @transform_4(%arg0: i32, %arg1: i32) -> (i32, i32) {
    %c0_i32 = arith.constant 0 : i32
    %c0_i32_0 = arith.constant 0 : i32
    %c0_i32_1 = arith.constant 0 : i32
    return %c0_i32, %c0_i32_0 : i32, i32
  }
  func.func @transform_5(%arg0: i32, %arg1: i32) -> (i32, i32, i32) {
    %c0_i32 = arith.constant 0 : i32
    %c0_i32_0 = arith.constant 0 : i32
    return %arg0, %arg1, %c0_i32 : i32, i32, i32
  }
}

</mosaic_0001>

<llo_original>
// kernel: tpu_custom_call.1
$region0: #{tpu_custom_call.1}
  #allocation0 [shape = 'u32[]', space=smem, size = 0x4, offset = 0x4, fixed_abs, tag = 'smem constant byte address 0x4 - core index']
  #allocation1 [shape = 'u32[144,128]{1,0:T(1,128)}', space=vmem, size = 0x12000, scoped, tag = 'internal scratch']
  #allocation2 [shape = 'f32[134,128]{1,0:T(8,128)}', space=vmem, size = 0x11000, scoped, tag = 'scratch operand']
  #allocation3 [shape = 's32[1]{0}', space=sflag, size = 0x4, scoped, tag = 'scratch operand']
  #allocation8 [shape = 's32[]', space=sflag, size = 0x4, offset = 0, fixed_abs, tag = 'sflag constant byte address 0x0 - dummy sync flag']
  %s0 = inlined_call_operand.vmem [shape: f32[2,262,128], index: 0, kind: input, shape index: {}]
  %s1 = inlined_call_operand.hbm [shape: f32[3,384,128], index: 1, kind: input, shape index: {}]
  %s2 = inlined_call_operand.vmem [shape: f32[3,128], index: 2, kind: input, shape index: {}]
  %s3 = inlined_call_operand.vmem [shape: f32[3,128], index: 3, kind: input, shape index: {}]
  %s4 = inlined_call_operand.vmem [shape: f32[3,128], index: 4, kind: input, shape index: {}]
  %s5 = inlined_call_operand.hbm [shape: f32[2,256,128], index: 5, kind: output, shape index: {}]
  %s6 = sld [smem:[#allocation0]]
  $region90: #{tpu_custom_call.1} parent=0
    _
  %s8 = ssub.s32 1, %s6
  %s9 = scalar_select 0, %s8, %s6
  $region1: #{tpu_custom_call.1} parent=0
    #allocation4 [shape = 'u8[589824]{0}', space=vmem, size = 0x90000, scoped, tag = 'input window, operand 1, single buffered']
    #allocation5 [shape = 's32[2]{0}', space=sflag, size = 0x8, scoped, tag = 'scoped memory for tpu_custom_call.1']
    #allocation6 [shape = 's32[2]{0}', space=sflag, size = 0x8, scoped, tag = 'scoped memory for tpu_custom_call.1']
    #allocation7 [shape = 'u8[131072]{0}', space=vmem, size = 0x20000, scoped, tag = 'output window, operand 0']
    %10 = vsyncpa [#allocation5], 0
    %11 = vsyncpa [#allocation6], 0
    %s12 = scalar_lea.sflag [#allocation6], 1
    %13 = vsyncpa %s12, 0
    loop: start=0, step=1, limit=6
    $region2: #{tpu_custom_call.1} parent=1 // loop_pre_header
      _
    $region3: #{tpu_custom_call.1} parent=1 // loop_header
      %s15 = sphi 0, %s19
      %p16 = scmp.ge.s32.totalorder %s15, 6
      %s22 = sphi 0, %s34
      %s23 = sphi 0, %s30
      %s24 = sphi 0, %s22
      %s25 = sphi 0, %s23
      %s26 = sphi 0, %s24
      %s27 = sphi 0, %s25
      %s35 = sphi 0, %s35
      %s37 = sphi 0, %s35
      %s38 = sphi 0, %s37
      %s52 = sphi 0, %s38
      %s56 = sphi 0, %s56
      %s58 = sphi 0, %s56
      %s59 = sphi 0, %s58
      %s73 = sphi 0, %s59
      %s77 = sphi 0, %s77
      %s79 = sphi 0, %s77
      %s80 = sphi 0, %s79
      %s94 = sphi 0, %s80
      %s98 = sphi 0, %s98
      %s100 = sphi 0, %s98
      %s101 = sphi 0, %s100
      %s115 = sphi 0, %s101
      %s123 = sphi 0, %s125
      %s126 = sphi 0, %s123
      %s127 = sphi 0, %s126
      %s143 = sphi 0, %s127
    $region4: #{tpu_custom_call.1} parent=1 // loop_header_branch
      %18 = sbr.rel (%p16) target = $region8
    $region5: #{tpu_custom_call.1} parent=1 // loop_body
      %s20 = ssub.s32 %s15, 1
      %s21 = ssub.s32 %s15, 2
      %s28 = sadd.s32 1, %s23
      %p29 = scmp.ge.s32.totalorder %s28, 2
      %s30 = scalar_select %p29, 0, %s28
      %s31 = sadd.s32 1, %s22
      %s32 = scalar_select %p29, %s31, %s22
      %p33 = scmp.ge.s32.totalorder %s32, 2
      %s34 = scalar_select %p33, 0, %s32
      %s36 = sadd.s32 %s35, 1
      %p39 = scmp.eq.s32.totalorder %s15, 3
      %p40 = scmp.ne.s32.totalorder %s35, %s37
      %p41 = scmp.eq.s32.totalorder %s15, 0
      %p42 = por %p40, %p41
      %p43 = scmp.ne.s32.totalorder %s35, %s37
      %p44 = scmp.eq.s32.totalorder %s20, 3
      %p45 = por %p43, %p44
      %p46 = scmp.ne.s32.totalorder %s37, %s38
      %p47 = scmp.eq.s32.totalorder %s20, 0
      %p48 = por %p46, %p47
      %p49 = scmp.ne.s32.totalorder %s37, %s38
      %p50 = scmp.eq.s32.totalorder %s21, 3
      %p51 = por %p49, %p50
      %p53 = scmp.ne.s32.totalorder %s38, %s52
      %p54 = scmp.eq.s32.totalorder %s21, 0
      %p55 = por %p53, %p54
      %s57 = sadd.s32 %s56, 1
      %p60 = scmp.eq.s32.totalorder %s15, 3
      %p61 = scmp.ne.s32.totalorder %s56, %s58
      %p62 = scmp.eq.s32.totalorder %s15, 0
      %p63 = por %p61, %p62
      %p64 = scmp.ne.s32.totalorder %s56, %s58
      %p65 = scmp.eq.s32.totalorder %s20, 3
      %p66 = por %p64, %p65
      %p67 = scmp.ne.s32.totalorder %s58, %s59
      %p68 = scmp.eq.s32.totalorder %s20, 0
      %p69 = por %p67, %p68
      %p70 = scmp.ne.s32.totalorder %s58, %s59
      %p71 = scmp.eq.s32.totalorder %s21, 3
      %p72 = por %p70, %p71
      %p74 = scmp.ne.s32.totalorder %s59, %s73
      %p75 = scmp.eq.s32.totalorder %s21, 0
      %p76 = por %p74, %p75
      %s78 = sadd.s32 %s77, 1
      %p81 = scmp.eq.s32.totalorder %s15, 3
      %p82 = scmp.ne.s32.totalorder %s77, %s79
      %p83 = scmp.eq.s32.totalorder %s15, 0
      %p84 = por %p82, %p83
      %p85 = scmp.ne.s32.totalorder %s77, %s79
      %p86 = scmp.eq.s32.totalorder %s20, 3
      %p87 = por %p85, %p86
      %p88 = scmp.ne.s32.totalorder %s79, %s80
      %p89 = scmp.eq.s32.totalorder %s20, 0
      %p90 = por %p88, %p89
      %p91 = scmp.ne.s32.totalorder %s79, %s80
      %p92 = scmp.eq.s32.totalorder %s21, 3
      %p93 = por %p91, %p92
      %p95 = scmp.ne.s32.totalorder %s80, %s94
      %p96 = scmp.eq.s32.totalorder %s21, 0
      %p97 = por %p95, %p96
      %s99 = sadd.s32 %s98, 1
      %p102 = scmp.eq.s32.totalorder %s15, 3
      %p103 = scmp.ne.s32.totalorder %s98, %s100
      %p104 = scmp.eq.s32.totalorder %s15, 0
      %p105 = por %p103, %p104
      %p106 = scmp.ne.s32.totalorder %s98, %s100
      %p107 = scmp.eq.s32.totalorder %s20, 3
      %p108 = por %p106, %p107
      %p109 = scmp.ne.s32.totalorder %s100, %s101
      %p110 = scmp.eq.s32.totalorder %s20, 0
      %p111 = por %p109, %p110
      %p112 = scmp.ne.s32.totalorder %s100, %s101
      %p113 = scmp.eq.s32.totalorder %s21, 3
      %p114 = por %p112, %p113
      %p116 = scmp.ne.s32.totalorder %s101, %s115
      %p117 = scmp.eq.s32.totalorder %s21, 0
      %p118 = por %p116, %p117
      %s119 = ssub.s32 %s22, %s34
      %s120 = ssub.s32 %s23, %s30
      %s121 = sor.u32 %s119, %s120
      %p122 = scmp.eq.s32.totalorder %s121, 0
      %s124 = sadd.s32 %s123, 1
      %s125 = scalar_select %p122, %s123, %s124
      %p128 = pneg %p122
      %p129 = scmp.eq.s32.totalorder %s15, 3
      %p130 = por %p128, %p129
      %p131 = scmp.ne.s32.totalorder %s123, %s126
      %p132 = scmp.eq.s32.totalorder %s15, 0
      %p133 = por %p131, %p132
      %p134 = scmp.ne.s32.totalorder %s123, %s126
      %p135 = scmp.eq.s32.totalorder %s20, 3
      %p136 = por %p134, %p135
      %p137 = scmp.ne.s32.totalorder %s126, %s127
      %p138 = scmp.eq.s32.totalorder %s20, 0
      %p139 = por %p137, %p138
      %p140 = scmp.ne.s32.totalorder %s126, %s127
      %p141 = scmp.eq.s32.totalorder %s21, 3
      %p142 = por %p140, %p141
      %p144 = scmp.ne.s32.totalorder %s127, %s143
      %p145 = scmp.eq.s32.totalorder %s21, 0
      %p146 = por %p144, %p145
      %p147 = scmp.le.s32.totalorder 1, %s15
      %p148 = scmp.lt.s32.totalorder %s15, 5
      %p149 = pnand %p147, %p148
      %p150 = pneg %p149
      // Predicated region
      $region9: #{tpu_custom_call.1} parent=5 // pred_check
        _
      $region10: #{tpu_custom_call.1} parent=5 // pred_check_branch
        %152 = sbr.rel (%p149) target = $region12
      $region11: #{tpu_custom_call.1} parent=5 // pred_region
        %s153 = ssub.s32 %s15, 1
        // Predicated region
        $region13: #{tpu_custom_call.1} parent=11 // pred_check
          %p154 = pneg %p48
        $region14: #{tpu_custom_call.1} parent=11 // pred_check_branch
          %156 = sbr.rel (%p154) target = $region16
        $region15: #{tpu_custom_call.1} parent=11 // pred_region
          %s158 = ssub.s32 18432, 18432
          %159 = vsyncadd [#allocation5], %s158
          %s160 = sshll.u32 [#allocation4], 4
          %s161 = int_to_ptr.vmem [resolvable:$true] %s160
          %166 = dma.hbm_to_vmem [thread:$0]  %s1, 18432, %s161, [#allocation5], 128, 128, 8
        $region16: #{tpu_custom_call.1} parent=11 // pred_fallthru
          _
        // Predicated region
        $region17: #{tpu_custom_call.1} parent=11 // pred_check
          %p167 = pneg %p69
        $region18: #{tpu_custom_call.1} parent=11 // pred_check_branch
          %169 = sbr.rel (%p167) target = $region20
        $region19: #{tpu_custom_call.1} parent=11 // pred_region
          _
        $region20: #{tpu_custom_call.1} parent=11 // pred_fallthru
          _
        // Predicated region
        $region21: #{tpu_custom_call.1} parent=11 // pred_check
          %p170 = pneg %p90
        $region22: #{tpu_custom_call.1} parent=11 // pred_check_branch
          %172 = sbr.rel (%p170) target = $region24
        $region23: #{tpu_custom_call.1} parent=11 // pred_region
          _
        $region24: #{tpu_custom_call.1} parent=11 // pred_fallthru
          _
        // Predicated region
        $region25: #{tpu_custom_call.1} parent=11 // pred_check
          %p173 = pneg %p111
        $region26: #{tpu_custom_call.1} parent=11 // pred_check_branch
          %175 = sbr.rel (%p173) target = $region28
        $region27: #{tpu_custom_call.1} parent=11 // pred_region
          _
        $region28: #{tpu_custom_call.1} parent=11 // pred_fallthru
          _
      $region12: #{tpu_custom_call.1} parent=5 // pred_fallthru
        _
      %p176 = scmp.lt.s32.totalorder %s15, 4
      // Predicated region
      $region29: #{tpu_custom_call.1} parent=5 // pred_check
        %p177 = pneg %p176
      $region30: #{tpu_custom_call.1} parent=5 // pred_check_branch
        %179 = sbr.rel (%p177) target = $region32
      $region31: #{tpu_custom_call.1} parent=5 // pred_region
        _
      $region32: #{tpu_custom_call.1} parent=5 // pred_fallthru
        _
      %p180 = scmp.le.s32.totalorder 1, %s15
      %p181 = scmp.lt.s32.totalorder %s15, 5
      %p182 = pnand %p180, %p181
      %p183 = pneg %p182
      // Predicated region
      $region33: #{tpu_custom_call.1} parent=5 // pred_check
        _
      $region34: #{tpu_custom_call.1} parent=5 // pred_check_branch
        %185 = sbr.rel (%p182) target = $region36
      $region35: #{tpu_custom_call.1} parent=5 // pred_region
        %s186 = ssub.s32 %s15, 1
        // Predicated region
        $region37: #{tpu_custom_call.1} parent=35 // pred_check
          %p187 = pneg %p48
        $region38: #{tpu_custom_call.1} parent=35 // pred_check_branch
          %189 = sbr.rel (%p187) target = $region40
        $region39: #{tpu_custom_call.1} parent=35 // pred_region
          %190 = dma.done [#allocation5], 18432
        $region40: #{tpu_custom_call.1} parent=35 // pred_fallthru
          _
        %p191 = pneg %p48
        %p192 = pneg %p45
        %p193 = pneg %p69
        %p194 = pneg %p66
        %p195 = pneg %p90
        %p196 = pneg %p87
        %p197 = pneg %p111
        %p198 = pneg %p108
        %p199 = pneg %p139
        %p200 = pneg %p136
        %s201 = sand.u32 %s126, 1
        %s202 = scalar_lea.sflag [#allocation6], %s201
        %s203 = sand.u32 %s126, 1
        %s204 = smul.addr %s203, 128
        %s205 = scalar_lea.vmem [#allocation7], %s204
        %s206 = smul.u32 16, %s25
        %s207 = smul.u32 %s25, 128
        %s208 = smul.u32 %s24, 264
        %s209 = sadd.s32 %s207, %s208
        %s210 = scalar_lea.vmem %s0, %s209
        %p212 = scmp.lt.u32.totalorder 134, 8
        %p213 = pneg %p212
        // Predicated region
        $region41: #{tpu_custom_call.1} parent=35 // pred_check
          _
        $region42: #{tpu_custom_call.1} parent=35 // pred_check_branch
          %215 = sbr.rel (%p212) target = $region44
        $region43: #{tpu_custom_call.1} parent=35 // pred_region
          %s230 = sand.u32 134, 7
          %p231 = scmp.eq.s32.totalorder %s230, 0
          %p232 = pneg %p231
          // Predicated region
          $region56: #{tpu_custom_call.1} parent=43 // pred_check
            _
          $region57: #{tpu_custom_call.1} parent=43 // pred_check_branch
            %234 = sbr.rel (%p231) target = $region59
          $region58: #{tpu_custom_call.1} parent=43 // pred_region
            %s235 = sand.u32 134, 7
            %s236 = ssub.s32 134, %s235
            %s237 = scalar_lea.vmem %s210, %s236
            %s238 = ssub.s32 134, %s235
            %s239 = scalar_lea.vmem [#allocation2], %s238
            loop: start=0, step=1, limit=1
            $region60: #{tpu_custom_call.1} parent=58 // loop_pre_header
              _
            $region61: #{tpu_custom_call.1} parent=58 // loop_header
              %s241 = sphi 0, %s245
              %p242 = scmp.ge.s32.totalorder %s241, 1
              %s246 = sphi %s210, %s210
              %s247 = sphi [#allocation2], [#allocation2]
            $region62: #{tpu_custom_call.1} parent=58 // loop_header_branch
              %244 = sbr.rel (%p242) target = $region66
            $region63: #{tpu_custom_call.1} parent=58 // loop_body
              %v248 = vld [vmem:[%s246] sm:$0xff]
              %249 = vst [vmem:[%s247] sm:$0xff] %v248
              %v250 = vld [vmem:[%s246 + $0x8] sm:$0xff]
              %251 = vst [vmem:[%s247 + $0x8] sm:$0xff] %v250
              %v252 = vld [vmem:[%s246 + $0x10] sm:$0xff]
              %253 = vst [vmem:[%s247 + $0x10] sm:$0xff] %v252
              %v254 = vld [vmem:[%s246 + $0x18] sm:$0xff]
              %255 = vst [vmem:[%s247 + $0x18] sm:$0xff] %v254
              %v256 = vld [vmem:[%s246 + $0x20] sm:$0xff]
              %257 = vst [vmem:[%s247 + $0x20] sm:$0xff] %v256
              %v258 = vld [vmem:[%s246 + $0x28] sm:$0xff]
              %259 = vst [vmem:[%s247 + $0x28] sm:$0xff] %v258
              %v260 = vld [vmem:[%s246 + $0x30] sm:$0xff]
              %261 = vst [vmem:[%s247 + $0x30] sm:$0xff] %v260
              %v262 = vld [vmem:[%s246 + $0x38] sm:$0xff]
              %263 = vst [vmem:[%s247 + $0x38] sm:$0xff] %v262
              %v264 = vld [vmem:[%s246 + $0x40] sm:$0xff]
              %265 = vst [vmem:[%s247 + $0x40] sm:$0xff] %v264
              %v266 = vld [vmem:[%s246 + $0x48] sm:$0xff]
              %267 = vst [vmem:[%s247 + $0x48] sm:$0xff] %v266
              %v268 = vld [vmem:[%s246 + $0x50] sm:$0xff]
              %269 = vst [vmem:[%s247 + $0x50] sm:$0xff] %v268
              %v270 = vld [vmem:[%s246 + $0x58] sm:$0xff]
              %271 = vst [vmem:[%s247 + $0x58] sm:$0xff] %v270
              %v272 = vld [vmem:[%s246 + $0x60] sm:$0xff]
              %273 = vst [vmem:[%s247 + $0x60] sm:$0xff] %v272
              %v274 = vld [vmem:[%s246 + $0x68] sm:$0xff]
              %275 = vst [vmem:[%s247 + $0x68] sm:$0xff] %v274
              %v276 = vld [vmem:[%s246 + $0x70] sm:$0xff]
              %277 = vst [vmem:[%s247 + $0x70] sm:$0xff] %v276
              %v278 = vld [vmem:[%s246 + $0x78] sm:$0xff]
              %279 = vst [vmem:[%s247 + $0x78] sm:$0xff] %v278
            $region64: #{tpu_custom_call.1} parent=58 // loop_footer
              %s245 = sadd.s32 1, %s241
            $region65: #{tpu_custom_call.1} parent=58 // loop_footer_branch
              %240 = sbr.rel target = $region61
            $region66: #{tpu_custom_call.1} parent=58 // loop_exit
              _
            %s280 = sshllo.u32 0, %s235
            loop: start=0, step=1, limit=1
            $region67: #{tpu_custom_call.1} parent=58 // loop_pre_header
              _
            $region68: #{tpu_custom_call.1} parent=58 // loop_header
              %s282 = sphi 0, %s286
              %p283 = scmp.ge.s32.totalorder %s282, 1
              %s287 = sphi %s237, %s237
              %s288 = sphi %s239, %s239
            $region69: #{tpu_custom_call.1} parent=58 // loop_header_branch
              %285 = sbr.rel (%p283) target = $region73
            $region70: #{tpu_custom_call.1} parent=58 // loop_body
              %v289 = vld [vmem:[%s287] sm:%s280]
              %290 = vst [vmem:[%s288] sm:%s280] %v289
            $region71: #{tpu_custom_call.1} parent=58 // loop_footer
              %s286 = sadd.s32 1, %s282
            $region72: #{tpu_custom_call.1} parent=58 // loop_footer_branch
              %281 = sbr.rel target = $region68
            $region73: #{tpu_custom_call.1} parent=58 // loop_exit
              _
          $region59: #{tpu_custom_call.1} parent=43 // pred_fallthru
            _
        $region44: #{tpu_custom_call.1} parent=35 // pred_fallthru
          _
        // Predicated region
        $region45: #{tpu_custom_call.1} parent=35 // pred_check
          %p216 = pneg %p212
        $region46: #{tpu_custom_call.1} parent=35 // pred_check_branch
          %218 = sbr.rel (%p216) target = $region48
        $region47: #{tpu_custom_call.1} parent=35 // pred_region
          %s219 = sshllo.u32 0, 134
          loop: start=0, step=1, limit=1
          $region49: #{tpu_custom_call.1} parent=47 // loop_pre_header
            _
          $region50: #{tpu_custom_call.1} parent=47 // loop_header
            %s221 = sphi 0, %s225
            %p222 = scmp.ge.s32.totalorder %s221, 1
            %s226 = sphi %s210, %s210
            %s227 = sphi [#allocation2], [#allocation2]
          $region51: #{tpu_custom_call.1} parent=47 // loop_header_branch
            %224 = sbr.rel (%p222) target = $region55
          $region52: #{tpu_custom_call.1} parent=47 // loop_body
            %v228 = vld [vmem:[%s226] sm:%s219]
            %229 = vst [vmem:[%s227] sm:%s219] %v228
          $region53: #{tpu_custom_call.1} parent=47 // loop_footer
            %s225 = sadd.s32 1, %s221
          $region54: #{tpu_custom_call.1} parent=47 // loop_footer_branch
            %220 = sbr.rel target = $region50
          $region55: #{tpu_custom_call.1} parent=47 // loop_exit
            _
        $region48: #{tpu_custom_call.1} parent=35 // pred_fallthru
          _
        // Predicated region
        $region74: #{tpu_custom_call.1} parent=35 // pred_check
          _
        $region75: #{tpu_custom_call.1} parent=35 // pred_check_branch
          %293 = sbr.rel (0) target = $region77
        $region76: #{tpu_custom_call.1} parent=35 // pred_region
          %294 = vsyncadd [#allocation3], 2144
        $region77: #{tpu_custom_call.1} parent=35 // pred_fallthru
          _
        %s295 = smul.u32 134, 1
        %s296 = sshll.u32 %s295, 4
        %297 = dma.done [#allocation3], %s296
        %v298 = vld [vmem:[#allocation2] sm:$0xff]
        %v299 = vld [vmem:[#allocation2 + $0x8] sm:$0xff]
        %v300 = vld [vmem:[#allocation2 + $0x10] sm:$0xff]
        %v301 = vld [vmem:[#allocation2 + $0x18] sm:$0xff]
        %v302 = vld [vmem:[#allocation2 + $0x20] sm:$0xff]
        %v303 = vld [vmem:[#allocation2 + $0x28] sm:$0xff]
        %v304 = vld [vmem:[#allocation2 + $0x30] sm:$0xff]
        %v305 = vld [vmem:[#allocation2 + $0x38] sm:$0xff]
        %v306 = vld [vmem:[#allocation2 + $0x40] sm:$0xff]
        %v307 = vld [vmem:[#allocation2 + $0x48] sm:$0xff]
        %v308 = vld [vmem:[#allocation2 + $0x50] sm:$0xff]
        %v309 = vld [vmem:[#allocation2 + $0x58] sm:$0xff]
        %v310 = vld [vmem:[#allocation2 + $0x60] sm:$0xff]
        %v311 = vld [vmem:[#allocation2 + $0x68] sm:$0xff]
        %v312 = vld [vmem:[#allocation2 + $0x70] sm:$0xff]
        %v313 = vld [vmem:[#allocation2 + $0x78] sm:$0xff]
        %v314 = vld [vmem:[#allocation2 + $0x80] sm:$0xf]
        %v315 = vld [vmem:[#allocation2 + $0x1] sm:$0xff]
        %v316 = vld [vmem:[#allocation2 + $0x9] sm:$0xff]
        %v317 = vld [vmem:[#allocation2 + $0x11] sm:$0xff]
        %v318 = vld [vmem:[#allocation2 + $0x19] sm:$0xff]
        %v319 = vld [vmem:[#allocation2 + $0x21] sm:$0xff]
        %v320 = vld [vmem:[#allocation2 + $0x29] sm:$0xff]
        %v321 = vld [vmem:[#allocation2 + $0x31] sm:$0xff]
        %v322 = vld [vmem:[#allocation2 + $0x39] sm:$0xff]
        %v323 = vld [vmem:[#allocation2 + $0x41] sm:$0xff]
        %v324 = vld [vmem:[#allocation2 + $0x49] sm:$0xff]
        %v325 = vld [vmem:[#allocation2 + $0x51] sm:$0xff]
        %v326 = vld [vmem:[#allocation2 + $0x59] sm:$0xff]
        %v327 = vld [vmem:[#allocation2 + $0x61] sm:$0xff]
        %v328 = vld [vmem:[#allocation2 + $0x69] sm:$0xff]
        %v329 = vld [vmem:[#allocation2 + $0x71] sm:$0xff]
        %v330 = vld [vmem:[#allocation2 + $0x79] sm:$0xff]
        %v331 = vld [vmem:[#allocation2 + $0x81] sm:$0xf]
        %v332 = vld [vmem:[#allocation2 + $0x2] sm:$0xff]
        %v333 = vld [vmem:[#allocation2 + $0xa] sm:$0xff]
        %v334 = vld [vmem:[#allocation2 + $0x12] sm:$0xff]
        %v335 = vld [vmem:[#allocation2 + $0x1a] sm:$0xff]
        %v336 = vld [vmem:[#allocation2 + $0x22] sm:$0xff]
        %v337 = vld [vmem:[#allocation2 + $0x2a] sm:$0xff]
        %v338 = vld [vmem:[#allocation2 + $0x32] sm:$0xff]
        %v339 = vld [vmem:[#allocation2 + $0x3a] sm:$0xff]
        %v340 = vld [vmem:[#allocation2 + $0x42] sm:$0xff]
        %v341 = vld [vmem:[#allocation2 + $0x4a] sm:$0xff]
        %v342 = vld [vmem:[#allocation2 + $0x52] sm:$0xff]
        %v343 = vld [vmem:[#allocation2 + $0x5a] sm:$0xff]
        %v344 = vld [vmem:[#allocation2 + $0x62] sm:$0xff]
        %v345 = vld [vmem:[#allocation2 + $0x6a] sm:$0xff]
        %v346 = vld [vmem:[#allocation2 + $0x72] sm:$0xff]
        %v347 = vld [vmem:[#allocation2 + $0x7a] sm:$0xff]
        %v348 = vld [vmem:[#allocation2 + $0x82] sm:$0xf]
        %v349 = vld [vmem:[#allocation4] sm:$0xff]
        %v350 = vld [vmem:[#allocation4 + $0x8] sm:$0xff]
        %v351 = vld [vmem:[#allocation4 + $0x10] sm:$0xff]
        %v352 = vld [vmem:[#allocation4 + $0x18] sm:$0xff]
        %v353 = vld [vmem:[#allocation4 + $0x20] sm:$0xff]
        %v354 = vld [vmem:[#allocation4 + $0x28] sm:$0xff]
        %v355 = vld [vmem:[#allocation4 + $0x30] sm:$0xff]
        %v356 = vld [vmem:[#allocation4 + $0x38] sm:$0xff]
        %v357 = vld [vmem:[#allocation4 + $0x40] sm:$0xff]
        %v358 = vld [vmem:[#allocation4 + $0x48] sm:$0xff]
        %v359 = vld [vmem:[#allocation4 + $0x50] sm:$0xff]
        %v360 = vld [vmem:[#allocation4 + $0x58] sm:$0xff]
        %v361 = vld [vmem:[#allocation4 + $0x60] sm:$0xff]
        %v362 = vld [vmem:[#allocation4 + $0x68] sm:$0xff]
        %v363 = vld [vmem:[#allocation4 + $0x70] sm:$0xff]
        %v364 = vld [vmem:[#allocation4 + $0x78] sm:$0xff]
        %v365 = vld [vmem:[#allocation4 + $0x80] sm:$0xff]
        %v366 = vld [vmem:[#allocation4 + $0x88] sm:$0xff]
        %v367 = vld [vmem:[#allocation4 + $0x90] sm:$0xff]
        %v368 = vld [vmem:[#allocation4 + $0x98] sm:$0xff]
        %v369 = vld [vmem:[#allocation4 + $0xa0] sm:$0xff]
        %v370 = vld [vmem:[#allocation4 + $0xa8] sm:$0xff]
        %v371 = vld [vmem:[#allocation4 + $0xb0] sm:$0xff]
        %v372 = vld [vmem:[#allocation4 + $0xb8] sm:$0xff]
        %v373 = vld [vmem:[#allocation4 + $0xc0] sm:$0xff]
        %v374 = vld [vmem:[#allocation4 + $0xc8] sm:$0xff]
        %v375 = vld [vmem:[#allocation4 + $0xd0] sm:$0xff]
        %v376 = vld [vmem:[#allocation4 + $0xd8] sm:$0xff]
        %v377 = vld [vmem:[#allocation4 + $0xe0] sm:$0xff]
        %v378 = vld [vmem:[#allocation4 + $0xe8] sm:$0xff]
        %v379 = vld [vmem:[#allocation4 + $0xf0] sm:$0xff]
        %v380 = vld [vmem:[#allocation4 + $0xf8] sm:$0xff]
        %v381 = vld [vmem:[#allocation4 + $0x100] sm:$0xff]
        %v382 = vld [vmem:[#allocation4 + $0x108] sm:$0xff]
        %v383 = vld [vmem:[#allocation4 + $0x110] sm:$0xff]
        %v384 = vld [vmem:[#allocation4 + $0x118] sm:$0xff]
        %v385 = vld [vmem:[#allocation4 + $0x120] sm:$0xff]
        %v386 = vld [vmem:[#allocation4 + $0x128] sm:$0xff]
        %v387 = vld [vmem:[#allocation4 + $0x130] sm:$0xff]
        %v388 = vld [vmem:[#allocation4 + $0x138] sm:$0xff]
        %v389 = vld [vmem:[#allocation4 + $0x140] sm:$0xff]
        %v390 = vld [vmem:[#allocation4 + $0x148] sm:$0xff]
        %v391 = vld [vmem:[#allocation4 + $0x150] sm:$0xff]
        %v392 = vld [vmem:[#allocation4 + $0x158] sm:$0xff]
        %v393 = vld [vmem:[#allocation4 + $0x160] sm:$0xff]
        %v394 = vld [vmem:[#allocation4 + $0x168] sm:$0xff]
        %v395 = vld [vmem:[#allocation4 + $0x170] sm:$0xff]
        %v396 = vld [vmem:[#allocation4 + $0x178] sm:$0xff]
        %v397 = vld [vmem:[%s2] sm:$0x1]
        %v398 = vlaneseq
        %v399 = vshrl.u32 %v398, 7
        %v400 = vsub.s32 0, %v399
        %v401 = vrot.slane %v397, %v400
        %402 = vmatprep.subr.mxu0 0.0
        %403 = vmatpush1.msra.mxu0 %v349
        %404 = vmatprep.subr.mxu0 0.0
        %405 = vmatpush1.msra.mxu0 %v350
        %406 = vmatprep.subr.mxu0 0.0
        %407 = vmatpush1.msra.mxu0 %v351
        %408 = vmatprep.subr.mxu0 0.0
        %409 = vmatpush1.msra.mxu0 %v352
        %410 = vmatprep.subr.mxu0 0.0
        %411 = vmatpush1.msra.mxu0 %v353
        %412 = vmatprep.subr.mxu0 0.0
        %413 = vmatpush1.msra.mxu0 %v354
        %414 = vmatprep.subr.mxu0 0.0
        %415 = vmatpush1.msra.mxu0 %v355
        %416 = vmatprep.subr.mxu0 0.0
        %417 = vmatpush1.msra.mxu0 %v356
        %418 = vmatprep.subr.mxu0 0.0
        %419 = vmatpush1.msra.mxu0 %v357
        %420 = vmatprep.subr.mxu0 0.0
        %421 = vmatpush1.msra.mxu0 %v358
        %422 = vmatprep.subr.mxu0 0.0
        %423 = vmatpush1.msra.mxu0 %v359
        %424 = vmatprep.subr.mxu0 0.0
        %425 = vmatpush1.msra.mxu0 %v360
        %426 = vmatprep.subr.mxu0 0.0
        %427 = vmatpush1.msra.mxu0 %v361
        %428 = vmatprep.subr.mxu0 0.0
        %429 = vmatpush1.msra.mxu0 %v362
        %430 = vmatprep.subr.mxu0 0.0
        %431 = vmatpush1.msra.mxu0 %v363
        %432 = vmatprep.subr.mxu0 0.0
        %433 = vmatpush1.msra.mxu0 %v364
        %434 = vmatprep.subr.mxu0 0.0
        %435 = vmatpush1.msra.mxu0 %v365
        %436 = vmatprep.subr.mxu0 0.0
        %437 = vmatpush1.msra.mxu0 %v366
        %438 = vmatprep.subr.mxu0 0.0
        %439 = vmatpush1.msra.mxu0 %v367
        %440 = vmatprep.subr.mxu0 0.0
        %441 = vmatpush1.msra.mxu0 %v368
        %442 = vmatprep.subr.mxu0 0.0
        %443 = vmatpush1.msra.mxu0 %v369
        %444 = vmatprep.subr.mxu0 0.0
        %445 = vmatpush1.msra.mxu0 %v370
        %446 = vmatprep.subr.mxu0 0.0
        %447 = vmatpush1.msra.mxu0 %v371
        %448 = vmatprep.subr.mxu0 0.0
        %449 = vmatpush1.msra.mxu0 %v372
        %450 = vmatprep.subr.mxu0 0.0
        %451 = vmatpush1.msra.mxu0 %v373
        %452 = vmatprep.subr.mxu0 0.0
        %453 = vmatpush1.msra.mxu0 %v374
        %454 = vmatprep.subr.mxu0 0.0
        %455 = vmatpush1.msra.mxu0 %v375
        %456 = vmatprep.subr.mxu0 0.0
        %457 = vmatpush1.msra.mxu0 %v376
        %458 = vmatprep.subr.mxu0 0.0
        %459 = vmatpush1.msra.mxu0 %v377
        %460 = vmatprep.subr.mxu0 0.0
        %461 = vmatpush1.msra.mxu0 %v378
        %462 = vmatprep.subr.mxu0 0.0
        %463 = vmatpush1.msra.mxu0 %v379
        %464 = vmatprep.subr.mxu0 0.0
        %465 = vmatpush1.msra.mxu0 %v380
        %466 = vmatprep.mubr.f32.mxu0 %v315
        %467 = vmatmul.mubr.f32.gmra.mrb[0].mxu0 %v298
        %v468 = vpop.f32.mrb[0].mxu0
        %v469 = vadd.f32 %v401, %v468
        %v470 = vpop.f32.mrb[0].mxu0
        %471 = vmatprep.mubr.f32.mxu0 %v316
        %472 = vmatmul.mubr.f32.gmra.mrb[0].mxu0 %v299
        %v473 = vpop.f32.mrb[0].mxu0
        %v474 = vadd.f32 %v401, %v473
        %v475 = vpop.f32.mrb[0].mxu0
        %476 = vmatprep.mubr.f32.mxu0 %v317
        %477 = vmatmul.mubr.f32.gmra.mrb[0].mxu0 %v300
        %v478 = vpop.f32.mrb[0].mxu0
        %v479 = vadd.f32 %v401, %v478
        %v480 = vpop.f32.mrb[0].mxu0
        %481 = vmatprep.mubr.f32.mxu0 %v318
        %482 = vmatmul.mubr.f32.gmra.mrb[0].mxu0 %v301
        %v483 = vpop.f32.mrb[0].mxu0
        %v484 = vadd.f32 %v401, %v483
        %v485 = vpop.f32.mrb[0].mxu0
        %486 = vmatprep.mubr.f32.mxu0 %v319
        %487 = vmatmul.mubr.f32.gmra.mrb[0].mxu0 %v302
        %v488 = vpop.f32.mrb[0].mxu0
        %v489 = vadd.f32 %v401, %v488
        %v490 = vpop.f32.mrb[0].mxu0
        %491 = vmatprep.mubr.f32.mxu0 %v320
        %492 = vmatmul.mubr.f32.gmra.mrb[0].mxu0 %v303
        %v493 = vpop.f32.mrb[0].mxu0
        %v494 = vadd.f32 %v401, %v493
        %v495 = vpop.f32.mrb[0].mxu0
        %496 = vmatprep.mubr.f32.mxu0 %v321
        %497 = vmatmul.mubr.f32.gmra.mrb[0].mxu0 %v304
        %v498 = vpop.f32.mrb[0].mxu0
        %v499 = vadd.f32 %v401, %v498
        %v500 = vpop.f32.mrb[0].mxu0
        %501 = vmatprep.mubr.f32.mxu0 %v322
        %502 = vmatmul.mubr.f32.gmra.mrb[0].mxu0 %v305
        %v503 = vpop.f32.mrb[0].mxu0
        %v504 = vadd.f32 %v401, %v503
        %v505 = vpop.f32.mrb[0].mxu0
        %506 = vmatprep.mubr.f32.mxu0 %v323
        %507 = vmatmul.mubr.f32.gmra.mrb[0].mxu0 %v306
        %v508 = vpop.f32.mrb[0].mxu0
        %v509 = vadd.f32 %v401, %v508
        %v510 = vpop.f32.mrb[0].mxu0
        %511 = vmatprep.mubr.f32.mxu0 %v324
        %512 = vmatmul.mubr.f32.gmra.mrb[0].mxu0 %v307
        %v513 = vpop.f32.mrb[0].mxu0
        %v514 = vadd.f32 %v401, %v513
        %v515 = vpop.f32.mrb[0].mxu0
        %516 = vmatprep.mubr.f32.mxu0 %v325
        %517 = vmatmul.mubr.f32.gmra.mrb[0].mxu0 %v308
        %v518 = vpop.f32.mrb[0].mxu0
        %v519 = vadd.f32 %v401, %v518
        %v520 = vpop.f32.mrb[0].mxu0
        %521 = vmatprep.mubr.f32.mxu0 %v326
        %522 = vmatmul.mubr.f32.gmra.mrb[0].mxu0 %v309
        %v523 = vpop.f32.mrb[0].mxu0
        %v524 = vadd.f32 %v401, %v523
        %v525 = vpop.f32.mrb[0].mxu0
        %526 = vmatprep.mubr.f32.mxu0 %v327
        %527 = vmatmul.mubr.f32.gmra.mrb[0].mxu0 %v310
        %v528 = vpop.f32.mrb[0].mxu0
        %v529 = vadd.f32 %v401, %v528
        %v530 = vpop.f32.mrb[0].mxu0
        %531 = vmatprep.mubr.f32.mxu0 %v328
        %532 = vmatmul.mubr.f32.gmra.mrb[0].mxu0 %v311
        %v533 = vpop.f32.mrb[0].mxu0
        %v534 = vadd.f32 %v401, %v533
        %v535 = vpop.f32.mrb[0].mxu0
        %536 = vmatprep.mubr.f32.mxu0 %v329
        %537 = vmatmul.mubr.f32.gmra.mrb[0].mxu0 %v312
        %v538 = vpop.f32.mrb[0].mxu0
        %v539 = vadd.f32 %v401, %v538
        %v540 = vpop.f32.mrb[0].mxu0
        %541 = vmatprep.mubr.f32.mxu0 %v330
        %542 = vmatmul.mubr.f32.gmra.mrb[0].mxu0 %v313
        %v543 = vpop.f32.mrb[0].mxu0
        %v544 = vadd.f32 %v401, %v543
        %v545 = vpop.f32.mrb[0].mxu0
        %546 = vmatprep.mubr.f32.mxu0 %v331
        %547 = vmatmul.mubr.f32.gmra.mrb[0].mxu0 %v314
        %v548 = vpop.f32.mrb[0].mxu0
        %v549 = vadd.f32 %v401, %v548
        %v550 = vpop.f32.mrb[0].mxu0
        %551 = vdwg.mxu0
        %552 = vmatprep.subr.mxu0 0.0
        %553 = vmatpush1.msra.mxu0 %v381
        %554 = vmatprep.subr.mxu0 0.0
        %555 = vmatpush1.msra.mxu0 %v382
        %556 = vmatprep.subr.mxu0 0.0
        %557 = vmatpush1.msra.mxu0 %v383
        %558 = vmatprep.subr.mxu0 0.0
        %559 = vmatpush1.msra.mxu0 %v384
        %560 = vmatprep.subr.mxu0 0.0
        %561 = vmatpush1.msra.mxu0 %v385
        %562 = vmatprep.subr.mxu0 0.0
        %563 = vmatpush1.msra.mxu0 %v386
        %564 = vmatprep.subr.mxu0 0.0
        %565 = vmatpush1.msra.mxu0 %v387
        %566 = vmatprep.subr.mxu0 0.0
        %567 = vmatpush1.msra.mxu0 %v388
        %568 = vmatprep.subr.mxu0 0.0
        %569 = vmatpush1.msra.mxu0 %v389
        %570 = vmatprep.subr.mxu0 0.0
        %571 = vmatpush1.msra.mxu0 %v390
        %572 = vmatprep.subr.mxu0 0.0
        %573 = vmatpush1.msra.mxu0 %v391
        %574 = vmatprep.subr.mxu0 0.0
        %575 = vmatpush1.msra.mxu0 %v392
        %576 = vmatprep.subr.mxu0 0.0
        %577 = vmatpush1.msra.mxu0 %v393
        %578 = vmatprep.subr.mxu0 0.0
        %579 = vmatpush1.msra.mxu0 %v394
        %580 = vmatprep.subr.mxu0 0.0
        %581 = vmatpush1.msra.mxu0 %v395
        %582 = vmatprep.subr.mxu0 0.0
        %583 = vmatpush1.msra.mxu0 %v396
        %584 = vmatprep.subr.mxu0 0.0
        %585 = vmatpush1.msra.mxu0 0.0
        %586 = vmatprep.subr.mxu0 0.0
        %587 = vmatpush1.msra.mxu0 0.0
        %588 = vmatprep.subr.mxu0 0.0
        %589 = vmatpush1.msra.mxu0 0.0
        %590 = vmatprep.subr.mxu0 0.0
        %591 = vmatpush1.msra.mxu0 0.0
        %592 = vmatprep.subr.mxu0 0.0
        %593 = vmatpush1.msra.mxu0 0.0
        %594 = vmatprep.subr.mxu0 0.0
        %595 = vmatpush1.msra.mxu0 0.0
        %596 = vmatprep.subr.mxu0 0.0
        %597 = vmatpush1.msra.mxu0 0.0
        %598 = vmatprep.subr.mxu0 0.0
        %599 = vmatpush1.msra.mxu0 0.0
        %600 = vmatprep.subr.mxu0 0.0
        %601 = vmatpush1.msra.mxu0 0.0
        %602 = vmatprep.subr.mxu0 0.0
        %603 = vmatpush1.msra.mxu0 0.0
        %604 = vmatprep.subr.mxu0 0.0
        %605 = vmatpush1.msra.mxu0 0.0
        %606 = vmatprep.subr.mxu0 0.0
        %607 = vmatpush1.msra.mxu0 0.0
        %608 = vmatprep.subr.mxu0 0.0
        %609 = vmatpush1.msra.mxu0 0.0
        %610 = vmatprep.subr.mxu0 0.0
        %611 = vmatpush1.msra.mxu0 0.0
        %612 = vmatprep.subr.mxu0 0.0
        %613 = vmatpush1.msra.mxu0 0.0
        %614 = vmatprep.subr.mxu0 0.0
        %615 = vmatpush1.msra.mxu0 0.0
        %616 = vmatprep.mubr.f32.mxu0 0.0
        %617 = vmatmul.mubr.f32.gmra.mrb[0].mxu0 %v332
        %v618 = vpop.f32.mrb[0].mxu0
        %v619 = vadd.f32 %v469, %v618
        %v620 = vpop.f32.mrb[0].mxu0
        %621 = vmatprep.mubr.f32.mxu0 0.0
        %622 = vmatmul.mubr.f32.gmra.mrb[0].mxu0 %v333
        %v623 = vpop.f32.mrb[0].mxu0
        %v624 = vadd.f32 %v474, %v623
        %v625 = vpop.f32.mrb[0].mxu0
        %626 = vmatprep.mubr.f32.mxu0 0.0
        %627 = vmatmul.mubr.f32.gmra.mrb[0].mxu0 %v334
        %v628 = vpop.f32.mrb[0].mxu0
        %v629 = vadd.f32 %v479, %v628
        %v630 = vpop.f32.mrb[0].mxu0
        %631 = vmatprep.mubr.f32.mxu0 0.0
        %632 = vmatmul.mubr.f32.gmra.mrb[0].mxu0 %v335
        %v633 = vpop.f32.mrb[0].mxu0
        %v634 = vadd.f32 %v484, %v633
        %v635 = vpop.f32.mrb[0].mxu0
        %636 = vmatprep.mubr.f32.mxu0 0.0
        %637 = vmatmul.mubr.f32.gmra.mrb[0].mxu0 %v336
        %v638 = vpop.f32.mrb[0].mxu0
        %v639 = vadd.f32 %v489, %v638
        %v640 = vpop.f32.mrb[0].mxu0
        %641 = vmatprep.mubr.f32.mxu0 0.0
        %642 = vmatmul.mubr.f32.gmra.mrb[0].mxu0 %v337
        %v643 = vpop.f32.mrb[0].mxu0
        %v644 = vadd.f32 %v494, %v643
        %v645 = vpop.f32.mrb[0].mxu0
        %646 = vmatprep.mubr.f32.mxu0 0.0
        %647 = vmatmul.mubr.f32.gmra.mrb[0].mxu0 %v338
        %v648 = vpop.f32.mrb[0].mxu0
        %v649 = vadd.f32 %v499, %v648
        %v650 = vpop.f32.mrb[0].mxu0
        %651 = vmatprep.mubr.f32.mxu0 0.0
        %652 = vmatmul.mubr.f32.gmra.mrb[0].mxu0 %v339
        %v653 = vpop.f32.mrb[0].mxu0
        %v654 = vadd.f32 %v504, %v653
        %v655 = vpop.f32.mrb[0].mxu0
        %656 = vmatprep.mubr.f32.mxu0 0.0
        %657 = vmatmul.mubr.f32.gmra.mrb[0].mxu0 %v340
        %v658 = vpop.f32.mrb[0].mxu0
        %v659 = vadd.f32 %v509, %v658
        %v660 = vpop.f32.mrb[0].mxu0
        %661 = vmatprep.mubr.f32.mxu0 0.0
        %662 = vmatmul.mubr.f32.gmra.mrb[0].mxu0 %v341
        %v663 = vpop.f32.mrb[0].mxu0
        %v664 = vadd.f32 %v514, %v663
        %v665 = vpop.f32.mrb[0].mxu0
        %666 = vmatprep.mubr.f32.mxu0 0.0
        %667 = vmatmul.mubr.f32.gmra.mrb[0].mxu0 %v342
        %v668 = vpop.f32.mrb[0].mxu0
        %v669 = vadd.f32 %v519, %v668
        %v670 = vpop.f32.mrb[0].mxu0
        %671 = vmatprep.mubr.f32.mxu0 0.0
        %672 = vmatmul.mubr.f32.gmra.mrb[0].mxu0 %v343
        %v673 = vpop.f32.mrb[0].mxu0
        %v674 = vadd.f32 %v524, %v673
        %v675 = vpop.f32.mrb[0].mxu0
        %676 = vmatprep.mubr.f32.mxu0 0.0
        %677 = vmatmul.mubr.f32.gmra.mrb[0].mxu0 %v344
        %v678 = vpop.f32.mrb[0].mxu0
        %v679 = vadd.f32 %v529, %v678
        %v680 = vpop.f32.mrb[0].mxu0
        %681 = vmatprep.mubr.f32.mxu0 0.0
        %682 = vmatmul.mubr.f32.gmra.mrb[0].mxu0 %v345
        %v683 = vpop.f32.mrb[0].mxu0
        %v684 = vadd.f32 %v534, %v683
        %v685 = vpop.f32.mrb[0].mxu0
        %686 = vmatprep.mubr.f32.mxu0 0.0
        %687 = vmatmul.mubr.f32.gmra.mrb[0].mxu0 %v346
        %v688 = vpop.f32.mrb[0].mxu0
        %v689 = vadd.f32 %v539, %v688
        %v690 = vpop.f32.mrb[0].mxu0
        %691 = vmatprep.mubr.f32.mxu0 0.0
        %692 = vmatmul.mubr.f32.gmra.mrb[0].mxu0 %v347
        %v693 = vpop.f32.mrb[0].mxu0
        %v694 = vadd.f32 %v544, %v693
        %v695 = vpop.f32.mrb[0].mxu0
        %696 = vmatprep.mubr.f32.mxu0 0.0
        %697 = vmatmul.mubr.f32.gmra.mrb[0].mxu0 %v348
        %v698 = vpop.f32.mrb[0].mxu0
        %v699 = vadd.f32 %v549, %v698
        %v700 = vpop.f32.mrb[0].mxu0
        %701 = vdwg.mxu0
        %v702 = vmax.f32 %v619, 0.0
        %v703 = vmax.f32 %v624, 0.0
        %v704 = vmax.f32 %v629, 0.0
        %v705 = vmax.f32 %v634, 0.0
        %v706 = vmax.f32 %v639, 0.0
        %v707 = vmax.f32 %v644, 0.0
        %v708 = vmax.f32 %v649, 0.0
        %v709 = vmax.f32 %v654, 0.0
        %v710 = vmax.f32 %v659, 0.0
        %v711 = vmax.f32 %v664, 0.0
        %v712 = vmax.f32 %v669, 0.0
        %v713 = vmax.f32 %v674, 0.0
        %v714 = vmax.f32 %v679, 0.0
        %v715 = vmax.f32 %v684, 0.0
        %v716 = vmax.f32 %v689, 0.0
        %v717 = vmax.f32 %v694, 0.0
        %v718 = vmax.f32 %v699, 0.0
        %v719 = vadd.f32 %v315, %v702
        %v720 = vadd.f32 %v316, %v703
        %v721 = vadd.f32 %v317, %v704
        %v722 = vadd.f32 %v318, %v705
        %v723 = vadd.f32 %v319, %v706
        %v724 = vadd.f32 %v320, %v707
        %v725 = vadd.f32 %v321, %v708
        %v726 = vadd.f32 %v322, %v709
        %v727 = vadd.f32 %v323, %v710
        %v728 = vadd.f32 %v324, %v711
        %v729 = vadd.f32 %v325, %v712
        %v730 = vadd.f32 %v326, %v713
        %v731 = vadd.f32 %v327, %v714
        %v732 = vadd.f32 %v328, %v715
        %v733 = vadd.f32 %v329, %v716
        %v734 = vadd.f32 %v330, %v717
        %v735 = vadd.f32 %v331, %v718
        %736 = vadd.xlane.f32.xlu0 %v719
        %v737 = vpop.xlane.xlu0 %736
        %738 = vadd.xlane.f32.xlu0 %v720
        %v739 = vpop.xlane.xlu0 %738
        %740 = vadd.xlane.f32.xlu0 %v721
        %v741 = vpop.xlane.xlu0 %740
        %742 = vadd.xlane.f32.xlu0 %v722
        %v743 = vpop.xlane.xlu0 %742
        %744 = vadd.xlane.f32.xlu0 %v723
        %v745 = vpop.xlane.xlu0 %744
        %746 = vadd.xlane.f32.xlu0 %v724
        %v747 = vpop.xlane.xlu0 %746
        %748 = vadd.xlane.f32.xlu0 %v725
        %v749 = vpop.xlane.xlu0 %748
        %750 = vadd.xlane.f32.xlu0 %v726
        %v751 = vpop.xlane.xlu0 %750
        %752 = vadd.xlane.f32.xlu0 %v727
        %v753 = vpop.xlane.xlu0 %752
        %754 = vadd.xlane.f32.xlu0 %v728
        %v755 = vpop.xlane.xlu0 %754
        %756 = vadd.xlane.f32.xlu0 %v729
        %v757 = vpop.xlane.xlu0 %756
        %758 = vadd.xlane.f32.xlu0 %v730
        %v759 = vpop.xlane.xlu0 %758
        %760 = vadd.xlane.f32.xlu0 %v731
        %v761 = vpop.xlane.xlu0 %760
        %762 = vadd.xlane.f32.xlu0 %v732
        %v763 = vpop.xlane.xlu0 %762
        %764 = vadd.xlane.f32.xlu0 %v733
        %v765 = vpop.xlane.xlu0 %764
        %766 = vadd.xlane.f32.xlu0 %v734
        %v767 = vpop.xlane.xlu0 %766
        %vm768 = vcmask 1043456
        %v769 = vsel %vm768, %v735, 0.0
        %770 = vadd.xlane.f32.xlu0 %v769
        %v771 = vpop.xlane.xlu0 %770
        %v772 = vrcp.pop 128.0
        %v773 = vmul.f32 %v737, %v772
        %v774 = vmul.f32 %v739, %v772
        %v775 = vmul.f32 %v741, %v772
        %v776 = vmul.f32 %v743, %v772
        %v777 = vmul.f32 %v745, %v772
        %v778 = vmul.f32 %v747, %v772
        %v779 = vmul.f32 %v749, %v772
        %v780 = vmul.f32 %v751, %v772
        %v781 = vmul.f32 %v753, %v772
        %v782 = vmul.f32 %v755, %v772
        %v783 = vmul.f32 %v757, %v772
        %v784 = vmul.f32 %v759, %v772
        %v785 = vmul.f32 %v761, %v772
        %v786 = vmul.f32 %v763, %v772
        %v787 = vmul.f32 %v765, %v772
        %v788 = vmul.f32 %v767, %v772
        %v789 = vmul.f32 %v771, %v772
        %v790 = vsub.f32 %v719, %v773
        %v791 = vsub.f32 %v720, %v774
        %v792 = vsub.f32 %v721, %v775
        %v793 = vsub.f32 %v722, %v776
        %v794 = vsub.f32 %v723, %v777
        %v795 = vsub.f32 %v724, %v778
        %v796 = vsub.f32 %v725, %v779
        %v797 = vsub.f32 %v726, %v780
        %v798 = vsub.f32 %v727, %v781
        %v799 = vsub.f32 %v728, %v782
        %v800 = vsub.f32 %v729, %v783
        %v801 = vsub.f32 %v730, %v784
        %v802 = vsub.f32 %v731, %v785
        %v803 = vsub.f32 %v732, %v786
        %v804 = vsub.f32 %v733, %v787
        %v805 = vsub.f32 %v734, %v788
        %v806 = vsub.f32 %v735, %v789
        %v807 = vmul.f32 %v790, %v790
        %v808 = vmul.f32 %v791, %v791
        %v809 = vmul.f32 %v792, %v792
        %v810 = vmul.f32 %v793, %v793
        %v811 = vmul.f32 %v794, %v794
        %v812 = vmul.f32 %v795, %v795
        %v813 = vmul.f32 %v796, %v796
        %v814 = vmul.f32 %v797, %v797
        %v815 = vmul.f32 %v798, %v798
        %v816 = vmul.f32 %v799, %v799
        %v817 = vmul.f32 %v800, %v800
        %v818 = vmul.f32 %v801, %v801
        %v819 = vmul.f32 %v802, %v802
        %v820 = vmul.f32 %v803, %v803
        %v821 = vmul.f32 %v804, %v804
        %v822 = vmul.f32 %v805, %v805
        %v823 = vmul.f32 %v806, %v806
        %824 = vadd.xlane.f32.xlu0 %v807
        %v825 = vpop.xlane.xlu0 %824
        %826 = vadd.xlane.f32.xlu0 %v808
        %v827 = vpop.xlane.xlu0 %826
        %828 = vadd.xlane.f32.xlu0 %v809
        %v829 = vpop.xlane.xlu0 %828
        %830 = vadd.xlane.f32.xlu0 %v810
        %v831 = vpop.xlane.xlu0 %830
        %832 = vadd.xlane.f32.xlu0 %v811
        %v833 = vpop.xlane.xlu0 %832
        %834 = vadd.xlane.f32.xlu0 %v812
        %v835 = vpop.xlane.xlu0 %834
        %836 = vadd.xlane.f32.xlu0 %v813
        %v837 = vpop.xlane.xlu0 %836
        %838 = vadd.xlane.f32.xlu0 %v814
        %v839 = vpop.xlane.xlu0 %838
        %840 = vadd.xlane.f32.xlu0 %v815
        %v841 = vpop.xlane.xlu0 %840
        %842 = vadd.xlane.f32.xlu0 %v816
        %v843 = vpop.xlane.xlu0 %842
        %844 = vadd.xlane.f32.xlu0 %v817
        %v845 = vpop.xlane.xlu0 %844
        %846 = vadd.xlane.f32.xlu0 %v818
        %v847 = vpop.xlane.xlu0 %846
        %848 = vadd.xlane.f32.xlu0 %v819
        %v849 = vpop.xlane.xlu0 %848
        %850 = vadd.xlane.f32.xlu0 %v820
        %v851 = vpop.xlane.xlu0 %850
        %852 = vadd.xlane.f32.xlu0 %v821
        %v853 = vpop.xlane.xlu0 %852
        %854 = vadd.xlane.f32.xlu0 %v822
        %v855 = vpop.xlane.xlu0 %854
        %v856 = vsel %vm768, %v823, 0.0
        %857 = vadd.xlane.f32.xlu0 %v856
        %v858 = vpop.xlane.xlu0 %857
        %v859 = vmul.f32 %v825, %v772
        %v860 = vmul.f32 %v827, %v772
        %v861 = vmul.f32 %v829, %v772
        %v862 = vmul.f32 %v831, %v772
        %v863 = vmul.f32 %v833, %v772
        %v864 = vmul.f32 %v835, %v772
        %v865 = vmul.f32 %v837, %v772
        %v866 = vmul.f32 %v839, %v772
        %v867 = vmul.f32 %v841, %v772
        %v868 = vmul.f32 %v843, %v772
        %v869 = vmul.f32 %v845, %v772
        %v870 = vmul.f32 %v847, %v772
        %v871 = vmul.f32 %v849, %v772
        %v872 = vmul.f32 %v851, %v772
        %v873 = vmul.f32 %v853, %v772
        %v874 = vmul.f32 %v855, %v772
        %v875 = vmul.f32 %v858, %v772
        %v876 = vadd.f32 %v859, 1e-12
        %v877 = vadd.f32 %v860, 1e-12
        %v878 = vadd.f32 %v861, 1e-12
        %v879 = vadd.f32 %v862, 1e-12
        %v880 = vadd.f32 %v863, 1e-12
        %v881 = vadd.f32 %v864, 1e-12
        %v882 = vadd.f32 %v865, 1e-12
        %v883 = vadd.f32 %v866, 1e-12
        %v884 = vadd.f32 %v867, 1e-12
        %v885 = vadd.f32 %v868, 1e-12
        %v886 = vadd.f32 %v869, 1e-12
        %v887 = vadd.f32 %v870, 1e-12
        %v888 = vadd.f32 %v871, 1e-12
        %v889 = vadd.f32 %v872, 1e-12
        %v890 = vadd.f32 %v873, 1e-12
        %v891 = vadd.f32 %v874, 1e-12
        %v892 = vadd.f32 %v875, 1e-12
        %v893 = vrsqrt.pop %v876
        %v894 = vrsqrt.pop %v877
        %v895 = vrsqrt.pop %v878
        %v896 = vrsqrt.pop %v879
        %v897 = vrsqrt.pop %v880
        %v898 = vrsqrt.pop %v881
        %v899 = vrsqrt.pop %v882
        %v900 = vrsqrt.pop %v883
        %v901 = vrsqrt.pop %v884
        %v902 = vrsqrt.pop %v885
        %v903 = vrsqrt.pop %v886
        %v904 = vrsqrt.pop %v887
        %v905 = vrsqrt.pop %v888
        %v906 = vrsqrt.pop %v889
        %v907 = vrsqrt.pop %v890
        %v908 = vrsqrt.pop %v891
        %v909 = vrsqrt.pop %v892
        %v910 = vmul.f32 %v790, %v893
        %v911 = vmul.f32 %v791, %v894
        %v912 = vmul.f32 %v792, %v895
        %v913 = vmul.f32 %v793, %v896
        %v914 = vmul.f32 %v794, %v897
        %v915 = vmul.f32 %v795, %v898
        %v916 = vmul.f32 %v796, %v899
        %v917 = vmul.f32 %v797, %v900
        %v918 = vmul.f32 %v798, %v901
        %v919 = vmul.f32 %v799, %v902
        %v920 = vmul.f32 %v800, %v903
        %v921 = vmul.f32 %v801, %v904
        %v922 = vmul.f32 %v802, %v905
        %v923 = vmul.f32 %v803, %v906
        %v924 = vmul.f32 %v804, %v907
        %v925 = vmul.f32 %v805, %v908
        %v926 = vmul.f32 %v806, %v909
        %v927 = vld [vmem:[%s3] sm:$0x1]
        %v928 = vlaneseq
        %v929 = vshrl.u32 %v928, 7
        %v930 = vsub.s32 0, %v929
        %v931 = vrot.slane %v927, %v930
        %v932 = vmul.f32 %v931, %v910
        %v933 = vmul.f32 %v931, %v911
        %v934 = vmul.f32 %v931, %v912
        %v935 = vmul.f32 %v931, %v913
        %v936 = vmul.f32 %v931, %v914
        %v937 = vmul.f32 %v931, %v915
        %v938 = vmul.f32 %v931, %v916
        %v939 = vmul.f32 %v931, %v917
        %v940 = vmul.f32 %v931, %v918
        %v941 = vmul.f32 %v931, %v919
        %v942 = vmul.f32 %v931, %v920
        %v943 = vmul.f32 %v931, %v921
        %v944 = vmul.f32 %v931, %v922
        %v945 = vmul.f32 %v931, %v923
        %v946 = vmul.f32 %v931, %v924
        %v947 = vmul.f32 %v931, %v925
        %v948 = vmul.f32 %v931, %v926
        %v949 = vld [vmem:[%s4] sm:$0x1]
        %v950 = vlaneseq
        %v951 = vshrl.u32 %v950, 7
        %v952 = vsub.s32 0, %v951
        %v953 = vrot.slane %v949, %v952
        %v954 = vadd.f32 %v932, %v953
        %v955 = vadd.f32 %v933, %v953
        %v956 = vadd.f32 %v934, %v953
        %v957 = vadd.f32 %v935, %v953
        %v958 = vadd.f32 %v936, %v953
        %v959 = vadd.f32 %v937, %v953
        %v960 = vadd.f32 %v938, %v953
        %v961 = vadd.f32 %v939, %v953
        %v962 = vadd.f32 %v940, %v953
        %v963 = vadd.f32 %v941, %v953
        %v964 = vadd.f32 %v942, %v953
        %v965 = vadd.f32 %v943, %v953
        %v966 = vadd.f32 %v944, %v953
        %v967 = vadd.f32 %v945, %v953
        %v968 = vadd.f32 %v946, %v953
        %v969 = vadd.f32 %v947, %v953
        %v970 = vadd.f32 %v948, %v953
        %s971 = sadd.s32 %s207, 4294967294
        %v972 = vlaneseq
        %v973 = vshrl.u32 %v972, 7
        %v974 = vadd.s32 %v973, 8
        %v975 = vadd.s32 %v973, 16
        %v976 = vadd.s32 %v973, 24
        %v977 = vadd.s32 %v973, 32
        %v978 = vadd.s32 %v973, 40
        %v979 = vadd.s32 %v973, 48
        %v980 = vadd.s32 %v973, 56
        %v981 = vadd.s32 %v973, 64
        %v982 = vadd.s32 %v973, 72
        %v983 = vadd.s32 %v973, 80
        %v984 = vadd.s32 %v973, 88
        %v985 = vadd.s32 %v973, 96
        %v986 = vadd.s32 %v973, 104
        %v987 = vadd.s32 %v973, 112
        %v988 = vadd.s32 %v973, 120
        %v989 = vadd.s32 %v973, 128
        %v990 = vstv %s971
        %v991 = vadd.s32 %v990, %v973
        %v992 = vadd.s32 %v990, %v974
        %v993 = vadd.s32 %v990, %v975
        %v994 = vadd.s32 %v990, %v976
        %v995 = vadd.s32 %v990, %v977
        %v996 = vadd.s32 %v990, %v978
        %v997 = vadd.s32 %v990, %v979
        %v998 = vadd.s32 %v990, %v980
        %v999 = vadd.s32 %v990, %v981
        %v1000 = vadd.s32 %v990, %v982
        %v1001 = vadd.s32 %v990, %v983
        %v1002 = vadd.s32 %v990, %v984
        %v1003 = vadd.s32 %v990, %v985
        %v1004 = vadd.s32 %v990, %v986
        %v1005 = vadd.s32 %v990, %v987
        %v1006 = vadd.s32 %v990, %v988
        %v1007 = vadd.s32 %v990, %v989
        %vm1008 = vcmp.ge.s32.totalorder %v991, 0
        %vm1009 = vcmp.ge.s32.totalorder %v992, 0
        %vm1010 = vcmp.ge.s32.totalorder %v993, 0
        %vm1011 = vcmp.ge.s32.totalorder %v994, 0
        %vm1012 = vcmp.ge.s32.totalorder %v995, 0
        %vm1013 = vcmp.ge.s32.totalorder %v996, 0
        %vm1014 = vcmp.ge.s32.totalorder %v997, 0
        %vm1015 = vcmp.ge.s32.totalorder %v998, 0
        %vm1016 = vcmp.ge.s32.totalorder %v999, 0
        %vm1017 = vcmp.ge.s32.totalorder %v1000, 0
        %vm1018 = vcmp.ge.s32.totalorder %v1001, 0
        %vm1019 = vcmp.ge.s32.totalorder %v1002, 0
        %vm1020 = vcmp.ge.s32.totalorder %v1003, 0
        %vm1021 = vcmp.ge.s32.totalorder %v1004, 0
        %vm1022 = vcmp.ge.s32.totalorder %v1005, 0
        %vm1023 = vcmp.ge.s32.totalorder %v1006, 0
        %vm1024 = vcmp.ge.s32.totalorder %v1007, 0
        %vm1025 = vcmp.lt.s32.totalorder %v991, 256
        %vm1026 = vcmp.lt.s32.totalorder %v992, 256
        %vm1027 = vcmp.lt.s32.totalorder %v993, 256
        %vm1028 = vcmp.lt.s32.totalorder %v994, 256
        %vm1029 = vcmp.lt.s32.totalorder %v995, 256
        %vm1030 = vcmp.lt.s32.totalorder %v996, 256
        %vm1031 = vcmp.lt.s32.totalorder %v997, 256
        %vm1032 = vcmp.lt.s32.totalorder %v998, 256
        %vm1033 = vcmp.lt.s32.totalorder %v999, 256
        %vm1034 = vcmp.lt.s32.totalorder %v1000, 256
        %vm1035 = vcmp.lt.s32.totalorder %v1001, 256
        %vm1036 = vcmp.lt.s32.totalorder %v1002, 256
        %vm1037 = vcmp.lt.s32.totalorder %v1003, 256
        %vm1038 = vcmp.lt.s32.totalorder %v1004, 256
        %vm1039 = vcmp.lt.s32.totalorder %v1005, 256
        %vm1040 = vcmp.lt.s32.totalorder %v1006, 256
        %vm1041 = vcmp.lt.s32.totalorder %v1007, 256
        %vm1042 = vmand %vm1008, %vm1025
        %vm1043 = vmand %vm1009, %vm1026
        %vm1044 = vmand %vm1010, %vm1027
        %vm1045 = vmand %vm1011, %vm1028
        %vm1046 = vmand %vm1012, %vm1029
        %vm1047 = vmand %vm1013, %vm1030
        %vm1048 = vmand %vm1014, %vm1031
        %vm1049 = vmand %vm1015, %vm1032
        %vm1050 = vmand %vm1016, %vm1033
        %vm1051 = vmand %vm1017, %vm1034
        %vm1052 = vmand %vm1018, %vm1035
        %vm1053 = vmand %vm1019, %vm1036
        %vm1054 = vmand %vm1020, %vm1037
        %vm1055 = vmand %vm1021, %vm1038
        %vm1056 = vmand %vm1022, %vm1039
        %vm1057 = vmand %vm1023, %vm1040
        %vm1058 = vmand %vm1024, %vm1041
        %v1059 = vsel %vm1042, 1, 0
        %v1060 = vsel %vm1043, 1, 0
        %v1061 = vsel %vm1044, 1, 0
        %v1062 = vsel %vm1045, 1, 0
        %v1063 = vsel %vm1046, 1, 0
        %v1064 = vsel %vm1047, 1, 0
        %v1065 = vsel %vm1048, 1, 0
        %v1066 = vsel %vm1049, 1, 0
        %v1067 = vsel %vm1050, 1, 0
        %v1068 = vsel %vm1051, 1, 0
        %v1069 = vsel %vm1052, 1, 0
        %v1070 = vsel %vm1053, 1, 0
        %v1071 = vsel %vm1054, 1, 0
        %v1072 = vsel %vm1055, 1, 0
        %v1073 = vsel %vm1056, 1, 0
        %v1074 = vsel %vm1057, 1, 0
        %v1075 = vsel %vm1058, 1, 0
        %vm1076 = vcmp.eq.s32.totalorder %v1059, 1
        %vm1077 = vcmp.eq.s32.totalorder %v1060, 1
        %vm1078 = vcmp.eq.s32.totalorder %v1061, 1
        %vm1079 = vcmp.eq.s32.totalorder %v1062, 1
        %vm1080 = vcmp.eq.s32.totalorder %v1063, 1
        %vm1081 = vcmp.eq.s32.totalorder %v1064, 1
        %vm1082 = vcmp.eq.s32.totalorder %v1065, 1
        %vm1083 = vcmp.eq.s32.totalorder %v1066, 1
        %vm1084 = vcmp.eq.s32.totalorder %v1067, 1
        %vm1085 = vcmp.eq.s32.totalorder %v1068, 1
        %vm1086 = vcmp.eq.s32.totalorder %v1069, 1
        %vm1087 = vcmp.eq.s32.totalorder %v1070, 1
        %vm1088 = vcmp.eq.s32.totalorder %v1071, 1
        %vm1089 = vcmp.eq.s32.totalorder %v1072, 1
        %vm1090 = vcmp.eq.s32.totalorder %v1073, 1
        %vm1091 = vcmp.eq.s32.totalorder %v1074, 1
        %vm1092 = vcmp.eq.s32.totalorder %v1075, 1
        %v1093 = vsel %vm1076, %v954, 0.0
        %v1094 = vsel %vm1077, %v955, 0.0
        %v1095 = vsel %vm1078, %v956, 0.0
        %v1096 = vsel %vm1079, %v957, 0.0
        %v1097 = vsel %vm1080, %v958, 0.0
        %v1098 = vsel %vm1081, %v959, 0.0
        %v1099 = vsel %vm1082, %v960, 0.0
        %v1100 = vsel %vm1083, %v961, 0.0
        %v1101 = vsel %vm1084, %v962, 0.0
        %v1102 = vsel %vm1085, %v963, 0.0
        %v1103 = vsel %vm1086, %v964, 0.0
        %v1104 = vsel %vm1087, %v965, 0.0
        %v1105 = vsel %vm1088, %v966, 0.0
        %v1106 = vsel %vm1089, %v967, 0.0
        %v1107 = vsel %vm1090, %v968, 0.0
        %v1108 = vsel %vm1091, %v969, 0.0
        %v1109 = vsel %vm1092, %v970, 0.0
        %1110 = vst [vmem:[#allocation2 + $0x1] sm:$0xff] %v1093
        %1111 = vst [vmem:[#allocation2 + $0x9] sm:$0xff] %v1094
        %1112 = vst [vmem:[#allocation2 + $0x11] sm:$0xff] %v1095
        %1113 = vst [vmem:[#allocation2 + $0x19] sm:$0xff] %v1096
        %1114 = vst [vmem:[#allocation2 + $0x21] sm:$0xff] %v1097
        %1115 = vst [vmem:[#allocation2 + $0x29] sm:$0xff] %v1098
        %1116 = vst [vmem:[#allocation2 + $0x31] sm:$0xff] %v1099
        %1117 = vst [vmem:[#allocation2 + $0x39] sm:$0xff] %v1100
        %1118 = vst [vmem:[#allocation2 + $0x41] sm:$0xff] %v1101
        %1119 = vst [vmem:[#allocation2 + $0x49] sm:$0xff] %v1102
        %1120 = vst [vmem:[#allocation2 + $0x51] sm:$0xff] %v1103
        %1121 = vst [vmem:[#allocation2 + $0x59] sm:$0xff] %v1104
        %1122 = vst [vmem:[#allocation2 + $0x61] sm:$0xff] %v1105
        %1123 = vst [vmem:[#allocation2 + $0x69] sm:$0xff] %v1106
        %1124 = vst [vmem:[#allocation2 + $0x71] sm:$0xff] %v1107
        %1125 = vst [vmem:[#allocation2 + $0x79] sm:$0xff] %v1108
        %1126 = vst [vmem:[#allocation2 + $0x81] sm:$0xf] %v1109
        %v1127 = vld [vmem:[#allocation2 + $0x1] sm:$0xff]
        %v1128 = vld [vmem:[#allocation2 + $0x9] sm:$0xff]
        %v1129 = vld [vmem:[#allocation2 + $0x11] sm:$0xff]
        %v1130 = vld [vmem:[#allocation2 + $0x19] sm:$0xff]
        %v1131 = vld [vmem:[#allocation2 + $0x21] sm:$0xff]
        %v1132 = vld [vmem:[#allocation2 + $0x29] sm:$0xff]
        %v1133 = vld [vmem:[#allocation2 + $0x31] sm:$0xff]
        %v1134 = vld [vmem:[#allocation2 + $0x39] sm:$0xff]
        %v1135 = vld [vmem:[#allocation2 + $0x41] sm:$0xff]
        %v1136 = vld [vmem:[#allocation2 + $0x49] sm:$0xff]
        %v1137 = vld [vmem:[#allocation2 + $0x51] sm:$0xff]
        %v1138 = vld [vmem:[#allocation2 + $0x59] sm:$0xff]
        %v1139 = vld [vmem:[#allocation2 + $0x61] sm:$0xff]
        %v1140 = vld [vmem:[#allocation2 + $0x69] sm:$0xff]
        %v1141 = vld [vmem:[#allocation2 + $0x71] sm:$0xff]
        %v1142 = vld [vmem:[#allocation2 + $0x79] sm:$0xff]
        %v1143 = vld [vmem:[#allocation2 + $0x81] sm:$0x3]
        %v1144 = vld [vmem:[#allocation2 + $0x2] sm:$0xff]
        %v1145 = vld [vmem:[#allocation2 + $0xa] sm:$0xff]
        %v1146 = vld [vmem:[#allocation2 + $0x12] sm:$0xff]
        %v1147 = vld [vmem:[#allocation2 + $0x1a] sm:$0xff]
        %v1148 = vld [vmem:[#allocation2 + $0x22] sm:$0xff]
        %v1149 = vld [vmem:[#allocation2 + $0x2a] sm:$0xff]
        %v1150 = vld [vmem:[#allocation2 + $0x32] sm:$0xff]
        %v1151 = vld [vmem:[#allocation2 + $0x3a] sm:$0xff]
        %v1152 = vld [vmem:[#allocation2 + $0x42] sm:$0xff]
        %v1153 = vld [vmem:[#allocation2 + $0x4a] sm:$0xff]
        %v1154 = vld [vmem:[#allocation2 + $0x52] sm:$0xff]
        %v1155 = vld [vmem:[#allocation2 + $0x5a] sm:$0xff]
        %v1156 = vld [vmem:[#allocation2 + $0x62] sm:$0xff]
        %v1157 = vld [vmem:[#allocation2 + $0x6a] sm:$0xff]
        %v1158 = vld [vmem:[#allocation2 + $0x72] sm:$0xff]
        %v1159 = vld [vmem:[#allocation2 + $0x7a] sm:$0xff]
        %v1160 = vld [vmem:[#allocation2 + $0x82] sm:$0x3]
        %v1161 = vld [vmem:[#allocation2 + $0x3] sm:$0xff]
        %v1162 = vld [vmem:[#allocation2 + $0xb] sm:$0xff]
        %v1163 = vld [vmem:[#allocation2 + $0x13] sm:$0xff]
        %v1164 = vld [vmem:[#allocation2 + $0x1b] sm:$0xff]
        %v1165 = vld [vmem:[#allocation2 + $0x23] sm:$0xff]
        %v1166 = vld [vmem:[#allocation2 + $0x2b] sm:$0xff]
        %v1167 = vld [vmem:[#allocation2 + $0x33] sm:$0xff]
        %v1168 = vld [vmem:[#allocation2 + $0x3b] sm:$0xff]
        %v1169 = vld [vmem:[#allocation2 + $0x43] sm:$0xff]
        %v1170 = vld [vmem:[#allocation2 + $0x4b] sm:$0xff]
        %v1171 = vld [vmem:[#allocation2 + $0x53] sm:$0xff]
        %v1172 = vld [vmem:[#allocation2 + $0x5b] sm:$0xff]
        %v1173 = vld [vmem:[#allocation2 + $0x63] sm:$0xff]
        %v1174 = vld [vmem:[#allocation2 + $0x6b] sm:$0xff]
        %v1175 = vld [vmem:[#allocation2 + $0x73] sm:$0xff]
        %v1176 = vld [vmem:[#allocation2 + $0x7b] sm:$0xff]
        %v1177 = vld [vmem:[#allocation2 + $0x83] sm:$0x3]
        %s1178 = scalar_lea.vmem [#allocation4], 384
        %v1179 = vld [vmem:[%s1178] sm:$0xff]
        %v1180 = vld [vmem:[%s1178 + $0x8] sm:$0xff]
        %v1181 = vld [vmem:[%s1178 + $0x10] sm:$0xff]
        %v1182 = vld [vmem:[%s1178 + $0x18] sm:$0xff]
        %v1183 = vld [vmem:[%s1178 + $0x20] sm:$0xff]
        %v1184 = vld [vmem:[%s1178 + $0x28] sm:$0xff]
        %v1185 = vld [vmem:[%s1178 + $0x30] sm:$0xff]
        %v1186 = vld [vmem:[%s1178 + $0x38] sm:$0xff]
        %v1187 = vld [vmem:[%s1178 + $0x40] sm:$0xff]
        %v1188 = vld [vmem:[%s1178 + $0x48] sm:$0xff]
        %v1189 = vld [vmem:[%s1178 + $0x50] sm:$0xff]
        %v1190 = vld [vmem:[%s1178 + $0x58] sm:$0xff]
        %v1191 = vld [vmem:[%s1178 + $0x60] sm:$0xff]
        %v1192 = vld [vmem:[%s1178 + $0x68] sm:$0xff]
        %v1193 = vld [vmem:[%s1178 + $0x70] sm:$0xff]
        %v1194 = vld [vmem:[%s1178 + $0x78] sm:$0xff]
        %v1195 = vld [vmem:[%s1178 + $0x80] sm:$0xff]
        %v1196 = vld [vmem:[%s1178 + $0x88] sm:$0xff]
        %v1197 = vld [vmem:[%s1178 + $0x90] sm:$0xff]
        %v1198 = vld [vmem:[%s1178 + $0x98] sm:$0xff]
        %v1199 = vld [vmem:[%s1178 + $0xa0] sm:$0xff]
        %v1200 = vld [vmem:[%s1178 + $0xa8] sm:$0xff]
        %v1201 = vld [vmem:[%s1178 + $0xb0] sm:$0xff]
        %v1202 = vld [vmem:[%s1178 + $0xb8] sm:$0xff]
        %v1203 = vld [vmem:[%s1178 + $0xc0] sm:$0xff]
        %v1204 = vld [vmem:[%s1178 + $0xc8] sm:$0xff]
        %v1205 = vld [vmem:[%s1178 + $0xd0] sm:$0xff]
        %v1206 = vld [vmem:[%s1178 + $0xd8] sm:$0xff]
        %v1207 = vld [vmem:[%s1178 + $0xe0] sm:$0xff]
        %v1208 = vld [vmem:[%s1178 + $0xe8] sm:$0xff]
        %v1209 = vld [vmem:[%s1178 + $0xf0] sm:$0xff]
        %v1210 = vld [vmem:[%s1178 + $0xf8] sm:$0xff]
        %v1211 = vld [vmem:[%s1178 + $0x100] sm:$0xff]
        %v1212 = vld [vmem:[%s1178 + $0x108] sm:$0xff]
        %v1213 = vld [vmem:[%s1178 + $0x110] sm:$0xff]
        %v1214 = vld [vmem:[%s1178 + $0x118] sm:$0xff]
        %v1215 = vld [vmem:[%s1178 + $0x120] sm:$0xff]
        %v1216 = vld [vmem:[%s1178 + $0x128] sm:$0xff]
        %v1217 = vld [vmem:[%s1178 + $0x130] sm:$0xff]
        %v1218 = vld [vmem:[%s1178 + $0x138] sm:$0xff]
        %v1219 = vld [vmem:[%s1178 + $0x140] sm:$0xff]
        %v1220 = vld [vmem:[%s1178 + $0x148] sm:$0xff]
        %v1221 = vld [vmem:[%s1178 + $0x150] sm:$0xff]
        %v1222 = vld [vmem:[%s1178 + $0x158] sm:$0xff]
        %v1223 = vld [vmem:[%s1178 + $0x160] sm:$0xff]
        %v1224 = vld [vmem:[%s1178 + $0x168] sm:$0xff]
        %v1225 = vld [vmem:[%s1178 + $0x170] sm:$0xff]
        %v1226 = vld [vmem:[%s1178 + $0x178] sm:$0xff]
        %v1227 = vld [vmem:[%s2 + $0x1] sm:$0x1]
        %v1228 = vlaneseq
        %v1229 = vshrl.u32 %v1228, 7
        %v1230 = vsub.s32 0, %v1229
        %v1231 = vrot.slane %v1227, %v1230
        %1232 = vmatprep.subr.mxu0 0.0
        %1233 = vmatpush1.msra.mxu0 %v1179
        %1234 = vmatprep.subr.mxu0 0.0
        %1235 = vmatpush1.msra.mxu0 %v1180
        %1236 = vmatprep.subr.mxu0 0.0
        %1237 = vmatpush1.msra.mxu0 %v1181
        %1238 = vmatprep.subr.mxu0 0.0
        %1239 = vmatpush1.msra.mxu0 %v1182
        %1240 = vmatprep.subr.mxu0 0.0
        %1241 = vmatpush1.msra.mxu0 %v1183
        %1242 = vmatprep.subr.mxu0 0.0
        %1243 = vmatpush1.msra.mxu0 %v1184
        %1244 = vmatprep.subr.mxu0 0.0
        %1245 = vmatpush1.msra.mxu0 %v1185
        %1246 = vmatprep.subr.mxu0 0.0
        %1247 = vmatpush1.msra.mxu0 %v1186
        %1248 = vmatprep.subr.mxu0 0.0
        %1249 = vmatpush1.msra.mxu0 %v1187
        %1250 = vmatprep.subr.mxu0 0.0
        %1251 = vmatpush1.msra.mxu0 %v1188
        %1252 = vmatprep.subr.mxu0 0.0
        %1253 = vmatpush1.msra.mxu0 %v1189
        %1254 = vmatprep.subr.mxu0 0.0
        %1255 = vmatpush1.msra.mxu0 %v1190
        %1256 = vmatprep.subr.mxu0 0.0
        %1257 = vmatpush1.msra.mxu0 %v1191
        %1258 = vmatprep.subr.mxu0 0.0
        %1259 = vmatpush1.msra.mxu0 %v1192
        %1260 = vmatprep.subr.mxu0 0.0
        %1261 = vmatpush1.msra.mxu0 %v1193
        %1262 = vmatprep.subr.mxu0 0.0
        %1263 = vmatpush1.msra.mxu0 %v1194
        %1264 = vmatprep.subr.mxu0 0.0
        %1265 = vmatpush1.msra.mxu0 %v1195
        %1266 = vmatprep.subr.mxu0 0.0
        %1267 = vmatpush1.msra.mxu0 %v1196
        %1268 = vmatprep.subr.mxu0 0.0
        %1269 = vmatpush1.msra.mxu0 %v1197
        %1270 = vmatprep.subr.mxu0 0.0
        %1271 = vmatpush1.msra.mxu0 %v1198
        %1272 = vmatprep.subr.mxu0 0.0
        %1273 = vmatpush1.msra.mxu0 %v1199
        %1274 = vmatprep.subr.mxu0 0.0
        %1275 = vmatpush1.msra.mxu0 %v1200
        %1276 = vmatprep.subr.mxu0 0.0
        %1277 = vmatpush1.msra.mxu0 %v1201
        %1278 = vmatprep.subr.mxu0 0.0
        %1279 = vmatpush1.msra.mxu0 %v1202
        %1280 = vmatprep.subr.mxu0 0.0
        %1281 = vmatpush1.msra.mxu0 %v1203
        %1282 = vmatprep.subr.mxu0 0.0
        %1283 = vmatpush1.msra.mxu0 %v1204
        %1284 = vmatprep.subr.mxu0 0.0
        %1285 = vmatpush1.msra.mxu0 %v1205
        %1286 = vmatprep.subr.mxu0 0.0
        %1287 = vmatpush1.msra.mxu0 %v1206
        %1288 = vmatprep.subr.mxu0 0.0
        %1289 = vmatpush1.msra.mxu0 %v1207
        %1290 = vmatprep.subr.mxu0 0.0
        %1291 = vmatpush1.msra.mxu0 %v1208
        %1292 = vmatprep.subr.mxu0 0.0
        %1293 = vmatpush1.msra.mxu0 %v1209
        %1294 = vmatprep.subr.mxu0 0.0
        %1295 = vmatpush1.msra.mxu0 %v1210
        %1296 = vmatprep.mubr.f32.mxu0 %v1144
        %1297 = vmatmul.mubr.f32.gmra.mrb[0].mxu0 %v1127
        %v1298 = vpop.f32.mrb[0].mxu0
        %v1299 = vadd.f32 %v1231, %v1298
        %v1300 = vpop.f32.mrb[0].mxu0
        %1301 = vmatprep.mubr.f32.mxu0 %v1145
        %1302 = vmatmul.mubr.f32.gmra.mrb[0].mxu0 %v1128
        %v1303 = vpop.f32.mrb[0].mxu0
        %v1304 = vadd.f32 %v1231, %v1303
        %v1305 = vpop.f32.mrb[0].mxu0
        %1306 = vmatprep.mubr.f32.mxu0 %v1146
        %1307 = vmatmul.mubr.f32.gmra.mrb[0].mxu0 %v1129
        %v1308 = vpop.f32.mrb[0].mxu0
        %v1309 = vadd.f32 %v1231, %v1308
        %v1310 = vpop.f32.mrb[0].mxu0
        %1311 = vmatprep.mubr.f32.mxu0 %v1147
        %1312 = vmatmul.mubr.f32.gmra.mrb[0].mxu0 %v1130
        %v1313 = vpop.f32.mrb[0].mxu0
        %v1314 = vadd.f32 %v1231, %v1313
        %v1315 = vpop.f32.mrb[0].mxu0
        %1316 = vmatprep.mubr.f32.mxu0 %v1148
        %1317 = vmatmul.mubr.f32.gmra.mrb[0].mxu0 %v1131
        %v1318 = vpop.f32.mrb[0].mxu0
        %v1319 = vadd.f32 %v1231, %v1318
        %v1320 = vpop.f32.mrb[0].mxu0
        %1321 = vmatprep.mubr.f32.mxu0 %v1149
        %1322 = vmatmul.mubr.f32.gmra.mrb[0].mxu0 %v1132
        %v1323 = vpop.f32.mrb[0].mxu0
        %v1324 = vadd.f32 %v1231, %v1323
        %v1325 = vpop.f32.mrb[0].mxu0
        %1326 = vmatprep.mubr.f32.mxu0 %v1150
        %1327 = vmatmul.mubr.f32.gmra.mrb[0].mxu0 %v1133
        %v1328 = vpop.f32.mrb[0].mxu0
        %v1329 = vadd.f32 %v1231, %v1328
        %v1330 = vpop.f32.mrb[0].mxu0
        %1331 = vmatprep.mubr.f32.mxu0 %v1151
        %1332 = vmatmul.mubr.f32.gmra.mrb[0].mxu0 %v1134
        %v1333 = vpop.f32.mrb[0].mxu0
        %v1334 = vadd.f32 %v1231, %v1333
        %v1335 = vpop.f32.mrb[0].mxu0
        %1336 = vmatprep.mubr.f32.mxu0 %v1152
        %1337 = vmatmul.mubr.f32.gmra.mrb[0].mxu0 %v1135
        %v1338 = vpop.f32.mrb[0].mxu0
        %v1339 = vadd.f32 %v1231, %v1338
        %v1340 = vpop.f32.mrb[0].mxu0
        %1341 = vmatprep.mubr.f32.mxu0 %v1153
        %1342 = vmatmul.mubr.f32.gmra.mrb[0].mxu0 %v1136
        %v1343 = vpop.f32.mrb[0].mxu0
        %v1344 = vadd.f32 %v1231, %v1343
        %v1345 = vpop.f32.mrb[0].mxu0
        %1346 = vmatprep.mubr.f32.mxu0 %v1154
        %1347 = vmatmul.mubr.f32.gmra.mrb[0].mxu0 %v1137
        %v1348 = vpop.f32.mrb[0].mxu0
        %v1349 = vadd.f32 %v1231, %v1348
        %v1350 = vpop.f32.mrb[0].mxu0
        %1351 = vmatprep.mubr.f32.mxu0 %v1155
        %1352 = vmatmul.mubr.f32.gmra.mrb[0].mxu0 %v1138
        %v1353 = vpop.f32.mrb[0].mxu0
        %v1354 = vadd.f32 %v1231, %v1353
        %v1355 = vpop.f32.mrb[0].mxu0
        %1356 = vmatprep.mubr.f32.mxu0 %v1156
        %1357 = vmatmul.mubr.f32.gmra.mrb[0].mxu0 %v1139
        %v1358 = vpop.f32.mrb[0].mxu0
        %v1359 = vadd.f32 %v1231, %v1358
        %v1360 = vpop.f32.mrb[0].mxu0
        %1361 = vmatprep.mubr.f32.mxu0 %v1157
        %1362 = vmatmul.mubr.f32.gmra.mrb[0].mxu0 %v1140
        %v1363 = vpop.f32.mrb[0].mxu0
        %v1364 = vadd.f32 %v1231, %v1363
        %v1365 = vpop.f32.mrb[0].mxu0
        %1366 = vmatprep.mubr.f32.mxu0 %v1158
        %1367 = vmatmul.mubr.f32.gmra.mrb[0].mxu0 %v1141
        %v1368 = vpop.f32.mrb[0].mxu0
        %v1369 = vadd.f32 %v1231, %v1368
        %v1370 = vpop.f32.mrb[0].mxu0
        %1371 = vmatprep.mubr.f32.mxu0 %v1159
        %1372 = vmatmul.mubr.f32.gmra.mrb[0].mxu0 %v1142
        %v1373 = vpop.f32.mrb[0].mxu0
        %v1374 = vadd.f32 %v1231, %v1373
        %v1375 = vpop.f32.mrb[0].mxu0
        %1376 = vmatprep.mubr.f32.mxu0 %v1160
        %1377 = vmatmul.mubr.f32.gmra.mrb[0].mxu0 %v1143
        %v1378 = vpop.f32.mrb[0].mxu0
        %v1379 = vadd.f32 %v1231, %v1378
        %v1380 = vpop.f32.mrb[0].mxu0
        %1381 = vdwg.mxu0
        %1382 = vmatprep.subr.mxu0 0.0
        %1383 = vmatpush1.msra.mxu0 %v1211
        %1384 = vmatprep.subr.mxu0 0.0
        %1385 = vmatpush1.msra.mxu0 %v1212
        %1386 = vmatprep.subr.mxu0 0.0
        %1387 = vmatpush1.msra.mxu0 %v1213
        %1388 = vmatprep.subr.mxu0 0.0
        %1389 = vmatpush1.msra.mxu0 %v1214
        %1390 = vmatprep.subr.mxu0 0.0
        %1391 = vmatpush1.msra.mxu0 %v1215
        %1392 = vmatprep.subr.mxu0 0.0
        %1393 = vmatpush1.msra.mxu0 %v1216
        %1394 = vmatprep.subr.mxu0 0.0
        %1395 = vmatpush1.msra.mxu0 %v1217
        %1396 = vmatprep.subr.mxu0 0.0
        %1397 = vmatpush1.msra.mxu0 %v1218
        %1398 = vmatprep.subr.mxu0 0.0
        %1399 = vmatpush1.msra.mxu0 %v1219
        %1400 = vmatprep.subr.mxu0 0.0
        %1401 = vmatpush1.msra.mxu0 %v1220
        %1402 = vmatprep.subr.mxu0 0.0
        %1403 = vmatpush1.msra.mxu0 %v1221
        %1404 = vmatprep.subr.mxu0 0.0
        %1405 = vmatpush1.msra.mxu0 %v1222
        %1406 = vmatprep.subr.mxu0 0.0
        %1407 = vmatpush1.msra.mxu0 %v1223
        %1408 = vmatprep.subr.mxu0 0.0
        %1409 = vmatpush1.msra.mxu0 %v1224
        %1410 = vmatprep.subr.mxu0 0.0
        %1411 = vmatpush1.msra.mxu0 %v1225
        %1412 = vmatprep.subr.mxu0 0.0
        %1413 = vmatpush1.msra.mxu0 %v1226
        %1414 = vmatprep.subr.mxu0 0.0
        %1415 = vmatpush1.msra.mxu0 0.0
        %1416 = vmatprep.subr.mxu0 0.0
        %1417 = vmatpush1.msra.mxu0 0.0
        %1418 = vmatprep.subr.mxu0 0.0
        %1419 = vmatpush1.msra.mxu0 0.0
        %1420 = vmatprep.subr.mxu0 0.0
        %1421 = vmatpush1.msra.mxu0 0.0
        %1422 = vmatprep.subr.mxu0 0.0
        %1423 = vmatpush1.msra.mxu0 0.0
        %1424 = vmatprep.subr.mxu0 0.0
        %1425 = vmatpush1.msra.mxu0 0.0
        %1426 = vmatprep.subr.mxu0 0.0
        %1427 = vmatpush1.msra.mxu0 0.0
        %1428 = vmatprep.subr.mxu0 0.0
        %1429 = vmatpush1.msra.mxu0 0.0
        %1430 = vmatprep.subr.mxu0 0.0
        %1431 = vmatpush1.msra.mxu0 0.0
        %1432 = vmatprep.subr.mxu0 0.0
        %1433 = vmatpush1.msra.mxu0 0.0
        %1434 = vmatprep.subr.mxu0 0.0
        %1435 = vmatpush1.msra.mxu0 0.0
        %1436 = vmatprep.subr.mxu0 0.0
        %1437 = vmatpush1.msra.mxu0 0.0
        %1438 = vmatprep.subr.mxu0 0.0
        %1439 = vmatpush1.msra.mxu0 0.0
        %1440 = vmatprep.subr.mxu0 0.0
        %1441 = vmatpush1.msra.mxu0 0.0
        %1442 = vmatprep.subr.mxu0 0.0
        %1443 = vmatpush1.msra.mxu0 0.0
        %1444 = vmatprep.subr.mxu0 0.0
        %1445 = vmatpush1.msra.mxu0 0.0
        %1446 = vmatprep.mubr.f32.mxu0 0.0
        %1447 = vmatmul.mubr.f32.gmra.mrb[0].mxu0 %v1161
        %v1448 = vpop.f32.mrb[0].mxu0
        %v1449 = vadd.f32 %v1299, %v1448
        %v1450 = vpop.f32.mrb[0].mxu0
        %1451 = vmatprep.mubr.f32.mxu0 0.0
        %1452 = vmatmul.mubr.f32.gmra.mrb[0].mxu0 %v1162
        %v1453 = vpop.f32.mrb[0].mxu0
        %v1454 = vadd.f32 %v1304, %v1453
        %v1455 = vpop.f32.mrb[0].mxu0
        %1456 = vmatprep.mubr.f32.mxu0 0.0
        %1457 = vmatmul.mubr.f32.gmra.mrb[0].mxu0 %v1163
        %v1458 = vpop.f32.mrb[0].mxu0
        %v1459 = vadd.f32 %v1309, %v1458
        %v1460 = vpop.f32.mrb[0].mxu0
        %1461 = vmatprep.mubr.f32.mxu0 0.0
        %1462 = vmatmul.mubr.f32.gmra.mrb[0].mxu0 %v1164
        %v1463 = vpop.f32.mrb[0].mxu0
        %v1464 = vadd.f32 %v1314, %v1463
        %v1465 = vpop.f32.mrb[0].mxu0
        %1466 = vmatprep.mubr.f32.mxu0 0.0
        %1467 = vmatmul.mubr.f32.gmra.mrb[0].mxu0 %v1165
        %v1468 = vpop.f32.mrb[0].mxu0
        %v1469 = vadd.f32 %v1319, %v1468
        %v1470 = vpop.f32.mrb[0].mxu0
        %1471 = vmatprep.mubr.f32.mxu0 0.0
        %1472 = vmatmul.mubr.f32.gmra.mrb[0].mxu0 %v1166
        %v1473 = vpop.f32.mrb[0].mxu0
        %v1474 = vadd.f32 %v1324, %v1473
        %v1475 = vpop.f32.mrb[0].mxu0
        %1476 = vmatprep.mubr.f32.mxu0 0.0
        %1477 = vmatmul.mubr.f32.gmra.mrb[0].mxu0 %v1167
        %v1478 = vpop.f32.mrb[0].mxu0
        %v1479 = vadd.f32 %v1329, %v1478
        %v1480 = vpop.f32.mrb[0].mxu0
        %1481 = vmatprep.mubr.f32.mxu0 0.0
        %1482 = vmatmul.mubr.f32.gmra.mrb[0].mxu0 %v1168
        %v1483 = vpop.f32.mrb[0].mxu0
        %v1484 = vadd.f32 %v1334, %v1483
        %v1485 = vpop.f32.mrb[0].mxu0
        %1486 = vmatprep.mubr.f32.mxu0 0.0
        %1487 = vmatmul.mubr.f32.gmra.mrb[0].mxu0 %v1169
        %v1488 = vpop.f32.mrb[0].mxu0
        %v1489 = vadd.f32 %v1339, %v1488
        %v1490 = vpop.f32.mrb[0].mxu0
        %1491 = vmatprep.mubr.f32.mxu0 0.0
        %1492 = vmatmul.mubr.f32.gmra.mrb[0].mxu0 %v1170
        %v1493 = vpop.f32.mrb[0].mxu0
        %v1494 = vadd.f32 %v1344, %v1493
        %v1495 = vpop.f32.mrb[0].mxu0
        %1496 = vmatprep.mubr.f32.mxu0 0.0
        %1497 = vmatmul.mubr.f32.gmra.mrb[0].mxu0 %v1171
        %v1498 = vpop.f32.mrb[0].mxu0
        %v1499 = vadd.f32 %v1349, %v1498
        %v1500 = vpop.f32.mrb[0].mxu0
        %1501 = vmatprep.mubr.f32.mxu0 0.0
        %1502 = vmatmul.mubr.f32.gmra.mrb[0].mxu0 %v1172
        %v1503 = vpop.f32.mrb[0].mxu0
        %v1504 = vadd.f32 %v1354, %v1503
        %v1505 = vpop.f32.mrb[0].mxu0
        %1506 = vmatprep.mubr.f32.mxu0 0.0
        %1507 = vmatmul.mubr.f32.gmra.mrb[0].mxu0 %v1173
        %v1508 = vpop.f32.mrb[0].mxu0
        %v1509 = vadd.f32 %v1359, %v1508
        %v1510 = vpop.f32.mrb[0].mxu0
        %1511 = vmatprep.mubr.f32.mxu0 0.0
        %1512 = vmatmul.mubr.f32.gmra.mrb[0].mxu0 %v1174
        %v1513 = vpop.f32.mrb[0].mxu0
        %v1514 = vadd.f32 %v1364, %v1513
        %v1515 = vpop.f32.mrb[0].mxu0
        %1516 = vmatprep.mubr.f32.mxu0 0.0
        %1517 = vmatmul.mubr.f32.gmra.mrb[0].mxu0 %v1175
        %v1518 = vpop.f32.mrb[0].mxu0
        %v1519 = vadd.f32 %v1369, %v1518
        %v1520 = vpop.f32.mrb[0].mxu0
        %1521 = vmatprep.mubr.f32.mxu0 0.0
        %1522 = vmatmul.mubr.f32.gmra.mrb[0].mxu0 %v1176
        %v1523 = vpop.f32.mrb[0].mxu0
        %v1524 = vadd.f32 %v1374, %v1523
        %v1525 = vpop.f32.mrb[0].mxu0
        %1526 = vmatprep.mubr.f32.mxu0 0.0
        %1527 = vmatmul.mubr.f32.gmra.mrb[0].mxu0 %v1177
        %v1528 = vpop.f32.mrb[0].mxu0
        %v1529 = vadd.f32 %v1379, %v1528
        %v1530 = vpop.f32.mrb[0].mxu0
        %1531 = vdwg.mxu0
        %v1532 = vmax.f32 %v1449, 0.0
        %v1533 = vmax.f32 %v1454, 0.0
        %v1534 = vmax.f32 %v1459, 0.0
        %v1535 = vmax.f32 %v1464, 0.0
        %v1536 = vmax.f32 %v1469, 0.0
        %v1537 = vmax.f32 %v1474, 0.0
        %v1538 = vmax.f32 %v1479, 0.0
        %v1539 = vmax.f32 %v1484, 0.0
        %v1540 = vmax.f32 %v1489, 0.0
        %v1541 = vmax.f32 %v1494, 0.0
        %v1542 = vmax.f32 %v1499, 0.0
        %v1543 = vmax.f32 %v1504, 0.0
        %v1544 = vmax.f32 %v1509, 0.0
        %v1545 = vmax.f32 %v1514, 0.0
        %v1546 = vmax.f32 %v1519, 0.0
        %v1547 = vmax.f32 %v1524, 0.0
        %v1548 = vmax.f32 %v1529, 0.0
        %v1549 = vadd.f32 %v1144, %v1532
        %v1550 = vadd.f32 %v1145, %v1533
        %v1551 = vadd.f32 %v1146, %v1534
        %v1552 = vadd.f32 %v1147, %v1535
        %v1553 = vadd.f32 %v1148, %v1536
        %v1554 = vadd.f32 %v1149, %v1537
        %v1555 = vadd.f32 %v1150, %v1538
        %v1556 = vadd.f32 %v1151, %v1539
        %v1557 = vadd.f32 %v1152, %v1540
        %v1558 = vadd.f32 %v1153, %v1541
        %v1559 = vadd.f32 %v1154, %v1542
        %v1560 = vadd.f32 %v1155, %v1543
        %v1561 = vadd.f32 %v1156, %v1544
        %v1562 = vadd.f32 %v1157, %v1545
        %v1563 = vadd.f32 %v1158, %v1546
        %v1564 = vadd.f32 %v1159, %v1547
        %v1565 = vadd.f32 %v1160, %v1548
        %1566 = vadd.xlane.f32.xlu0 %v1549
        %v1567 = vpop.xlane.xlu0 %1566
        %1568 = vadd.xlane.f32.xlu0 %v1550
        %v1569 = vpop.xlane.xlu0 %1568
        %1570 = vadd.xlane.f32.xlu0 %v1551
        %v1571 = vpop.xlane.xlu0 %1570
        %1572 = vadd.xlane.f32.xlu0 %v1552
        %v1573 = vpop.xlane.xlu0 %1572
        %1574 = vadd.xlane.f32.xlu0 %v1553
        %v1575 = vpop.xlane.xlu0 %1574
        %1576 = vadd.xlane.f32.xlu0 %v1554
        %v1577 = vpop.xlane.xlu0 %1576
        %1578 = vadd.xlane.f32.xlu0 %v1555
        %v1579 = vpop.xlane.xlu0 %1578
        %1580 = vadd.xlane.f32.xlu0 %v1556
        %v1581 = vpop.xlane.xlu0 %1580
        %1582 = vadd.xlane.f32.xlu0 %v1557
        %v1583 = vpop.xlane.xlu0 %1582
        %1584 = vadd.xlane.f32.xlu0 %v1558
        %v1585 = vpop.xlane.xlu0 %1584
        %1586 = vadd.xlane.f32.xlu0 %v1559
        %v1587 = vpop.xlane.xlu0 %1586
        %1588 = vadd.xlane.f32.xlu0 %v1560
        %v1589 = vpop.xlane.xlu0 %1588
        %1590 = vadd.xlane.f32.xlu0 %v1561
        %v1591 = vpop.xlane.xlu0 %1590
        %1592 = vadd.xlane.f32.xlu0 %v1562
        %v1593 = vpop.xlane.xlu0 %1592
        %1594 = vadd.xlane.f32.xlu0 %v1563
        %v1595 = vpop.xlane.xlu0 %1594
        %1596 = vadd.xlane.f32.xlu0 %v1564
        %v1597 = vpop.xlane.xlu0 %1596
        %vm1598 = vcmask 1041408
        %v1599 = vsel %vm1598, %v1565, 0.0
        %1600 = vadd.xlane.f32.xlu0 %v1599
        %v1601 = vpop.xlane.xlu0 %1600
        %v1602 = vmul.f32 %v1567, %v772
        %v1603 = vmul.f32 %v1569, %v772
        %v1604 = vmul.f32 %v1571, %v772
        %v1605 = vmul.f32 %v1573, %v772
        %v1606 = vmul.f32 %v1575, %v772
        %v1607 = vmul.f32 %v1577, %v772
        %v1608 = vmul.f32 %v1579, %v772
        %v1609 = vmul.f32 %v1581, %v772
        %v1610 = vmul.f32 %v1583, %v772
        %v1611 = vmul.f32 %v1585, %v772
        %v1612 = vmul.f32 %v1587, %v772
        %v1613 = vmul.f32 %v1589, %v772
        %v1614 = vmul.f32 %v1591, %v772
        %v1615 = vmul.f32 %v1593, %v772
        %v1616 = vmul.f32 %v1595, %v772
        %v1617 = vmul.f32 %v1597, %v772
        %v1618 = vmul.f32 %v1601, %v772
        %v1619 = vsub.f32 %v1549, %v1602
        %v1620 = vsub.f32 %v1550, %v1603
        %v1621 = vsub.f32 %v1551, %v1604
        %v1622 = vsub.f32 %v1552, %v1605
        %v1623 = vsub.f32 %v1553, %v1606
        %v1624 = vsub.f32 %v1554, %v1607
        %v1625 = vsub.f32 %v1555, %v1608
        %v1626 = vsub.f32 %v1556, %v1609
        %v1627 = vsub.f32 %v1557, %v1610
        %v1628 = vsub.f32 %v1558, %v1611
        %v1629 = vsub.f32 %v1559, %v1612
        %v1630 = vsub.f32 %v1560, %v1613
        %v1631 = vsub.f32 %v1561, %v1614
        %v1632 = vsub.f32 %v1562, %v1615
        %v1633 = vsub.f32 %v1563, %v1616
        %v1634 = vsub.f32 %v1564, %v1617
        %v1635 = vsub.f32 %v1565, %v1618
        %v1636 = vmul.f32 %v1619, %v1619
        %v1637 = vmul.f32 %v1620, %v1620
        %v1638 = vmul.f32 %v1621, %v1621
        %v1639 = vmul.f32 %v1622, %v1622
        %v1640 = vmul.f32 %v1623, %v1623
        %v1641 = vmul.f32 %v1624, %v1624
        %v1642 = vmul.f32 %v1625, %v1625
        %v1643 = vmul.f32 %v1626, %v1626
        %v1644 = vmul.f32 %v1627, %v1627
        %v1645 = vmul.f32 %v1628, %v1628
        %v1646 = vmul.f32 %v1629, %v1629
        %v1647 = vmul.f32 %v1630, %v1630
        %v1648 = vmul.f32 %v1631, %v1631
        %v1649 = vmul.f32 %v1632, %v1632
        %v1650 = vmul.f32 %v1633, %v1633
        %v1651 = vmul.f32 %v1634, %v1634
        %v1652 = vmul.f32 %v1635, %v1635
        %1653 = vadd.xlane.f32.xlu0 %v1636
        %v1654 = vpop.xlane.xlu0 %1653
        %1655 = vadd.xlane.f32.xlu0 %v1637
        %v1656 = vpop.xlane.xlu0 %1655
        %1657 = vadd.xlane.f32.xlu0 %v1638
        %v1658 = vpop.xlane.xlu0 %1657
        %1659 = vadd.xlane.f32.xlu0 %v1639
        %v1660 = vpop.xlane.xlu0 %1659
        %1661 = vadd.xlane.f32.xlu0 %v1640
        %v1662 = vpop.xlane.xlu0 %1661
        %1663 = vadd.xlane.f32.xlu0 %v1641
        %v1664 = vpop.xlane.xlu0 %1663
        %1665 = vadd.xlane.f32.xlu0 %v1642
        %v1666 = vpop.xlane.xlu0 %1665
        %1667 = vadd.xlane.f32.xlu0 %v1643
        %v1668 = vpop.xlane.xlu0 %1667
        %1669 = vadd.xlane.f32.xlu0 %v1644
        %v1670 = vpop.xlane.xlu0 %1669
        %1671 = vadd.xlane.f32.xlu0 %v1645
        %v1672 = vpop.xlane.xlu0 %1671
        %1673 = vadd.xlane.f32.xlu0 %v1646
        %v1674 = vpop.xlane.xlu0 %1673
        %1675 = vadd.xlane.f32.xlu0 %v1647
        %v1676 = vpop.xlane.xlu0 %1675
        %1677 = vadd.xlane.f32.xlu0 %v1648
        %v1678 = vpop.xlane.xlu0 %1677
        %1679 = vadd.xlane.f32.xlu0 %v1649
        %v1680 = vpop.xlane.xlu0 %1679
        %1681 = vadd.xlane.f32.xlu0 %v1650
        %v1682 = vpop.xlane.xlu0 %1681
        %1683 = vadd.xlane.f32.xlu0 %v1651
        %v1684 = vpop.xlane.xlu0 %1683
        %v1685 = vsel %vm1598, %v1652, 0.0
        %1686 = vadd.xlane.f32.xlu0 %v1685
        %v1687 = vpop.xlane.xlu0 %1686
        %v1688 = vmul.f32 %v1654, %v772
        %v1689 = vmul.f32 %v1656, %v772
        %v1690 = vmul.f32 %v1658, %v772
        %v1691 = vmul.f32 %v1660, %v772
        %v1692 = vmul.f32 %v1662, %v772
        %v1693 = vmul.f32 %v1664, %v772
        %v1694 = vmul.f32 %v1666, %v772
        %v1695 = vmul.f32 %v1668, %v772
        %v1696 = vmul.f32 %v1670, %v772
        %v1697 = vmul.f32 %v1672, %v772
        %v1698 = vmul.f32 %v1674, %v772
        %v1699 = vmul.f32 %v1676, %v772
        %v1700 = vmul.f32 %v1678, %v772
        %v1701 = vmul.f32 %v1680, %v772
        %v1702 = vmul.f32 %v1682, %v772
        %v1703 = vmul.f32 %v1684, %v772
        %v1704 = vmul.f32 %v1687, %v772
        %v1705 = vadd.f32 %v1688, 1e-12
        %v1706 = vadd.f32 %v1689, 1e-12
        %v1707 = vadd.f32 %v1690, 1e-12
        %v1708 = vadd.f32 %v1691, 1e-12
        %v1709 = vadd.f32 %v1692, 1e-12
        %v1710 = vadd.f32 %v1693, 1e-12
        %v1711 = vadd.f32 %v1694, 1e-12
        %v1712 = vadd.f32 %v1695, 1e-12
        %v1713 = vadd.f32 %v1696, 1e-12
        %v1714 = vadd.f32 %v1697, 1e-12
        %v1715 = vadd.f32 %v1698, 1e-12
        %v1716 = vadd.f32 %v1699, 1e-12
        %v1717 = vadd.f32 %v1700, 1e-12
        %v1718 = vadd.f32 %v1701, 1e-12
        %v1719 = vadd.f32 %v1702, 1e-12
        %v1720 = vadd.f32 %v1703, 1e-12
        %v1721 = vadd.f32 %v1704, 1e-12
        %v1722 = vrsqrt.pop %v1705
        %v1723 = vrsqrt.pop %v1706
        %v1724 = vrsqrt.pop %v1707
        %v1725 = vrsqrt.pop %v1708
        %v1726 = vrsqrt.pop %v1709
        %v1727 = vrsqrt.pop %v1710
        %v1728 = vrsqrt.pop %v1711
        %v1729 = vrsqrt.pop %v1712
        %v1730 = vrsqrt.pop %v1713
        %v1731 = vrsqrt.pop %v1714
        %v1732 = vrsqrt.pop %v1715
        %v1733 = vrsqrt.pop %v1716
        %v1734 = vrsqrt.pop %v1717
        %v1735 = vrsqrt.pop %v1718
        %v1736 = vrsqrt.pop %v1719
        %v1737 = vrsqrt.pop %v1720
        %v1738 = vrsqrt.pop %v1721
        %v1739 = vmul.f32 %v1619, %v1722
        %v1740 = vmul.f32 %v1620, %v1723
        %v1741 = vmul.f32 %v1621, %v1724
        %v1742 = vmul.f32 %v1622, %v1725
        %v1743 = vmul.f32 %v1623, %v1726
        %v1744 = vmul.f32 %v1624, %v1727
        %v1745 = vmul.f32 %v1625, %v1728
        %v1746 = vmul.f32 %v1626, %v1729
        %v1747 = vmul.f32 %v1627, %v1730
        %v1748 = vmul.f32 %v1628, %v1731
        %v1749 = vmul.f32 %v1629, %v1732
        %v1750 = vmul.f32 %v1630, %v1733
        %v1751 = vmul.f32 %v1631, %v1734
        %v1752 = vmul.f32 %v1632, %v1735
        %v1753 = vmul.f32 %v1633, %v1736
        %v1754 = vmul.f32 %v1634, %v1737
        %v1755 = vmul.f32 %v1635, %v1738
        %v1756 = vld [vmem:[%s3 + $0x1] sm:$0x1]
        %v1757 = vlaneseq
        %v1758 = vshrl.u32 %v1757, 7
        %v1759 = vsub.s32 0, %v1758
        %v1760 = vrot.slane %v1756, %v1759
        %v1761 = vmul.f32 %v1760, %v1739
        %v1762 = vmul.f32 %v1760, %v1740
        %v1763 = vmul.f32 %v1760, %v1741
        %v1764 = vmul.f32 %v1760, %v1742
        %v1765 = vmul.f32 %v1760, %v1743
        %v1766 = vmul.f32 %v1760, %v1744
        %v1767 = vmul.f32 %v1760, %v1745
        %v1768 = vmul.f32 %v1760, %v1746
        %v1769 = vmul.f32 %v1760, %v1747
        %v1770 = vmul.f32 %v1760, %v1748
        %v1771 = vmul.f32 %v1760, %v1749
        %v1772 = vmul.f32 %v1760, %v1750
        %v1773 = vmul.f32 %v1760, %v1751
        %v1774 = vmul.f32 %v1760, %v1752
        %v1775 = vmul.f32 %v1760, %v1753
        %v1776 = vmul.f32 %v1760, %v1754
        %v1777 = vmul.f32 %v1760, %v1755
        %v1778 = vld [vmem:[%s4 + $0x1] sm:$0x1]
        %v1779 = vlaneseq
        %v1780 = vshrl.u32 %v1779, 7
        %v1781 = vsub.s32 0, %v1780
        %v1782 = vrot.slane %v1778, %v1781
        %v1783 = vadd.f32 %v1761, %v1782
        %v1784 = vadd.f32 %v1762, %v1782
        %v1785 = vadd.f32 %v1763, %v1782
        %v1786 = vadd.f32 %v1764, %v1782
        %v1787 = vadd.f32 %v1765, %v1782
        %v1788 = vadd.f32 %v1766, %v1782
        %v1789 = vadd.f32 %v1767, %v1782
        %v1790 = vadd.f32 %v1768, %v1782
        %v1791 = vadd.f32 %v1769, %v1782
        %v1792 = vadd.f32 %v1770, %v1782
        %v1793 = vadd.f32 %v1771, %v1782
        %v1794 = vadd.f32 %v1772, %v1782
        %v1795 = vadd.f32 %v1773, %v1782
        %v1796 = vadd.f32 %v1774, %v1782
        %v1797 = vadd.f32 %v1775, %v1782
        %v1798 = vadd.f32 %v1776, %v1782
        %v1799 = vadd.f32 %v1777, %v1782
        %s1800 = sadd.s32 %s207, 4294967295
        %v1801 = vstv %s1800
        %v1802 = vadd.s32 %v1801, %v973
        %v1803 = vadd.s32 %v1801, %v974
        %v1804 = vadd.s32 %v1801, %v975
        %v1805 = vadd.s32 %v1801, %v976
        %v1806 = vadd.s32 %v1801, %v977
        %v1807 = vadd.s32 %v1801, %v978
        %v1808 = vadd.s32 %v1801, %v979
        %v1809 = vadd.s32 %v1801, %v980
        %v1810 = vadd.s32 %v1801, %v981
        %v1811 = vadd.s32 %v1801, %v982
        %v1812 = vadd.s32 %v1801, %v983
        %v1813 = vadd.s32 %v1801, %v984
        %v1814 = vadd.s32 %v1801, %v985
        %v1815 = vadd.s32 %v1801, %v986
        %v1816 = vadd.s32 %v1801, %v987
        %v1817 = vadd.s32 %v1801, %v988
        %v1818 = vadd.s32 %v1801, %v989
        %vm1819 = vcmp.ge.s32.totalorder %v1802, 0
        %vm1820 = vcmp.ge.s32.totalorder %v1803, 0
        %vm1821 = vcmp.ge.s32.totalorder %v1804, 0
        %vm1822 = vcmp.ge.s32.totalorder %v1805, 0
        %vm1823 = vcmp.ge.s32.totalorder %v1806, 0
        %vm1824 = vcmp.ge.s32.totalorder %v1807, 0
        %vm1825 = vcmp.ge.s32.totalorder %v1808, 0
        %vm1826 = vcmp.ge.s32.totalorder %v1809, 0
        %vm1827 = vcmp.ge.s32.totalorder %v1810, 0
        %vm1828 = vcmp.ge.s32.totalorder %v1811, 0
        %vm1829 = vcmp.ge.s32.totalorder %v1812, 0
        %vm1830 = vcmp.ge.s32.totalorder %v1813, 0
        %vm1831 = vcmp.ge.s32.totalorder %v1814, 0
        %vm1832 = vcmp.ge.s32.totalorder %v1815, 0
        %vm1833 = vcmp.ge.s32.totalorder %v1816, 0
        %vm1834 = vcmp.ge.s32.totalorder %v1817, 0
        %vm1835 = vcmp.ge.s32.totalorder %v1818, 0
        %vm1836 = vcmp.lt.s32.totalorder %v1802, 256
        %vm1837 = vcmp.lt.s32.totalorder %v1803, 256
        %vm1838 = vcmp.lt.s32.totalorder %v1804, 256
        %vm1839 = vcmp.lt.s32.totalorder %v1805, 256
        %vm1840 = vcmp.lt.s32.totalorder %v1806, 256
        %vm1841 = vcmp.lt.s32.totalorder %v1807, 256
        %vm1842 = vcmp.lt.s32.totalorder %v1808, 256
        %vm1843 = vcmp.lt.s32.totalorder %v1809, 256
        %vm1844 = vcmp.lt.s32.totalorder %v1810, 256
        %vm1845 = vcmp.lt.s32.totalorder %v1811, 256
        %vm1846 = vcmp.lt.s32.totalorder %v1812, 256
        %vm1847 = vcmp.lt.s32.totalorder %v1813, 256
        %vm1848 = vcmp.lt.s32.totalorder %v1814, 256
        %vm1849 = vcmp.lt.s32.totalorder %v1815, 256
        %vm1850 = vcmp.lt.s32.totalorder %v1816, 256
        %vm1851 = vcmp.lt.s32.totalorder %v1817, 256
        %vm1852 = vcmp.lt.s32.totalorder %v1818, 256
        %vm1853 = vmand %vm1819, %vm1836
        %vm1854 = vmand %vm1820, %vm1837
        %vm1855 = vmand %vm1821, %vm1838
        %vm1856 = vmand %vm1822, %vm1839
        %vm1857 = vmand %vm1823, %vm1840
        %vm1858 = vmand %vm1824, %vm1841
        %vm1859 = vmand %vm1825, %vm1842
        %vm1860 = vmand %vm1826, %vm1843
        %vm1861 = vmand %vm1827, %vm1844
        %vm1862 = vmand %vm1828, %vm1845
        %vm1863 = vmand %vm1829, %vm1846
        %vm1864 = vmand %vm1830, %vm1847
        %vm1865 = vmand %vm1831, %vm1848
        %vm1866 = vmand %vm1832, %vm1849
        %vm1867 = vmand %vm1833, %vm1850
        %vm1868 = vmand %vm1834, %vm1851
        %vm1869 = vmand %vm1835, %vm1852
        %v1870 = vsel %vm1853, 1, 0
        %v1871 = vsel %vm1854, 1, 0
        %v1872 = vsel %vm1855, 1, 0
        %v1873 = vsel %vm1856, 1, 0
        %v1874 = vsel %vm1857, 1, 0
        %v1875 = vsel %vm1858, 1, 0
        %v1876 = vsel %vm1859, 1, 0
        %v1877 = vsel %vm1860, 1, 0
        %v1878 = vsel %vm1861, 1, 0
        %v1879 = vsel %vm1862, 1, 0
        %v1880 = vsel %vm1863, 1, 0
        %v1881 = vsel %vm1864, 1, 0
        %v1882 = vsel %vm1865, 1, 0
        %v1883 = vsel %vm1866, 1, 0
        %v1884 = vsel %vm1867, 1, 0
        %v1885 = vsel %vm1868, 1, 0
        %v1886 = vsel %vm1869, 1, 0
        %vm1887 = vcmp.eq.s32.totalorder %v1870, 1
        %vm1888 = vcmp.eq.s32.totalorder %v1871, 1
        %vm1889 = vcmp.eq.s32.totalorder %v1872, 1
        %vm1890 = vcmp.eq.s32.totalorder %v1873, 1
        %vm1891 = vcmp.eq.s32.totalorder %v1874, 1
        %vm1892 = vcmp.eq.s32.totalorder %v1875, 1
        %vm1893 = vcmp.eq.s32.totalorder %v1876, 1
        %vm1894 = vcmp.eq.s32.totalorder %v1877, 1
        %vm1895 = vcmp.eq.s32.totalorder %v1878, 1
        %vm1896 = vcmp.eq.s32.totalorder %v1879, 1
        %vm1897 = vcmp.eq.s32.totalorder %v1880, 1
        %vm1898 = vcmp.eq.s32.totalorder %v1881, 1
        %vm1899 = vcmp.eq.s32.totalorder %v1882, 1
        %vm1900 = vcmp.eq.s32.totalorder %v1883, 1
        %vm1901 = vcmp.eq.s32.totalorder %v1884, 1
        %vm1902 = vcmp.eq.s32.totalorder %v1885, 1
        %vm1903 = vcmp.eq.s32.totalorder %v1886, 1
        %v1904 = vsel %vm1887, %v1783, 0.0
        %v1905 = vsel %vm1888, %v1784, 0.0
        %v1906 = vsel %vm1889, %v1785, 0.0
        %v1907 = vsel %vm1890, %v1786, 0.0
        %v1908 = vsel %vm1891, %v1787, 0.0
        %v1909 = vsel %vm1892, %v1788, 0.0
        %v1910 = vsel %vm1893, %v1789, 0.0
        %v1911 = vsel %vm1894, %v1790, 0.0
        %v1912 = vsel %vm1895, %v1791, 0.0
        %v1913 = vsel %vm1896, %v1792, 0.0
        %v1914 = vsel %vm1897, %v1793, 0.0
        %v1915 = vsel %vm1898, %v1794, 0.0
        %v1916 = vsel %vm1899, %v1795, 0.0
        %v1917 = vsel %vm1900, %v1796, 0.0
        %v1918 = vsel %vm1901, %v1797, 0.0
        %v1919 = vsel %vm1902, %v1798, 0.0
        %v1920 = vsel %vm1903, %v1799, 0.0
        %1921 = vst [vmem:[#allocation2 + $0x2] sm:$0xff] %v1904
        %1922 = vst [vmem:[#allocation2 + $0xa] sm:$0xff] %v1905
        %1923 = vst [vmem:[#allocation2 + $0x12] sm:$0xff] %v1906
        %1924 = vst [vmem:[#allocation2 + $0x1a] sm:$0xff] %v1907
        %1925 = vst [vmem:[#allocation2 + $0x22] sm:$0xff] %v1908
        %1926 = vst [vmem:[#allocation2 + $0x2a] sm:$0xff] %v1909
        %1927 = vst [vmem:[#allocation2 + $0x32] sm:$0xff] %v1910
        %1928 = vst [vmem:[#allocation2 + $0x3a] sm:$0xff] %v1911
        %1929 = vst [vmem:[#allocation2 + $0x42] sm:$0xff] %v1912
        %1930 = vst [vmem:[#allocation2 + $0x4a] sm:$0xff] %v1913
        %1931 = vst [vmem:[#allocation2 + $0x52] sm:$0xff] %v1914
        %1932 = vst [vmem:[#allocation2 + $0x5a] sm:$0xff] %v1915
        %1933 = vst [vmem:[#allocation2 + $0x62] sm:$0xff] %v1916
        %1934 = vst [vmem:[#allocation2 + $0x6a] sm:$0xff] %v1917
        %1935 = vst [vmem:[#allocation2 + $0x72] sm:$0xff] %v1918
        %1936 = vst [vmem:[#allocation2 + $0x7a] sm:$0xff] %v1919
        %1937 = vst [vmem:[#allocation2 + $0x82] sm:$0x3] %v1920
        %v1938 = vld [vmem:[#allocation2 + $0x2] sm:$0xff]
        %v1939 = vld [vmem:[#allocation2 + $0xa] sm:$0xff]
        %v1940 = vld [vmem:[#allocation2 + $0x12] sm:$0xff]
        %v1941 = vld [vmem:[#allocation2 + $0x1a] sm:$0xff]
        %v1942 = vld [vmem:[#allocation2 + $0x22] sm:$0xff]
        %v1943 = vld [vmem:[#allocation2 + $0x2a] sm:$0xff]
        %v1944 = vld [vmem:[#allocation2 + $0x32] sm:$0xff]
        %v1945 = vld [vmem:[#allocation2 + $0x3a] sm:$0xff]
        %v1946 = vld [vmem:[#allocation2 + $0x42] sm:$0xff]
        %v1947 = vld [vmem:[#allocation2 + $0x4a] sm:$0xff]
        %v1948 = vld [vmem:[#allocation2 + $0x52] sm:$0xff]
        %v1949 = vld [vmem:[#allocation2 + $0x5a] sm:$0xff]
        %v1950 = vld [vmem:[#allocation2 + $0x62] sm:$0xff]
        %v1951 = vld [vmem:[#allocation2 + $0x6a] sm:$0xff]
        %v1952 = vld [vmem:[#allocation2 + $0x72] sm:$0xff]
        %v1953 = vld [vmem:[#allocation2 + $0x7a] sm:$0xff]
        %v1954 = vld [vmem:[#allocation2 + $0x3] sm:$0xff]
        %v1955 = vld [vmem:[#allocation2 + $0xb] sm:$0xff]
        %v1956 = vld [vmem:[#allocation2 + $0x13] sm:$0xff]
        %v1957 = vld [vmem:[#allocation2 + $0x1b] sm:$0xff]
        %v1958 = vld [vmem:[#allocation2 + $0x23] sm:$0xff]
        %v1959 = vld [vmem:[#allocation2 + $0x2b] sm:$0xff]
        %v1960 = vld [vmem:[#allocation2 + $0x33] sm:$0xff]
        %v1961 = vld [vmem:[#allocation2 + $0x3b] sm:$0xff]
        %v1962 = vld [vmem:[#allocation2 + $0x43] sm:$0xff]
        %v1963 = vld [vmem:[#allocation2 + $0x4b] sm:$0xff]
        %v1964 = vld [vmem:[#allocation2 + $0x53] sm:$0xff]
        %v1965 = vld [vmem:[#allocation2 + $0x5b] sm:$0xff]
        %v1966 = vld [vmem:[#allocation2 + $0x63] sm:$0xff]
        %v1967 = vld [vmem:[#allocation2 + $0x6b] sm:$0xff]
        %v1968 = vld [vmem:[#allocation2 + $0x73] sm:$0xff]
        %v1969 = vld [vmem:[#allocation2 + $0x7b] sm:$0xff]
        %v1970 = vld [vmem:[#allocation2 + $0x4] sm:$0xff]
        %v1971 = vld [vmem:[#allocation2 + $0xc] sm:$0xff]
        %v1972 = vld [vmem:[#allocation2 + $0x14] sm:$0xff]
        %v1973 = vld [vmem:[#allocation2 + $0x1c] sm:$0xff]
        %v1974 = vld [vmem:[#allocation2 + $0x24] sm:$0xff]
        %v1975 = vld [vmem:[#allocation2 + $0x2c] sm:$0xff]
        %v1976 = vld [vmem:[#allocation2 + $0x34] sm:$0xff]
        %v1977 = vld [vmem:[#allocation2 + $0x3c] sm:$0xff]
        %v1978 = vld [vmem:[#allocation2 + $0x44] sm:$0xff]
        %v1979 = vld [vmem:[#allocation2 + $0x4c] sm:$0xff]
        %v1980 = vld [vmem:[#allocation2 + $0x54] sm:$0xff]
        %v1981 = vld [vmem:[#allocation2 + $0x5c] sm:$0xff]
        %v1982 = vld [vmem:[#allocation2 + $0x64] sm:$0xff]
        %v1983 = vld [vmem:[#allocation2 + $0x6c] sm:$0xff]
        %v1984 = vld [vmem:[#allocation2 + $0x74] sm:$0xff]
        %v1985 = vld [vmem:[#allocation2 + $0x7c] sm:$0xff]
        %s1986 = scalar_lea.vmem [#allocation4], 768
        %v1987 = vld [vmem:[%s1986] sm:$0xff]
        %v1988 = vld [vmem:[%s1986 + $0x8] sm:$0xff]
        %v1989 = vld [vmem:[%s1986 + $0x10] sm:$0xff]
        %v1990 = vld [vmem:[%s1986 + $0x18] sm:$0xff]
        %v1991 = vld [vmem:[%s1986 + $0x20] sm:$0xff]
        %v1992 = vld [vmem:[%s1986 + $0x28] sm:$0xff]
        %v1993 = vld [vmem:[%s1986 + $0x30] sm:$0xff]
        %v1994 = vld [vmem:[%s1986 + $0x38] sm:$0xff]
        %v1995 = vld [vmem:[%s1986 + $0x40] sm:$0xff]
        %v1996 = vld [vmem:[%s1986 + $0x48] sm:$0xff]
        %v1997 = vld [vmem:[%s1986 + $0x50] sm:$0xff]
        %v1998 = vld [vmem:[%s1986 + $0x58] sm:$0xff]
        %v1999 = vld [vmem:[%s1986 + $0x60] sm:$0xff]
        %v2000 = vld [vmem:[%s1986 + $0x68] sm:$0xff]
        %v2001 = vld [vmem:[%s1986 + $0x70] sm:$0xff]
        %v2002 = vld [vmem:[%s1986 + $0x78] sm:$0xff]
        %v2003 = vld [vmem:[%s1986 + $0x80] sm:$0xff]
        %v2004 = vld [vmem:[%s1986 + $0x88] sm:$0xff]
        %v2005 = vld [vmem:[%s1986 + $0x90] sm:$0xff]
        %v2006 = vld [vmem:[%s1986 + $0x98] sm:$0xff]
        %v2007 = vld [vmem:[%s1986 + $0xa0] sm:$0xff]
        %v2008 = vld [vmem:[%s1986 + $0xa8] sm:$0xff]
        %v2009 = vld [vmem:[%s1986 + $0xb0] sm:$0xff]
        %v2010 = vld [vmem:[%s1986 + $0xb8] sm:$0xff]
        %v2011 = vld [vmem:[%s1986 + $0xc0] sm:$0xff]
        %v2012 = vld [vmem:[%s1986 + $0xc8] sm:$0xff]
        %v2013 = vld [vmem:[%s1986 + $0xd0] sm:$0xff]
        %v2014 = vld [vmem:[%s1986 + $0xd8] sm:$0xff]
        %v2015 = vld [vmem:[%s1986 + $0xe0] sm:$0xff]
        %v2016 = vld [vmem:[%s1986 + $0xe8] sm:$0xff]
        %v2017 = vld [vmem:[%s1986 + $0xf0] sm:$0xff]
        %v2018 = vld [vmem:[%s1986 + $0xf8] sm:$0xff]
        %v2019 = vld [vmem:[%s1986 + $0x100] sm:$0xff]
        %v2020 = vld [vmem:[%s1986 + $0x108] sm:$0xff]
        %v2021 = vld [vmem:[%s1986 + $0x110] sm:$0xff]
        %v2022 = vld [vmem:[%s1986 + $0x118] sm:$0xff]
        %v2023 = vld [vmem:[%s1986 + $0x120] sm:$0xff]
        %v2024 = vld [vmem:[%s1986 + $0x128] sm:$0xff]
        %v2025 = vld [vmem:[%s1986 + $0x130] sm:$0xff]
        %v2026 = vld [vmem:[%s1986 + $0x138] sm:$0xff]
        %v2027 = vld [vmem:[%s1986 + $0x140] sm:$0xff]
        %v2028 = vld [vmem:[%s1986 + $0x148] sm:$0xff]
        %v2029 = vld [vmem:[%s1986 + $0x150] sm:$0xff]
        %v2030 = vld [vmem:[%s1986 + $0x158] sm:$0xff]
        %v2031 = vld [vmem:[%s1986 + $0x160] sm:$0xff]
        %v2032 = vld [vmem:[%s1986 + $0x168] sm:$0xff]
        %v2033 = vld [vmem:[%s1986 + $0x170] sm:$0xff]
        %v2034 = vld [vmem:[%s1986 + $0x178] sm:$0xff]
        %v2035 = vld [vmem:[%s2 + $0x2] sm:$0x1]
        %v2036 = vlaneseq
        %v2037 = vshrl.u32 %v2036, 7
        %v2038 = vsub.s32 0, %v2037
        %v2039 = vrot.slane %v2035, %v2038
        %2040 = vmatprep.subr.mxu0 0.0
        %2041 = vmatpush1.msra.mxu0 %v1987
        %2042 = vmatprep.subr.mxu0 0.0
        %2043 = vmatpush1.msra.mxu0 %v1988
        %2044 = vmatprep.subr.mxu0 0.0
        %2045 = vmatpush1.msra.mxu0 %v1989
        %2046 = vmatprep.subr.mxu0 0.0
        %2047 = vmatpush1.msra.mxu0 %v1990
        %2048 = vmatprep.subr.mxu0 0.0
        %2049 = vmatpush1.msra.mxu0 %v1991
        %2050 = vmatprep.subr.mxu0 0.0
        %2051 = vmatpush1.msra.mxu0 %v1992
        %2052 = vmatprep.subr.mxu0 0.0
        %2053 = vmatpush1.msra.mxu0 %v1993
        %2054 = vmatprep.subr.mxu0 0.0
        %2055 = vmatpush1.msra.mxu0 %v1994
        %2056 = vmatprep.subr.mxu0 0.0
        %2057 = vmatpush1.msra.mxu0 %v1995
        %2058 = vmatprep.subr.mxu0 0.0
        %2059 = vmatpush1.msra.mxu0 %v1996
        %2060 = vmatprep.subr.mxu0 0.0
        %2061 = vmatpush1.msra.mxu0 %v1997
        %2062 = vmatprep.subr.mxu0 0.0
        %2063 = vmatpush1.msra.mxu0 %v1998
        %2064 = vmatprep.subr.mxu0 0.0
        %2065 = vmatpush1.msra.mxu0 %v1999
        %2066 = vmatprep.subr.mxu0 0.0
        %2067 = vmatpush1.msra.mxu0 %v2000
        %2068 = vmatprep.subr.mxu0 0.0
        %2069 = vmatpush1.msra.mxu0 %v2001
        %2070 = vmatprep.subr.mxu0 0.0
        %2071 = vmatpush1.msra.mxu0 %v2002
        %2072 = vmatprep.subr.mxu0 0.0
        %2073 = vmatpush1.msra.mxu0 %v2003
        %2074 = vmatprep.subr.mxu0 0.0
        %2075 = vmatpush1.msra.mxu0 %v2004
        %2076 = vmatprep.subr.mxu0 0.0
        %2077 = vmatpush1.msra.mxu0 %v2005
        %2078 = vmatprep.subr.mxu0 0.0
        %2079 = vmatpush1.msra.mxu0 %v2006
        %2080 = vmatprep.subr.mxu0 0.0
        %2081 = vmatpush1.msra.mxu0 %v2007
        %2082 = vmatprep.subr.mxu0 0.0
        %2083 = vmatpush1.msra.mxu0 %v2008
        %2084 = vmatprep.subr.mxu0 0.0
        %2085 = vmatpush1.msra.mxu0 %v2009
        %2086 = vmatprep.subr.mxu0 0.0
        %2087 = vmatpush1.msra.mxu0 %v2010
        %2088 = vmatprep.subr.mxu0 0.0
        %2089 = vmatpush1.msra.mxu0 %v2011
        %2090 = vmatprep.subr.mxu0 0.0
        %2091 = vmatpush1.msra.mxu0 %v2012
        %2092 = vmatprep.subr.mxu0 0.0
        %2093 = vmatpush1.msra.mxu0 %v2013
        %2094 = vmatprep.subr.mxu0 0.0
        %2095 = vmatpush1.msra.mxu0 %v2014
        %2096 = vmatprep.subr.mxu0 0.0
        %2097 = vmatpush1.msra.mxu0 %v2015
        %2098 = vmatprep.subr.mxu0 0.0
        %2099 = vmatpush1.msra.mxu0 %v2016
        %2100 = vmatprep.subr.mxu0 0.0
        %2101 = vmatpush1.msra.mxu0 %v2017
        %2102 = vmatprep.subr.mxu0 0.0
        %2103 = vmatpush1.msra.mxu0 %v2018
        %2104 = vmatprep.mubr.f32.mxu0 %v1954
        %2105 = vmatmul.mubr.f32.gmra.mrb[0].mxu0 %v1938
        %v2106 = vpop.f32.mrb[0].mxu0
        %v2107 = vadd.f32 %v2039, %v2106
        %v2108 = vpop.f32.mrb[0].mxu0
        %2109 = vmatprep.mubr.f32.mxu0 %v1955
        %2110 = vmatmul.mubr.f32.gmra.mrb[0].mxu0 %v1939
        %v2111 = vpop.f32.mrb[0].mxu0
        %v2112 = vadd.f32 %v2039, %v2111
        %v2113 = vpop.f32.mrb[0].mxu0
        %2114 = vmatprep.mubr.f32.mxu0 %v1956
        %2115 = vmatmul.mubr.f32.gmra.mrb[0].mxu0 %v1940
        %v2116 = vpop.f32.mrb[0].mxu0
        %v2117 = vadd.f32 %v2039, %v2116
        %v2118 = vpop.f32.mrb[0].mxu0
        %2119 = vmatprep.mubr.f32.mxu0 %v1957
        %2120 = vmatmul.mubr.f32.gmra.mrb[0].mxu0 %v1941
        %v2121 = vpop.f32.mrb[0].mxu0
        %v2122 = vadd.f32 %v2039, %v2121
        %v2123 = vpop.f32.mrb[0].mxu0
        %2124 = vmatprep.mubr.f32.mxu0 %v1958
        %2125 = vmatmul.mubr.f32.gmra.mrb[0].mxu0 %v1942
        %v2126 = vpop.f32.mrb[0].mxu0
        %v2127 = vadd.f32 %v2039, %v2126
        %v2128 = vpop.f32.mrb[0].mxu0
        %2129 = vmatprep.mubr.f32.mxu0 %v1959
        %2130 = vmatmul.mubr.f32.gmra.mrb[0].mxu0 %v1943
        %v2131 = vpop.f32.mrb[0].mxu0
        %v2132 = vadd.f32 %v2039, %v2131
        %v2133 = vpop.f32.mrb[0].mxu0
        %2134 = vmatprep.mubr.f32.mxu0 %v1960
        %2135 = vmatmul.mubr.f32.gmra.mrb[0].mxu0 %v1944
        %v2136 = vpop.f32.mrb[0].mxu0
        %v2137 = vadd.f32 %v2039, %v2136
        %v2138 = vpop.f32.mrb[0].mxu0
        %2139 = vmatprep.mubr.f32.mxu0 %v1961
        %2140 = vmatmul.mubr.f32.gmra.mrb[0].mxu0 %v1945
        %v2141 = vpop.f32.mrb[0].mxu0
        %v2142 = vadd.f32 %v2039, %v2141
        %v2143 = vpop.f32.mrb[0].mxu0
        %2144 = vmatprep.mubr.f32.mxu0 %v1962
        %2145 = vmatmul.mubr.f32.gmra.mrb[0].mxu0 %v1946
        %v2146 = vpop.f32.mrb[0].mxu0
        %v2147 = vadd.f32 %v2039, %v2146
        %v2148 = vpop.f32.mrb[0].mxu0
        %2149 = vmatprep.mubr.f32.mxu0 %v1963
        %2150 = vmatmul.mubr.f32.gmra.mrb[0].mxu0 %v1947
        %v2151 = vpop.f32.mrb[0].mxu0
        %v2152 = vadd.f32 %v2039, %v2151
        %v2153 = vpop.f32.mrb[0].mxu0
        %2154 = vmatprep.mubr.f32.mxu0 %v1964
        %2155 = vmatmul.mubr.f32.gmra.mrb[0].mxu0 %v1948
        %v2156 = vpop.f32.mrb[0].mxu0
        %v2157 = vadd.f32 %v2039, %v2156
        %v2158 = vpop.f32.mrb[0].mxu0
        %2159 = vmatprep.mubr.f32.mxu0 %v1965
        %2160 = vmatmul.mubr.f32.gmra.mrb[0].mxu0 %v1949
        %v2161 = vpop.f32.mrb[0].mxu0
        %v2162 = vadd.f32 %v2039, %v2161
        %v2163 = vpop.f32.mrb[0].mxu0
        %2164 = vmatprep.mubr.f32.mxu0 %v1966
        %2165 = vmatmul.mubr.f32.gmra.mrb[0].mxu0 %v1950
        %v2166 = vpop.f32.mrb[0].mxu0
        %v2167 = vadd.f32 %v2039, %v2166
        %v2168 = vpop.f32.mrb[0].mxu0
        %2169 = vmatprep.mubr.f32.mxu0 %v1967
        %2170 = vmatmul.mubr.f32.gmra.mrb[0].mxu0 %v1951
        %v2171 = vpop.f32.mrb[0].mxu0
        %v2172 = vadd.f32 %v2039, %v2171
        %v2173 = vpop.f32.mrb[0].mxu0
        %2174 = vmatprep.mubr.f32.mxu0 %v1968
        %2175 = vmatmul.mubr.f32.gmra.mrb[0].mxu0 %v1952
        %v2176 = vpop.f32.mrb[0].mxu0
        %v2177 = vadd.f32 %v2039, %v2176
        %v2178 = vpop.f32.mrb[0].mxu0
        %2179 = vmatprep.mubr.f32.mxu0 %v1969
        %2180 = vmatmul.mubr.f32.gmra.mrb[0].mxu0 %v1953
        %v2181 = vpop.f32.mrb[0].mxu0
        %v2182 = vadd.f32 %v2039, %v2181
        %v2183 = vpop.f32.mrb[0].mxu0
        %2184 = vdwg.mxu0
        %2185 = vmatprep.subr.mxu0 0.0
        %2186 = vmatpush1.msra.mxu0 %v2019
        %2187 = vmatprep.subr.mxu0 0.0
        %2188 = vmatpush1.msra.mxu0 %v2020
        %2189 = vmatprep.subr.mxu0 0.0
        %2190 = vmatpush1.msra.mxu0 %v2021
        %2191 = vmatprep.subr.mxu0 0.0
        %2192 = vmatpush1.msra.mxu0 %v2022
        %2193 = vmatprep.subr.mxu0 0.0
        %2194 = vmatpush1.msra.mxu0 %v2023
        %2195 = vmatprep.subr.mxu0 0.0
        %2196 = vmatpush1.msra.mxu0 %v2024
        %2197 = vmatprep.subr.mxu0 0.0
        %2198 = vmatpush1.msra.mxu0 %v2025
        %2199 = vmatprep.subr.mxu0 0.0
        %2200 = vmatpush1.msra.mxu0 %v2026
        %2201 = vmatprep.subr.mxu0 0.0
        %2202 = vmatpush1.msra.mxu0 %v2027
        %2203 = vmatprep.subr.mxu0 0.0
        %2204 = vmatpush1.msra.mxu0 %v2028
        %2205 = vmatprep.subr.mxu0 0.0
        %2206 = vmatpush1.msra.mxu0 %v2029
        %2207 = vmatprep.subr.mxu0 0.0
        %2208 = vmatpush1.msra.mxu0 %v2030
        %2209 = vmatprep.subr.mxu0 0.0
        %2210 = vmatpush1.msra.mxu0 %v2031
        %2211 = vmatprep.subr.mxu0 0.0
        %2212 = vmatpush1.msra.mxu0 %v2032
        %2213 = vmatprep.subr.mxu0 0.0
        %2214 = vmatpush1.msra.mxu0 %v2033
        %2215 = vmatprep.subr.mxu0 0.0
        %2216 = vmatpush1.msra.mxu0 %v2034
        %2217 = vmatprep.subr.mxu0 0.0
        %2218 = vmatpush1.msra.mxu0 0.0
        %2219 = vmatprep.subr.mxu0 0.0
        %2220 = vmatpush1.msra.mxu0 0.0
        %2221 = vmatprep.subr.mxu0 0.0
        %2222 = vmatpush1.msra.mxu0 0.0
        %2223 = vmatprep.subr.mxu0 0.0
        %2224 = vmatpush1.msra.mxu0 0.0
        %2225 = vmatprep.subr.mxu0 0.0
        %2226 = vmatpush1.msra.mxu0 0.0
        %2227 = vmatprep.subr.mxu0 0.0
        %2228 = vmatpush1.msra.mxu0 0.0
        %2229 = vmatprep.subr.mxu0 0.0
        %2230 = vmatpush1.msra.mxu0 0.0
        %2231 = vmatprep.subr.mxu0 0.0
        %2232 = vmatpush1.msra.mxu0 0.0
        %2233 = vmatprep.subr.mxu0 0.0
        %2234 = vmatpush1.msra.mxu0 0.0
        %2235 = vmatprep.subr.mxu0 0.0
        %2236 = vmatpush1.msra.mxu0 0.0
        %2237 = vmatprep.subr.mxu0 0.0
        %2238 = vmatpush1.msra.mxu0 0.0
        %2239 = vmatprep.subr.mxu0 0.0
        %2240 = vmatpush1.msra.mxu0 0.0
        %2241 = vmatprep.subr.mxu0 0.0
        %2242 = vmatpush1.msra.mxu0 0.0
        %2243 = vmatprep.subr.mxu0 0.0
        %2244 = vmatpush1.msra.mxu0 0.0
        %2245 = vmatprep.subr.mxu0 0.0
        %2246 = vmatpush1.msra.mxu0 0.0
        %2247 = vmatprep.subr.mxu0 0.0
        %2248 = vmatpush1.msra.mxu0 0.0
        %2249 = vmatprep.mubr.f32.mxu0 0.0
        %2250 = vmatmul.mubr.f32.gmra.mrb[0].mxu0 %v1970
        %v2251 = vpop.f32.mrb[0].mxu0
        %v2252 = vadd.f32 %v2107, %v2251
        %v2253 = vpop.f32.mrb[0].mxu0
        %2254 = vmatprep.mubr.f32.mxu0 0.0
        %2255 = vmatmul.mubr.f32.gmra.mrb[0].mxu0 %v1971
        %v2256 = vpop.f32.mrb[0].mxu0
        %v2257 = vadd.f32 %v2112, %v2256
        %v2258 = vpop.f32.mrb[0].mxu0
        %2259 = vmatprep.mubr.f32.mxu0 0.0
        %2260 = vmatmul.mubr.f32.gmra.mrb[0].mxu0 %v1972
        %v2261 = vpop.f32.mrb[0].mxu0
        %v2262 = vadd.f32 %v2117, %v2261
        %v2263 = vpop.f32.mrb[0].mxu0
        %2264 = vmatprep.mubr.f32.mxu0 0.0
        %2265 = vmatmul.mubr.f32.gmra.mrb[0].mxu0 %v1973
        %v2266 = vpop.f32.mrb[0].mxu0
        %v2267 = vadd.f32 %v2122, %v2266
        %v2268 = vpop.f32.mrb[0].mxu0
        %2269 = vmatprep.mubr.f32.mxu0 0.0
        %2270 = vmatmul.mubr.f32.gmra.mrb[0].mxu0 %v1974
        %v2271 = vpop.f32.mrb[0].mxu0
        %v2272 = vadd.f32 %v2127, %v2271
        %v2273 = vpop.f32.mrb[0].mxu0
        %2274 = vmatprep.mubr.f32.mxu0 0.0
        %2275 = vmatmul.mubr.f32.gmra.mrb[0].mxu0 %v1975
        %v2276 = vpop.f32.mrb[0].mxu0
        %v2277 = vadd.f32 %v2132, %v2276
        %v2278 = vpop.f32.mrb[0].mxu0
        %2279 = vmatprep.mubr.f32.mxu0 0.0
        %2280 = vmatmul.mubr.f32.gmra.mrb[0].mxu0 %v1976
        %v2281 = vpop.f32.mrb[0].mxu0
        %v2282 = vadd.f32 %v2137, %v2281
        %v2283 = vpop.f32.mrb[0].mxu0
        %2284 = vmatprep.mubr.f32.mxu0 0.0
        %2285 = vmatmul.mubr.f32.gmra.mrb[0].mxu0 %v1977
        %v2286 = vpop.f32.mrb[0].mxu0
        %v2287 = vadd.f32 %v2142, %v2286
        %v2288 = vpop.f32.mrb[0].mxu0
        %2289 = vmatprep.mubr.f32.mxu0 0.0
        %2290 = vmatmul.mubr.f32.gmra.mrb[0].mxu0 %v1978
        %v2291 = vpop.f32.mrb[0].mxu0
        %v2292 = vadd.f32 %v2147, %v2291
        %v2293 = vpop.f32.mrb[0].mxu0
        %2294 = vmatprep.mubr.f32.mxu0 0.0
        %2295 = vmatmul.mubr.f32.gmra.mrb[0].mxu0 %v1979
        %v2296 = vpop.f32.mrb[0].mxu0
        %v2297 = vadd.f32 %v2152, %v2296
        %v2298 = vpop.f32.mrb[0].mxu0
        %2299 = vmatprep.mubr.f32.mxu0 0.0
        %2300 = vmatmul.mubr.f32.gmra.mrb[0].mxu0 %v1980
        %v2301 = vpop.f32.mrb[0].mxu0
        %v2302 = vadd.f32 %v2157, %v2301
        %v2303 = vpop.f32.mrb[0].mxu0
        %2304 = vmatprep.mubr.f32.mxu0 0.0
        %2305 = vmatmul.mubr.f32.gmra.mrb[0].mxu0 %v1981
        %v2306 = vpop.f32.mrb[0].mxu0
        %v2307 = vadd.f32 %v2162, %v2306
        %v2308 = vpop.f32.mrb[0].mxu0
        %2309 = vmatprep.mubr.f32.mxu0 0.0
        %2310 = vmatmul.mubr.f32.gmra.mrb[0].mxu0 %v1982
        %v2311 = vpop.f32.mrb[0].mxu0
        %v2312 = vadd.f32 %v2167, %v2311
        %v2313 = vpop.f32.mrb[0].mxu0
        %2314 = vmatprep.mubr.f32.mxu0 0.0
        %2315 = vmatmul.mubr.f32.gmra.mrb[0].mxu0 %v1983
        %v2316 = vpop.f32.mrb[0].mxu0
        %v2317 = vadd.f32 %v2172, %v2316
        %v2318 = vpop.f32.mrb[0].mxu0
        %2319 = vmatprep.mubr.f32.mxu0 0.0
        %2320 = vmatmul.mubr.f32.gmra.mrb[0].mxu0 %v1984
        %v2321 = vpop.f32.mrb[0].mxu0
        %v2322 = vadd.f32 %v2177, %v2321
        %v2323 = vpop.f32.mrb[0].mxu0
        %2324 = vmatprep.mubr.f32.mxu0 0.0
        %2325 = vmatmul.mubr.f32.gmra.mrb[0].mxu0 %v1985
        %v2326 = vpop.f32.mrb[0].mxu0
        %v2327 = vadd.f32 %v2182, %v2326
        %v2328 = vpop.f32.mrb[0].mxu0
        %2329 = vdwg.mxu0
        %v2330 = vmax.f32 %v2252, 0.0
        %v2331 = vmax.f32 %v2257, 0.0
        %v2332 = vmax.f32 %v2262, 0.0
        %v2333 = vmax.f32 %v2267, 0.0
        %v2334 = vmax.f32 %v2272, 0.0
        %v2335 = vmax.f32 %v2277, 0.0
        %v2336 = vmax.f32 %v2282, 0.0
        %v2337 = vmax.f32 %v2287, 0.0
        %v2338 = vmax.f32 %v2292, 0.0
        %v2339 = vmax.f32 %v2297, 0.0
        %v2340 = vmax.f32 %v2302, 0.0
        %v2341 = vmax.f32 %v2307, 0.0
        %v2342 = vmax.f32 %v2312, 0.0
        %v2343 = vmax.f32 %v2317, 0.0
        %v2344 = vmax.f32 %v2322, 0.0
        %v2345 = vmax.f32 %v2327, 0.0
        %v2346 = vadd.f32 %v1954, %v2330
        %v2347 = vadd.f32 %v1955, %v2331
        %v2348 = vadd.f32 %v1956, %v2332
        %v2349 = vadd.f32 %v1957, %v2333
        %v2350 = vadd.f32 %v1958, %v2334
        %v2351 = vadd.f32 %v1959, %v2335
        %v2352 = vadd.f32 %v1960, %v2336
        %v2353 = vadd.f32 %v1961, %v2337
        %v2354 = vadd.f32 %v1962, %v2338
        %v2355 = vadd.f32 %v1963, %v2339
        %v2356 = vadd.f32 %v1964, %v2340
        %v2357 = vadd.f32 %v1965, %v2341
        %v2358 = vadd.f32 %v1966, %v2342
        %v2359 = vadd.f32 %v1967, %v2343
        %v2360 = vadd.f32 %v1968, %v2344
        %v2361 = vadd.f32 %v1969, %v2345
        %2362 = vadd.xlane.f32.xlu0 %v2346
        %v2363 = vpop.xlane.xlu0 %2362
        %2364 = vadd.xlane.f32.xlu0 %v2347
        %v2365 = vpop.xlane.xlu0 %2364
        %2366 = vadd.xlane.f32.xlu0 %v2348
        %v2367 = vpop.xlane.xlu0 %2366
        %2368 = vadd.xlane.f32.xlu0 %v2349
        %v2369 = vpop.xlane.xlu0 %2368
        %2370 = vadd.xlane.f32.xlu0 %v2350
        %v2371 = vpop.xlane.xlu0 %2370
        %2372 = vadd.xlane.f32.xlu0 %v2351
        %v2373 = vpop.xlane.xlu0 %2372
        %2374 = vadd.xlane.f32.xlu0 %v2352
        %v2375 = vpop.xlane.xlu0 %2374
        %2376 = vadd.xlane.f32.xlu0 %v2353
        %v2377 = vpop.xlane.xlu0 %2376
        %2378 = vadd.xlane.f32.xlu0 %v2354
        %v2379 = vpop.xlane.xlu0 %2378
        %2380 = vadd.xlane.f32.xlu0 %v2355
        %v2381 = vpop.xlane.xlu0 %2380
        %2382 = vadd.xlane.f32.xlu0 %v2356
        %v2383 = vpop.xlane.xlu0 %2382
        %2384 = vadd.xlane.f32.xlu0 %v2357
        %v2385 = vpop.xlane.xlu0 %2384
        %2386 = vadd.xlane.f32.xlu0 %v2358
        %v2387 = vpop.xlane.xlu0 %2386
        %2388 = vadd.xlane.f32.xlu0 %v2359
        %v2389 = vpop.xlane.xlu0 %2388
        %2390 = vadd.xlane.f32.xlu0 %v2360
        %v2391 = vpop.xlane.xlu0 %2390
        %2392 = vadd.xlane.f32.xlu0 %v2361
        %v2393 = vpop.xlane.xlu0 %2392
        %v2394 = vmul.f32 %v2363, %v772
        %v2395 = vmul.f32 %v2365, %v772
        %v2396 = vmul.f32 %v2367, %v772
        %v2397 = vmul.f32 %v2369, %v772
        %v2398 = vmul.f32 %v2371, %v772
        %v2399 = vmul.f32 %v2373, %v772
        %v2400 = vmul.f32 %v2375, %v772
        %v2401 = vmul.f32 %v2377, %v772
        %v2402 = vmul.f32 %v2379, %v772
        %v2403 = vmul.f32 %v2381, %v772
        %v2404 = vmul.f32 %v2383, %v772
        %v2405 = vmul.f32 %v2385, %v772
        %v2406 = vmul.f32 %v2387, %v772
        %v2407 = vmul.f32 %v2389, %v772
        %v2408 = vmul.f32 %v2391, %v772
        %v2409 = vmul.f32 %v2393, %v772
        %v2410 = vsub.f32 %v2346, %v2394
        %v2411 = vsub.f32 %v2347, %v2395
        %v2412 = vsub.f32 %v2348, %v2396
        %v2413 = vsub.f32 %v2349, %v2397
        %v2414 = vsub.f32 %v2350, %v2398
        %v2415 = vsub.f32 %v2351, %v2399
        %v2416 = vsub.f32 %v2352, %v2400
        %v2417 = vsub.f32 %v2353, %v2401
        %v2418 = vsub.f32 %v2354, %v2402
        %v2419 = vsub.f32 %v2355, %v2403
        %v2420 = vsub.f32 %v2356, %v2404
        %v2421 = vsub.f32 %v2357, %v2405
        %v2422 = vsub.f32 %v2358, %v2406
        %v2423 = vsub.f32 %v2359, %v2407
        %v2424 = vsub.f32 %v2360, %v2408
        %v2425 = vsub.f32 %v2361, %v2409
        %v2426 = vmul.f32 %v2410, %v2410
        %v2427 = vmul.f32 %v2411, %v2411
        %v2428 = vmul.f32 %v2412, %v2412
        %v2429 = vmul.f32 %v2413, %v2413
        %v2430 = vmul.f32 %v2414, %v2414
        %v2431 = vmul.f32 %v2415, %v2415
        %v2432 = vmul.f32 %v2416, %v2416
        %v2433 = vmul.f32 %v2417, %v2417
        %v2434 = vmul.f32 %v2418, %v2418
        %v2435 = vmul.f32 %v2419, %v2419
        %v2436 = vmul.f32 %v2420, %v2420
        %v2437 = vmul.f32 %v2421, %v2421
        %v2438 = vmul.f32 %v2422, %v2422
        %v2439 = vmul.f32 %v2423, %v2423
        %v2440 = vmul.f32 %v2424, %v2424
        %v2441 = vmul.f32 %v2425, %v2425
        %2442 = vadd.xlane.f32.xlu0 %v2426
        %v2443 = vpop.xlane.xlu0 %2442
        %2444 = vadd.xlane.f32.xlu0 %v2427
        %v2445 = vpop.xlane.xlu0 %2444
        %2446 = vadd.xlane.f32.xlu0 %v2428
        %v2447 = vpop.xlane.xlu0 %2446
        %2448 = vadd.xlane.f32.xlu0 %v2429
        %v2449 = vpop.xlane.xlu0 %2448
        %2450 = vadd.xlane.f32.xlu0 %v2430
        %v2451 = vpop.xlane.xlu0 %2450
        %2452 = vadd.xlane.f32.xlu0 %v2431
        %v2453 = vpop.xlane.xlu0 %2452
        %2454 = vadd.xlane.f32.xlu0 %v2432
        %v2455 = vpop.xlane.xlu0 %2454
        %2456 = vadd.xlane.f32.xlu0 %v2433
        %v2457 = vpop.xlane.xlu0 %2456
        %2458 = vadd.xlane.f32.xlu0 %v2434
        %v2459 = vpop.xlane.xlu0 %2458
        %2460 = vadd.xlane.f32.xlu0 %v2435
        %v2461 = vpop.xlane.xlu0 %2460
        %2462 = vadd.xlane.f32.xlu0 %v2436
        %v2463 = vpop.xlane.xlu0 %2462
        %2464 = vadd.xlane.f32.xlu0 %v2437
        %v2465 = vpop.xlane.xlu0 %2464
        %2466 = vadd.xlane.f32.xlu0 %v2438
        %v2467 = vpop.xlane.xlu0 %2466
        %2468 = vadd.xlane.f32.xlu0 %v2439
        %v2469 = vpop.xlane.xlu0 %2468
        %2470 = vadd.xlane.f32.xlu0 %v2440
        %v2471 = vpop.xlane.xlu0 %2470
        %2472 = vadd.xlane.f32.xlu0 %v2441
        %v2473 = vpop.xlane.xlu0 %2472
        %v2474 = vmul.f32 %v2443, %v772
        %v2475 = vmul.f32 %v2445, %v772
        %v2476 = vmul.f32 %v2447, %v772
        %v2477 = vmul.f32 %v2449, %v772
        %v2478 = vmul.f32 %v2451, %v772
        %v2479 = vmul.f32 %v2453, %v772
        %v2480 = vmul.f32 %v2455, %v772
        %v2481 = vmul.f32 %v2457, %v772
        %v2482 = vmul.f32 %v2459, %v772
        %v2483 = vmul.f32 %v2461, %v772
        %v2484 = vmul.f32 %v2463, %v772
        %v2485 = vmul.f32 %v2465, %v772
        %v2486 = vmul.f32 %v2467, %v772
        %v2487 = vmul.f32 %v2469, %v772
        %v2488 = vmul.f32 %v2471, %v772
        %v2489 = vmul.f32 %v2473, %v772
        %v2490 = vadd.f32 %v2474, 1e-12
        %v2491 = vadd.f32 %v2475, 1e-12
        %v2492 = vadd.f32 %v2476, 1e-12
        %v2493 = vadd.f32 %v2477, 1e-12
        %v2494 = vadd.f32 %v2478, 1e-12
        %v2495 = vadd.f32 %v2479, 1e-12
        %v2496 = vadd.f32 %v2480, 1e-12
        %v2497 = vadd.f32 %v2481, 1e-12
        %v2498 = vadd.f32 %v2482, 1e-12
        %v2499 = vadd.f32 %v2483, 1e-12
        %v2500 = vadd.f32 %v2484, 1e-12
        %v2501 = vadd.f32 %v2485, 1e-12
        %v2502 = vadd.f32 %v2486, 1e-12
        %v2503 = vadd.f32 %v2487, 1e-12
        %v2504 = vadd.f32 %v2488, 1e-12
        %v2505 = vadd.f32 %v2489, 1e-12
        %v2506 = vrsqrt.pop %v2490
        %v2507 = vrsqrt.pop %v2491
        %v2508 = vrsqrt.pop %v2492
        %v2509 = vrsqrt.pop %v2493
        %v2510 = vrsqrt.pop %v2494
        %v2511 = vrsqrt.pop %v2495
        %v2512 = vrsqrt.pop %v2496
        %v2513 = vrsqrt.pop %v2497
        %v2514 = vrsqrt.pop %v2498
        %v2515 = vrsqrt.pop %v2499
        %v2516 = vrsqrt.pop %v2500
        %v2517 = vrsqrt.pop %v2501
        %v2518 = vrsqrt.pop %v2502
        %v2519 = vrsqrt.pop %v2503
        %v2520 = vrsqrt.pop %v2504
        %v2521 = vrsqrt.pop %v2505
        %v2522 = vmul.f32 %v2410, %v2506
        %v2523 = vmul.f32 %v2411, %v2507
        %v2524 = vmul.f32 %v2412, %v2508
        %v2525 = vmul.f32 %v2413, %v2509
        %v2526 = vmul.f32 %v2414, %v2510
        %v2527 = vmul.f32 %v2415, %v2511
        %v2528 = vmul.f32 %v2416, %v2512
        %v2529 = vmul.f32 %v2417, %v2513
        %v2530 = vmul.f32 %v2418, %v2514
        %v2531 = vmul.f32 %v2419, %v2515
        %v2532 = vmul.f32 %v2420, %v2516
        %v2533 = vmul.f32 %v2421, %v2517
        %v2534 = vmul.f32 %v2422, %v2518
        %v2535 = vmul.f32 %v2423, %v2519
        %v2536 = vmul.f32 %v2424, %v2520
        %v2537 = vmul.f32 %v2425, %v2521
        %v2538 = vld [vmem:[%s3 + $0x2] sm:$0x1]
        %v2539 = vlaneseq
        %v2540 = vshrl.u32 %v2539, 7
        %v2541 = vsub.s32 0, %v2540
        %v2542 = vrot.slane %v2538, %v2541
        %v2543 = vmul.f32 %v2542, %v2522
        %v2544 = vmul.f32 %v2542, %v2523
        %v2545 = vmul.f32 %v2542, %v2524
        %v2546 = vmul.f32 %v2542, %v2525
        %v2547 = vmul.f32 %v2542, %v2526
        %v2548 = vmul.f32 %v2542, %v2527
        %v2549 = vmul.f32 %v2542, %v2528
        %v2550 = vmul.f32 %v2542, %v2529
        %v2551 = vmul.f32 %v2542, %v2530
        %v2552 = vmul.f32 %v2542, %v2531
        %v2553 = vmul.f32 %v2542, %v2532
        %v2554 = vmul.f32 %v2542, %v2533
        %v2555 = vmul.f32 %v2542, %v2534
        %v2556 = vmul.f32 %v2542, %v2535
        %v2557 = vmul.f32 %v2542, %v2536
        %v2558 = vmul.f32 %v2542, %v2537
        %v2559 = vld [vmem:[%s4 + $0x2] sm:$0x1]
        %v2560 = vlaneseq
        %v2561 = vshrl.u32 %v2560, 7
        %v2562 = vsub.s32 0, %v2561
        %v2563 = vrot.slane %v2559, %v2562
        %v2564 = vadd.f32 %v2543, %v2563
        %v2565 = vadd.f32 %v2544, %v2563
        %v2566 = vadd.f32 %v2545, %v2563
        %v2567 = vadd.f32 %v2546, %v2563
        %v2568 = vadd.f32 %v2547, %v2563
        %v2569 = vadd.f32 %v2548, %v2563
        %v2570 = vadd.f32 %v2549, %v2563
        %v2571 = vadd.f32 %v2550, %v2563
        %v2572 = vadd.f32 %v2551, %v2563
        %v2573 = vadd.f32 %v2552, %v2563
        %v2574 = vadd.f32 %v2553, %v2563
        %v2575 = vadd.f32 %v2554, %v2563
        %v2576 = vadd.f32 %v2555, %v2563
        %v2577 = vadd.f32 %v2556, %v2563
        %v2578 = vadd.f32 %v2557, %v2563
        %v2579 = vadd.f32 %v2558, %v2563
        %2580 = vst [vmem:[%s205] sm:$0xff] %v2564
        %2581 = vst [vmem:[%s205 + $0x8] sm:$0xff] %v2565
        %2582 = vst [vmem:[%s205 + $0x10] sm:$0xff] %v2566
        %2583 = vst [vmem:[%s205 + $0x18] sm:$0xff] %v2567
        %2584 = vst [vmem:[%s205 + $0x20] sm:$0xff] %v2568
        %2585 = vst [vmem:[%s205 + $0x28] sm:$0xff] %v2569
        %2586 = vst [vmem:[%s205 + $0x30] sm:$0xff] %v2570
        %2587 = vst [vmem:[%s205 + $0x38] sm:$0xff] %v2571
        %2588 = vst [vmem:[%s205 + $0x40] sm:$0xff] %v2572
        %2589 = vst [vmem:[%s205 + $0x48] sm:$0xff] %v2573
        %2590 = vst [vmem:[%s205 + $0x50] sm:$0xff] %v2574
        %2591 = vst [vmem:[%s205 + $0x58] sm:$0xff] %v2575
        %2592 = vst [vmem:[%s205 + $0x60] sm:$0xff] %v2576
        %2593 = vst [vmem:[%s205 + $0x68] sm:$0xff] %v2577
        %2594 = vst [vmem:[%s205 + $0x70] sm:$0xff] %v2578
        %2595 = vst [vmem:[%s205 + $0x78] sm:$0xff] %v2579
        %s2596 = sand.u32 %s126, 1
        %s2597 = scalar_lea.sflag [#allocation6], %s2596
        %s2598 = sand.u32 %s126, 1
        %s2599 = smul.addr %s2598, 128
        %s2600 = scalar_lea.vmem [#allocation7], %s2599
        // Predicated region
        $region78: #{tpu_custom_call.1} parent=35 // pred_check
          %p2601 = pneg %p136
        $region79: #{tpu_custom_call.1} parent=35 // pred_check_branch
          %2603 = sbr.rel (%p2601) target = $region81
        $region80: #{tpu_custom_call.1} parent=35 // pred_region
          %s2604 = smul.u32 16, %s25
          %s2606 = ssub.s32 2048, 2048
          %2607 = vsyncadd %s2597, %s2606
          %s2608 = smul.addr %s24, 32
          %s2609 = sadd.s32 %s2604, %s2608
          %s2610 = smul.addr %s2609, 128
          %s2611 = scalar_lea.hbm %s5, %s2610
          %s2612 = sshll.u32 %s2600, 4
          %s2613 = int_to_ptr.vmem [resolvable:$true] %s2612
          %2618 = dma.vmem_to_hbm [thread:$0]  %s2613, 2048, %s2611, %s2597, 128, 128, 8
        $region81: #{tpu_custom_call.1} parent=35 // pred_fallthru
          _
      $region36: #{tpu_custom_call.1} parent=5 // pred_fallthru
        _
      %p2619 = scmp.le.s32.totalorder 2, %s15
      // Predicated region
      $region82: #{tpu_custom_call.1} parent=5 // pred_check
        %p2620 = pneg %p2619
      $region83: #{tpu_custom_call.1} parent=5 // pred_check_branch
        %2622 = sbr.rel (%p2620) target = $region85
      $region84: #{tpu_custom_call.1} parent=5 // pred_region
        %s2623 = ssub.s32 %s15, 2
        // Predicated region
        $region86: #{tpu_custom_call.1} parent=84 // pred_check
          %p2624 = pneg %p142
        $region87: #{tpu_custom_call.1} parent=84 // pred_check_branch
          %2626 = sbr.rel (%p2624) target = $region89
        $region88: #{tpu_custom_call.1} parent=84 // pred_region
          %s2627 = sand.u32 %s127, 1
          %s2628 = scalar_lea.sflag [#allocation6], %s2627
          %s2629 = sand.u32 %s127, 1
          %s2630 = smul.addr %s2629, 128
          %s2631 = scalar_lea.vmem [#allocation7], %s2630
          %2632 = dma.done %s2628, 2048
        $region89: #{tpu_custom_call.1} parent=84 // pred_fallthru
          _
      $region85: #{tpu_custom_call.1} parent=5 // pred_fallthru
        _
    $region6: #{tpu_custom_call.1} parent=1 // loop_footer
      %s19 = sadd.s32 1, %s15
    $region7: #{tpu_custom_call.1} parent=1 // loop_footer_branch
      %14 = sbr.rel target = $region3
    $region8: #{tpu_custom_call.1} parent=1 // loop_exit
      _
    %2633 = vsyncpa [#allocation5], 1
    %s2634 = scalar_lea.sflag [#allocation5], 1
    %2635 = vsyncpa %s2634, 1
    %2636 = vsyncpa [#allocation6], 1
    %s2637 = scalar_lea.sflag [#allocation6], 1
    %2638 = vsyncpa %s2637, 1
  %2639 = vsyncmov [#allocation3]
  %s2640 = vpop.sfrf %2639
  %p2641 = scmp.eq.s32.totalorder %s2640, 0
  %p2642 = pneg %p2641
  %2644 = shalt.err (%p2642)

</llo_original>
